<compile_context>
chip_gen: v7x
topology: tpu7x:2x2x1
jax: 0.10.0
libtpu: 0.0.40
codegen_flags: <defaults>
</compile_context>

<pallas_src>
import functools
import math

import jax
import jax.numpy as jnp
from jax.experimental import pallas as pl
from jax.experimental.pallas import tpu as pltpu


_BT_MAX = 256  # max batch tile (cap chosen for v7x's 64 MiB VMEM)


# ---------------------------------------------------------------------------
# Fused kernel: conv1+relu+pool1 -> conv2+relu+pool2 -> fc1/fc2/fc3
# ---------------------------------------------------------------------------

def _net_kernel(x_ref, band1_ref, bias1_ref, sel1_ref,
                band2_ref, bias2_ref, sel2_ref,
                fc1w_ref, fc1b_ref, fc2w_ref, fc2b_ref, fc3w_ref, fc3b_ref,
                out_ref, *, bt):
    f32 = jnp.float32
    bf16 = jnp.bfloat16

    img = x_ref[...]                                     # (36, bt, 36) bf16

    # ---- conv1 + bias + ReLU (banded matmuls, chained sum over 5 row shifts) ----
    # rows = y*bt + b ; lanes = o*32 + x  (o in [0,6), x in [0,32))
    y1 = None
    for i in range(5):
        xi = img[i:i + 32, :, :].reshape(32 * bt, 36)
        part = jnp.dot(xi, band1_ref[i], preferred_element_type=f32)
        y1 = part if y1 is None else y1 + part
    y1 = jnp.maximum(y1 + bias1_ref[...], 0.0)           # (32*bt, 192) f32

    # ---- pool1 2x2: H via leading-dim pairwise max, W via one fused selector ----
    v = y1.reshape(16, 2, bt, 192)
    p1 = jnp.maximum(v[:, 0], v[:, 1]).reshape(16 * bt, 192).astype(bf16)
    q1 = jnp.dot(p1, sel1_ref[...], preferred_element_type=f32)   # (16*bt, 256)
    x1 = jnp.maximum(q1[:, :128], q1[:, 128:]).astype(bf16)       # lanes c*16+q, [96,128)=0
    x1 = x1.reshape(16, bt, 128)

    # ---- conv2 + bias + ReLU ----
    # rows = y*bt + b ; lanes = m*12 + x  (m in [0,16), x in [0,12))
    y2 = None
    for i in range(5):
        xi = x1[i:i + 12, :, :].reshape(12 * bt, 128)
        part = jnp.dot(xi, band2_ref[i], preferred_element_type=f32)
        y2 = part if y2 is None else y2 + part
    y2 = jnp.maximum(y2 + bias2_ref[...], 0.0)           # (12*bt, 192) f32

    # ---- pool2 2x2 ----
    v2 = y2.reshape(6, 2, bt, 192)
    p2 = jnp.maximum(v2[:, 0], v2[:, 1]).reshape(6 * bt, 192).astype(bf16)
    q2 = jnp.dot(p2, sel2_ref[...], preferred_element_type=f32)   # (6*bt, 256)
    x2 = jnp.maximum(q2[:, :128], q2[:, 128:]).astype(bf16)       # lanes m*6+q, [96,128)=0
    x2 = x2.reshape(6, bt, 128)

    # ---- fc1 via matmul accumulation over the 6 spatial rows (no lane concat) ----
    h = None
    for p in range(6):
        part = jnp.dot(x2[p], fc1w_ref[p], preferred_element_type=f32)
        h = part if h is None else h + part
    h = jnp.maximum(h + fc1b_ref[...], 0.0).astype(bf16)          # (bt, 32)
    h = jnp.dot(h, fc2w_ref[...], preferred_element_type=f32) + fc2b_ref[...]
    h = jnp.maximum(h, 0.0).astype(bf16)                          # (bt, 16)
    out = jnp.dot(h, fc3w_ref[...], preferred_element_type=f32) + fc3b_ref[...]
    out_ref[...] = out.astype(out_ref.dtype)                      # (bt, 128) lane-dense


# ---------------------------------------------------------------------------
# Wrapper-side weight preprocessing (tiny, traced under jit)
# ---------------------------------------------------------------------------

def _build_band1(conv1_w):
    # conv1_w: (6, 1, 5, 5).  band1[i, w, o*32 + x] = conv1_w[o, 0, i, w - x]
    w1 = conv1_w.reshape(6, 5, 5)
    i_ = jnp.arange(5)[:, None, None]
    w_ = jnp.arange(36)[None, :, None]
    n_ = jnp.arange(6 * 32)[None, None, :]
    o_, x_ = n_ // 32, n_ % 32
    j_ = w_ - x_
    valid = (j_ >= 0) & (j_ < 5)
    vals = w1[o_, i_, jnp.clip(j_, 0, 4)]
    return jnp.where(valid, vals, 0.0)                    # (5, 36, 192)


def _build_band2(conv2_w):
    # conv2_w: (16, 6, 5, 5).  band2[i, c*16 + v, m*12 + x] = conv2_w[m, c, i, v - x]
    i_ = jnp.arange(5)[:, None, None]
    k_ = jnp.arange(6 * 16)[None, :, None]
    n_ = jnp.arange(16 * 12)[None, None, :]
    c_, v_ = k_ // 16, k_ % 16
    m_, x_ = n_ // 12, n_ % 12
    j_ = v_ - x_
    valid = (j_ >= 0) & (j_ < 5)
    vals = conv2_w[m_, c_, i_, jnp.clip(j_, 0, 4)]
    return jnp.where(valid, vals, 0.0)                    # (5, 96, 192)


def _pool_select_fused(channels, width):
    # One (channels*width, 256) 0/1 selector: columns [0,96) pick the even
    # W-columns per channel, [128,224) the odd ones; [96,128)/[224,256) are 0
    # so both halves are 128-lane aligned.
    wo = width // 2
    n = channels * wo                                     # 96
    r = jnp.arange(channels * width)[:, None]
    c = jnp.arange(n)[None, :]
    ro, rx = r // width, r % width
    co, cq = c // wo, c % wo
    even = ((ro == co) & (rx == 2 * cq)).astype(jnp.float32)       # (192, 96)
    odd = ((ro == co) & (rx == 2 * cq + 1)).astype(jnp.float32)    # (192, 96)
    z = jnp.zeros((channels * width, 128 - n), jnp.float32)
    return jnp.concatenate([even, z, odd, z], axis=1)              # (192, 256)


# ---------------------------------------------------------------------------
# Parameters (deterministic, PyTorch-default-style uniform init)
# ---------------------------------------------------------------------------

def init_params(key):
    def u(k, shape, fan_in):
        bound = 1.0 / math.sqrt(fan_in)
        return jax.random.uniform(k, shape, jnp.float32, -bound, bound)

    ks = jax.random.split(key, 12)
    p = {}
    p["conv1_w"] = u(ks[0], (6, 1, 5, 5), 25)
    p["conv1_b"] = u(ks[1], (6,), 25)
    p["conv2_w"] = u(ks[2], (16, 6, 5, 5), 150)
    p["conv2_b"] = u(ks[3], (16,), 150)
    p["fc1_w"] = u(ks[4], (576, 32), 576)     # stored (in, out)
    p["fc1_b"] = u(ks[5], (32,), 576)
    p["fc2_w"] = u(ks[6], (32, 16), 32)
    p["fc2_b"] = u(ks[7], (16,), 32)
    p["fc3_w"] = u(ks[8], (16, 2), 16)
    p["fc3_b"] = u(ks[9], (2,), 16)
    return p


# ---------------------------------------------------------------------------
# Forward pass
# ---------------------------------------------------------------------------

@functools.partial(jax.jit, static_argnames=("block_batch",))
def net_forward(params, x, *, block_batch=None):
    # x: (B, 1, 36, 36) float32 NCHW (PyTorch convention) -> (B, 2) float32
    assert x.shape[1:] == (1, 36, 36), x.shape
    bf16 = jnp.bfloat16
    B = x.shape[0]
    if block_batch is None:
        # Large tiles amortize per-step overhead; cap at 256 (v7x VMEM budget).
        block_batch = min(_BT_MAX, max(8, ((B + 7) // 8) * 8))
    assert block_batch % 8 == 0
    bp = ((B + block_batch - 1) // block_batch) * block_batch

    # conv weights as banded lane-axis matmul matrices; biases broadcast to lanes
    band1 = _build_band1(params["conv1_w"]).astype(bf16)              # (5, 36, 192)
    bias1 = jnp.repeat(params["conv1_b"], 32)[None, :]                # (1, 192) f32
    sel1 = _pool_select_fused(6, 32).astype(bf16)                     # (192, 256)
    band2 = jnp.pad(_build_band2(params["conv2_w"]),
                    ((0, 0), (0, 32), (0, 0))).astype(bf16)           # (5, 128, 192)
    bias2 = jnp.repeat(params["conv2_b"], 12)[None, :]                # (1, 192) f32
    sel2 = _pool_select_fused(16, 12).astype(bf16)                    # (192, 256)
    # fc1: PyTorch flatten index = c*36 + p*6 + q; kernel lanes per row p are
    # m*6 + q (zero-padded to 128) -> (6, 128, 32) per-row weight blocks.
    fc1w = params["fc1_w"].reshape(16, 6, 6, 32).transpose(1, 0, 2, 3).reshape(6, 96, 32)
    fc1w = jnp.pad(fc1w, ((0, 0), (0, 32), (0, 0))).astype(bf16)      # (6, 128, 32)
    # fc3 zero-padded to 128 output lanes -> lane-dense, unmasked store.
    fc3w = jnp.pad(params["fc3_w"], ((0, 0), (0, 126))).astype(bf16)  # (16, 128)
    fc3b = jnp.pad(params["fc3_b"], (0, 126))[None, :]                # (1, 128) f32

    # input relayout: cast to bf16 FIRST (halves relayout bytes), then pad batch
    # and transpose NCHW (B,1,36,36) -> (H=36, B_pad, W=36).
    xw = x.reshape(B, 36, 36).astype(bf16)
    if bp != B:
        xw = jnp.pad(xw, ((0, bp - B), (0, 0), (0, 0)))
    xt = jnp.transpose(xw, (1, 0, 2))                                 # (36, bp, 36)

    weights = [
        band1, bias1, sel1,
        band2, bias2, sel2,
        fc1w, params["fc1_b"][None, :],
        params["fc2_w"].astype(bf16), params["fc2_b"][None, :],
        fc3w, fc3b,
    ]

    def _full_spec(a):
        return pl.BlockSpec(a.shape, lambda t, _nd=a.ndim: (0,) * _nd)

    out = pl.pallas_call(
        functools.partial(_net_kernel, bt=block_batch),
        out_shape=jax.ShapeDtypeStruct((bp, 128), jnp.float32),
        grid=(bp // block_batch,),
        in_specs=[pl.BlockSpec((36, block_batch, 36), lambda t: (0, t, 0))]
                 + [_full_spec(w) for w in weights],
        out_specs=pl.BlockSpec((block_batch, 128), lambda t: (t, 0)),
        compiler_params=pltpu.CompilerParams(
            dimension_semantics=("parallel",),
            vmem_limit_bytes=48 * 1024 * 1024),
    )(xt, *weights)
    # Padded batch rows / lanes [2,128) are garbage by construction; slice off.
    return out[:B, :2]


# Pure-JAX f32 reference (numerical sanity check only)
def net_forward_ref(params, x):
    def conv(x, w, b):
        y = jax.lax.conv_general_dilated(
            x, w, (1, 1), "VALID",
            dimension_numbers=("NCHW", "OIHW", "NCHW"))
        return y + b.reshape(1, -1, 1, 1)

    def pool(x):
        return jax.lax.reduce_window(
            x, -jnp.inf, jax.lax.max, (1, 1, 2, 2), (1, 1, 2, 2), "VALID")

    h = pool(jax.nn.relu(conv(x, params["conv1_w"], params["conv1_b"])))
    h = pool(jax.nn.relu(conv(h, params["conv2_w"], params["conv2_b"])))
    h = h.reshape(x.shape[0], 576)
    h = jax.nn.relu(h @ params["fc1_w"] + params["fc1_b"])
    h = jax.nn.relu(h @ params["fc2_w"] + params["fc2_b"])
    return h @ params["fc3_w"] + params["fc3_b"]


if __name__ == "__main__":
    key = jax.random.PRNGKey(0)
    pkey, xkey, xkey2 = jax.random.split(key, 3)
    params = init_params(pkey)

    # Architecture requires 36x36 inputs (so the 16*6*6 flatten works).
    x = jax.random.normal(xkey, (2, 1, 36, 36), dtype=jnp.float32)
    out = jax.block_until_ready(net_forward(params, x))
    assert out.shape == (2, 2), out.shape
    ref = net_forward_ref(params, x)
    # bf16 MXU operands with f32 accumulation -> small rounding vs f32 reference
    # (intentional precision trade, matches the review's correctness note).
    assert jnp.allclose(out, ref, rtol=5e-2, atol=2e-2), (out, ref)

    # Exercise the multi-step "parallel" batch grid (3 tiles of 8).
    x2 = jax.random.normal(xkey2, (24, 1, 36, 36), dtype=jnp.float32)
    out2 = jax.block_until_ready(net_forward(params, x2, block_batch=8))
    ref2 = net_forward_ref(params, x2)
    assert out2.shape == (24, 2), out2.shape
    assert jnp.allclose(out2, ref2, rtol=5e-2, atol=2e-2)

    print("KERNEL_OK")
</pallas_src>

<mosaic_0001>
module attributes {stable_mosaic.version = 11 : i64} {
  func.func @_net_kernel(%arg0: i32, %arg1: memref<36x8x36xbf16, #tpu.memory_space<vmem>>, %arg2: memref<5x36x192xbf16, #tpu.memory_space<vmem>>, %arg3: memref<1x192xf32, #tpu.memory_space<vmem>>, %arg4: memref<192x256xbf16, #tpu.memory_space<vmem>>, %arg5: memref<5x128x192xbf16, #tpu.memory_space<vmem>>, %arg6: memref<1x192xf32, #tpu.memory_space<vmem>>, %arg7: memref<192x256xbf16, #tpu.memory_space<vmem>>, %arg8: memref<6x128x32xbf16, #tpu.memory_space<vmem>>, %arg9: memref<1x32xf32, #tpu.memory_space<vmem>>, %arg10: memref<32x16xbf16, #tpu.memory_space<vmem>>, %arg11: memref<1x16xf32, #tpu.memory_space<vmem>>, %arg12: memref<16x128xbf16, #tpu.memory_space<vmem>>, %arg13: memref<1x128xf32, #tpu.memory_space<vmem>>, %arg14: memref<8x128xf32, #tpu.memory_space<vmem>>) attributes {dimension_semantics = [#tpu.dimension_semantics<parallel>], iteration_bounds = array<i64: 1>, scalar_prefetch = 0 : i64, scratch_operands = 0 : i64, tpu.core_type = #tpu.core_type<tc>, window_params = [{transform_indices = @transform_0, window_bounds = array<i64: 36, 8, 36>}, {pipeline_mode = #tpu.pipeline_mode<synchronous>, transform_indices = @transform_1, window_bounds = array<i64: 5, 36, 192>}, {pipeline_mode = #tpu.pipeline_mode<synchronous>, transform_indices = @transform_2, window_bounds = array<i64: 1, 192>}, {pipeline_mode = #tpu.pipeline_mode<synchronous>, transform_indices = @transform_3, window_bounds = array<i64: 192, 256>}, {pipeline_mode = #tpu.pipeline_mode<synchronous>, transform_indices = @transform_4, window_bounds = array<i64: 5, 128, 192>}, {pipeline_mode = #tpu.pipeline_mode<synchronous>, transform_indices = @transform_5, window_bounds = array<i64: 1, 192>}, {pipeline_mode = #tpu.pipeline_mode<synchronous>, transform_indices = @transform_6, window_bounds = array<i64: 192, 256>}, {pipeline_mode = #tpu.pipeline_mode<synchronous>, transform_indices = @transform_7, window_bounds = array<i64: 6, 128, 32>}, {pipeline_mode = #tpu.pipeline_mode<synchronous>, transform_indices = @transform_8, window_bounds = array<i64: 1, 32>}, {pipeline_mode = #tpu.pipeline_mode<synchronous>, transform_indices = @transform_9, window_bounds = array<i64: 32, 16>}, {pipeline_mode = #tpu.pipeline_mode<synchronous>, transform_indices = @transform_10, window_bounds = array<i64: 1, 16>}, {pipeline_mode = #tpu.pipeline_mode<synchronous>, transform_indices = @transform_11, window_bounds = array<i64: 16, 128>}, {pipeline_mode = #tpu.pipeline_mode<synchronous>, transform_indices = @transform_12, window_bounds = array<i64: 1, 128>}, {transform_indices = @transform_13, window_bounds = array<i64: 8, 128>}]} {
    %c0 = arith.constant 0 : index
    %c0_0 = arith.constant 0 : index
    %c0_1 = arith.constant 0 : index
    %0 = vector.load %arg1[%c0, %c0_0, %c0_1] : memref<36x8x36xbf16, #tpu.memory_space<vmem>>, vector<36x8x36xbf16>
    %1 = vector.extract_strided_slice %0 {offsets = [0, 0, 0], sizes = [32, 8, 36], strides = [1, 1, 1]} : vector<36x8x36xbf16> to vector<32x8x36xbf16>
    %2 = vector.shape_cast %1 : vector<32x8x36xbf16> to vector<256x36xbf16>
    %c0_2 = arith.constant 0 : index
    %c0_3 = arith.constant 0 : index
    %c0_4 = arith.constant 0 : index
    %3 = vector.load %arg2[%c0_2, %c0_3, %c0_4] : memref<5x36x192xbf16, #tpu.memory_space<vmem>>, vector<1x36x192xbf16>
    %4 = vector.shape_cast %3 : vector<1x36x192xbf16> to vector<36x192xbf16>
    %cst = arith.constant dense<0.000000e+00> : vector<256x192xf32>
    %5 = tpu.matmul %2, %4, %cst {dimension_numbers = #tpu.dot_dimension_numbers<[1], [0], [0], [1], [0, 0, 1, 1], [], []>} : vector<256x36xbf16>, vector<36x192xbf16>, vector<256x192xf32> -> vector<256x192xf32>
    %6 = vector.extract_strided_slice %0 {offsets = [1, 0, 0], sizes = [32, 8, 36], strides = [1, 1, 1]} : vector<36x8x36xbf16> to vector<32x8x36xbf16>
    %7 = vector.shape_cast %6 : vector<32x8x36xbf16> to vector<256x36xbf16>
    %c1 = arith.constant 1 : index
    %c0_5 = arith.constant 0 : index
    %c0_6 = arith.constant 0 : index
    %8 = vector.load %arg2[%c1, %c0_5, %c0_6] : memref<5x36x192xbf16, #tpu.memory_space<vmem>>, vector<1x36x192xbf16>
    %9 = vector.shape_cast %8 : vector<1x36x192xbf16> to vector<36x192xbf16>
    %cst_7 = arith.constant dense<0.000000e+00> : vector<256x192xf32>
    %10 = tpu.matmul %7, %9, %cst_7 {dimension_numbers = #tpu.dot_dimension_numbers<[1], [0], [0], [1], [0, 0, 1, 1], [], []>} : vector<256x36xbf16>, vector<36x192xbf16>, vector<256x192xf32> -> vector<256x192xf32>
    %11 = arith.addf %5, %10 : vector<256x192xf32>
    %12 = vector.extract_strided_slice %0 {offsets = [2, 0, 0], sizes = [32, 8, 36], strides = [1, 1, 1]} : vector<36x8x36xbf16> to vector<32x8x36xbf16>
    %13 = vector.shape_cast %12 : vector<32x8x36xbf16> to vector<256x36xbf16>
    %c2 = arith.constant 2 : index
    %c0_8 = arith.constant 0 : index
    %c0_9 = arith.constant 0 : index
    %14 = vector.load %arg2[%c2, %c0_8, %c0_9] : memref<5x36x192xbf16, #tpu.memory_space<vmem>>, vector<1x36x192xbf16>
    %15 = vector.shape_cast %14 : vector<1x36x192xbf16> to vector<36x192xbf16>
    %cst_10 = arith.constant dense<0.000000e+00> : vector<256x192xf32>
    %16 = tpu.matmul %13, %15, %cst_10 {dimension_numbers = #tpu.dot_dimension_numbers<[1], [0], [0], [1], [0, 0, 1, 1], [], []>} : vector<256x36xbf16>, vector<36x192xbf16>, vector<256x192xf32> -> vector<256x192xf32>
    %17 = arith.addf %11, %16 : vector<256x192xf32>
    %18 = vector.extract_strided_slice %0 {offsets = [3, 0, 0], sizes = [32, 8, 36], strides = [1, 1, 1]} : vector<36x8x36xbf16> to vector<32x8x36xbf16>
    %19 = vector.shape_cast %18 : vector<32x8x36xbf16> to vector<256x36xbf16>
    %c3 = arith.constant 3 : index
    %c0_11 = arith.constant 0 : index
    %c0_12 = arith.constant 0 : index
    %20 = vector.load %arg2[%c3, %c0_11, %c0_12] : memref<5x36x192xbf16, #tpu.memory_space<vmem>>, vector<1x36x192xbf16>
    %21 = vector.shape_cast %20 : vector<1x36x192xbf16> to vector<36x192xbf16>
    %cst_13 = arith.constant dense<0.000000e+00> : vector<256x192xf32>
    %22 = tpu.matmul %19, %21, %cst_13 {dimension_numbers = #tpu.dot_dimension_numbers<[1], [0], [0], [1], [0, 0, 1, 1], [], []>} : vector<256x36xbf16>, vector<36x192xbf16>, vector<256x192xf32> -> vector<256x192xf32>
    %23 = arith.addf %17, %22 : vector<256x192xf32>
    %24 = vector.extract_strided_slice %0 {offsets = [4, 0, 0], sizes = [32, 8, 36], strides = [1, 1, 1]} : vector<36x8x36xbf16> to vector<32x8x36xbf16>
    %25 = vector.shape_cast %24 : vector<32x8x36xbf16> to vector<256x36xbf16>
    %c4 = arith.constant 4 : index
    %c0_14 = arith.constant 0 : index
    %c0_15 = arith.constant 0 : index
    %26 = vector.load %arg2[%c4, %c0_14, %c0_15] : memref<5x36x192xbf16, #tpu.memory_space<vmem>>, vector<1x36x192xbf16>
    %27 = vector.shape_cast %26 : vector<1x36x192xbf16> to vector<36x192xbf16>
    %cst_16 = arith.constant dense<0.000000e+00> : vector<256x192xf32>
    %28 = tpu.matmul %25, %27, %cst_16 {dimension_numbers = #tpu.dot_dimension_numbers<[1], [0], [0], [1], [0, 0, 1, 1], [], []>} : vector<256x36xbf16>, vector<36x192xbf16>, vector<256x192xf32> -> vector<256x192xf32>
    %29 = arith.addf %23, %28 : vector<256x192xf32>
    %c0_17 = arith.constant 0 : index
    %c0_18 = arith.constant 0 : index
    %30 = vector.load %arg3[%c0_17, %c0_18] : memref<1x192xf32, #tpu.memory_space<vmem>>, vector<1x192xf32>
    %31 = vector.broadcast %30 : vector<1x192xf32> to vector<256x192xf32>
    %32 = arith.addf %29, %31 : vector<256x192xf32>
    %cst_19 = arith.constant 0.000000e+00 : f32
    %33 = vector.broadcast %cst_19 : f32 to vector<256x192xf32>
    %34 = arith.maximumf %32, %33 : vector<256x192xf32>
    %35 = vector.shape_cast %34 : vector<256x192xf32> to vector<16x2x8x192xf32>
    %36 = vector.extract_strided_slice %35 {offsets = [0, 0, 0, 0], sizes = [16, 1, 8, 192], strides = [1, 1, 1, 1]} : vector<16x2x8x192xf32> to vector<16x1x8x192xf32>
    %37 = vector.shape_cast %36 : vector<16x1x8x192xf32> to vector<16x8x192xf32>
    %38 = vector.extract_strided_slice %35 {offsets = [0, 1, 0, 0], sizes = [16, 1, 8, 192], strides = [1, 1, 1, 1]} : vector<16x2x8x192xf32> to vector<16x1x8x192xf32>
    %39 = vector.shape_cast %38 : vector<16x1x8x192xf32> to vector<16x8x192xf32>
    %40 = arith.maximumf %37, %39 : vector<16x8x192xf32>
    %41 = vector.shape_cast %40 : vector<16x8x192xf32> to vector<128x192xf32>
    %42 = arith.truncf %41 : vector<128x192xf32> to vector<128x192xbf16>
    %c0_20 = arith.constant 0 : index
    %c0_21 = arith.constant 0 : index
    %43 = vector.load %arg4[%c0_20, %c0_21] : memref<192x256xbf16, #tpu.memory_space<vmem>>, vector<192x256xbf16>
    %cst_22 = arith.constant dense<0.000000e+00> : vector<128x256xf32>
    %44 = tpu.matmul %42, %43, %cst_22 {dimension_numbers = #tpu.dot_dimension_numbers<[1], [0], [0], [1], [0, 0, 1, 1], [], []>} : vector<128x192xbf16>, vector<192x256xbf16>, vector<128x256xf32> -> vector<128x256xf32>
    %45 = vector.extract_strided_slice %44 {offsets = [0, 0], sizes = [128, 128], strides = [1, 1]} : vector<128x256xf32> to vector<128x128xf32>
    %46 = vector.extract_strided_slice %44 {offsets = [0, 128], sizes = [128, 128], strides = [1, 1]} : vector<128x256xf32> to vector<128x128xf32>
    %47 = arith.maximumf %45, %46 : vector<128x128xf32>
    %48 = arith.truncf %47 : vector<128x128xf32> to vector<128x128xbf16>
    %49 = vector.shape_cast %48 : vector<128x128xbf16> to vector<16x8x128xbf16>
    %50 = vector.extract_strided_slice %49 {offsets = [0, 0, 0], sizes = [12, 8, 128], strides = [1, 1, 1]} : vector<16x8x128xbf16> to vector<12x8x128xbf16>
    %51 = vector.shape_cast %50 : vector<12x8x128xbf16> to vector<96x128xbf16>
    %c0_23 = arith.constant 0 : index
    %c0_24 = arith.constant 0 : index
    %c0_25 = arith.constant 0 : index
    %52 = vector.load %arg5[%c0_23, %c0_24, %c0_25] : memref<5x128x192xbf16, #tpu.memory_space<vmem>>, vector<1x128x192xbf16>
    %53 = vector.shape_cast %52 : vector<1x128x192xbf16> to vector<128x192xbf16>
    %cst_26 = arith.constant dense<0.000000e+00> : vector<96x192xf32>
    %54 = tpu.matmul %51, %53, %cst_26 {dimension_numbers = #tpu.dot_dimension_numbers<[1], [0], [0], [1], [0, 0, 1, 1], [], []>} : vector<96x128xbf16>, vector<128x192xbf16>, vector<96x192xf32> -> vector<96x192xf32>
    %55 = vector.extract_strided_slice %49 {offsets = [1, 0, 0], sizes = [12, 8, 128], strides = [1, 1, 1]} : vector<16x8x128xbf16> to vector<12x8x128xbf16>
    %56 = vector.shape_cast %55 : vector<12x8x128xbf16> to vector<96x128xbf16>
    %c1_27 = arith.constant 1 : index
    %c0_28 = arith.constant 0 : index
    %c0_29 = arith.constant 0 : index
    %57 = vector.load %arg5[%c1_27, %c0_28, %c0_29] : memref<5x128x192xbf16, #tpu.memory_space<vmem>>, vector<1x128x192xbf16>
    %58 = vector.shape_cast %57 : vector<1x128x192xbf16> to vector<128x192xbf16>
    %cst_30 = arith.constant dense<0.000000e+00> : vector<96x192xf32>
    %59 = tpu.matmul %56, %58, %cst_30 {dimension_numbers = #tpu.dot_dimension_numbers<[1], [0], [0], [1], [0, 0, 1, 1], [], []>} : vector<96x128xbf16>, vector<128x192xbf16>, vector<96x192xf32> -> vector<96x192xf32>
    %60 = arith.addf %54, %59 : vector<96x192xf32>
    %61 = vector.extract_strided_slice %49 {offsets = [2, 0, 0], sizes = [12, 8, 128], strides = [1, 1, 1]} : vector<16x8x128xbf16> to vector<12x8x128xbf16>
    %62 = vector.shape_cast %61 : vector<12x8x128xbf16> to vector<96x128xbf16>
    %c2_31 = arith.constant 2 : index
    %c0_32 = arith.constant 0 : index
    %c0_33 = arith.constant 0 : index
    %63 = vector.load %arg5[%c2_31, %c0_32, %c0_33] : memref<5x128x192xbf16, #tpu.memory_space<vmem>>, vector<1x128x192xbf16>
    %64 = vector.shape_cast %63 : vector<1x128x192xbf16> to vector<128x192xbf16>
    %cst_34 = arith.constant dense<0.000000e+00> : vector<96x192xf32>
    %65 = tpu.matmul %62, %64, %cst_34 {dimension_numbers = #tpu.dot_dimension_numbers<[1], [0], [0], [1], [0, 0, 1, 1], [], []>} : vector<96x128xbf16>, vector<128x192xbf16>, vector<96x192xf32> -> vector<96x192xf32>
    %66 = arith.addf %60, %65 : vector<96x192xf32>
    %67 = vector.extract_strided_slice %49 {offsets = [3, 0, 0], sizes = [12, 8, 128], strides = [1, 1, 1]} : vector<16x8x128xbf16> to vector<12x8x128xbf16>
    %68 = vector.shape_cast %67 : vector<12x8x128xbf16> to vector<96x128xbf16>
    %c3_35 = arith.constant 3 : index
    %c0_36 = arith.constant 0 : index
    %c0_37 = arith.constant 0 : index
    %69 = vector.load %arg5[%c3_35, %c0_36, %c0_37] : memref<5x128x192xbf16, #tpu.memory_space<vmem>>, vector<1x128x192xbf16>
    %70 = vector.shape_cast %69 : vector<1x128x192xbf16> to vector<128x192xbf16>
    %cst_38 = arith.constant dense<0.000000e+00> : vector<96x192xf32>
    %71 = tpu.matmul %68, %70, %cst_38 {dimension_numbers = #tpu.dot_dimension_numbers<[1], [0], [0], [1], [0, 0, 1, 1], [], []>} : vector<96x128xbf16>, vector<128x192xbf16>, vector<96x192xf32> -> vector<96x192xf32>
    %72 = arith.addf %66, %71 : vector<96x192xf32>
    %73 = vector.extract_strided_slice %49 {offsets = [4, 0, 0], sizes = [12, 8, 128], strides = [1, 1, 1]} : vector<16x8x128xbf16> to vector<12x8x128xbf16>
    %74 = vector.shape_cast %73 : vector<12x8x128xbf16> to vector<96x128xbf16>
    %c4_39 = arith.constant 4 : index
    %c0_40 = arith.constant 0 : index
    %c0_41 = arith.constant 0 : index
    %75 = vector.load %arg5[%c4_39, %c0_40, %c0_41] : memref<5x128x192xbf16, #tpu.memory_space<vmem>>, vector<1x128x192xbf16>
    %76 = vector.shape_cast %75 : vector<1x128x192xbf16> to vector<128x192xbf16>
    %cst_42 = arith.constant dense<0.000000e+00> : vector<96x192xf32>
    %77 = tpu.matmul %74, %76, %cst_42 {dimension_numbers = #tpu.dot_dimension_numbers<[1], [0], [0], [1], [0, 0, 1, 1], [], []>} : vector<96x128xbf16>, vector<128x192xbf16>, vector<96x192xf32> -> vector<96x192xf32>
    %78 = arith.addf %72, %77 : vector<96x192xf32>
    %c0_43 = arith.constant 0 : index
    %c0_44 = arith.constant 0 : index
    %79 = vector.load %arg6[%c0_43, %c0_44] : memref<1x192xf32, #tpu.memory_space<vmem>>, vector<1x192xf32>
    %80 = vector.broadcast %79 : vector<1x192xf32> to vector<96x192xf32>
    %81 = arith.addf %78, %80 : vector<96x192xf32>
    %cst_45 = arith.constant 0.000000e+00 : f32
    %82 = vector.broadcast %cst_45 : f32 to vector<96x192xf32>
    %83 = arith.maximumf %81, %82 : vector<96x192xf32>
    %84 = vector.shape_cast %83 : vector<96x192xf32> to vector<6x2x8x192xf32>
    %85 = vector.extract_strided_slice %84 {offsets = [0, 0, 0, 0], sizes = [6, 1, 8, 192], strides = [1, 1, 1, 1]} : vector<6x2x8x192xf32> to vector<6x1x8x192xf32>
    %86 = vector.shape_cast %85 : vector<6x1x8x192xf32> to vector<6x8x192xf32>
    %87 = vector.extract_strided_slice %84 {offsets = [0, 1, 0, 0], sizes = [6, 1, 8, 192], strides = [1, 1, 1, 1]} : vector<6x2x8x192xf32> to vector<6x1x8x192xf32>
    %88 = vector.shape_cast %87 : vector<6x1x8x192xf32> to vector<6x8x192xf32>
    %89 = arith.maximumf %86, %88 : vector<6x8x192xf32>
    %90 = vector.shape_cast %89 : vector<6x8x192xf32> to vector<48x192xf32>
    %91 = arith.truncf %90 : vector<48x192xf32> to vector<48x192xbf16>
    %c0_46 = arith.constant 0 : index
    %c0_47 = arith.constant 0 : index
    %92 = vector.load %arg7[%c0_46, %c0_47] : memref<192x256xbf16, #tpu.memory_space<vmem>>, vector<192x256xbf16>
    %cst_48 = arith.constant dense<0.000000e+00> : vector<48x256xf32>
    %93 = tpu.matmul %91, %92, %cst_48 {dimension_numbers = #tpu.dot_dimension_numbers<[1], [0], [0], [1], [0, 0, 1, 1], [], []>} : vector<48x192xbf16>, vector<192x256xbf16>, vector<48x256xf32> -> vector<48x256xf32>
    %94 = vector.extract_strided_slice %93 {offsets = [0, 0], sizes = [48, 128], strides = [1, 1]} : vector<48x256xf32> to vector<48x128xf32>
    %95 = vector.extract_strided_slice %93 {offsets = [0, 128], sizes = [48, 128], strides = [1, 1]} : vector<48x256xf32> to vector<48x128xf32>
    %96 = arith.maximumf %94, %95 : vector<48x128xf32>
    %97 = arith.truncf %96 : vector<48x128xf32> to vector<48x128xbf16>
    %98 = vector.shape_cast %97 : vector<48x128xbf16> to vector<6x8x128xbf16>
    %99 = vector.extract_strided_slice %98 {offsets = [0, 0, 0], sizes = [1, 8, 128], strides = [1, 1, 1]} : vector<6x8x128xbf16> to vector<1x8x128xbf16>
    %100 = vector.shape_cast %99 : vector<1x8x128xbf16> to vector<8x128xbf16>
    %c0_49 = arith.constant 0 : index
    %c0_50 = arith.constant 0 : index
    %c0_51 = arith.constant 0 : index
    %101 = vector.load %arg8[%c0_49, %c0_50, %c0_51] : memref<6x128x32xbf16, #tpu.memory_space<vmem>>, vector<1x128x32xbf16>
    %102 = vector.shape_cast %101 : vector<1x128x32xbf16> to vector<128x32xbf16>
    %cst_52 = arith.constant dense<0.000000e+00> : vector<8x32xf32>
    %103 = tpu.matmul %100, %102, %cst_52 {dimension_numbers = #tpu.dot_dimension_numbers<[1], [0], [0], [1], [0, 0, 1, 1], [], []>} : vector<8x128xbf16>, vector<128x32xbf16>, vector<8x32xf32> -> vector<8x32xf32>
    %104 = vector.extract_strided_slice %98 {offsets = [1, 0, 0], sizes = [1, 8, 128], strides = [1, 1, 1]} : vector<6x8x128xbf16> to vector<1x8x128xbf16>
    %105 = vector.shape_cast %104 : vector<1x8x128xbf16> to vector<8x128xbf16>
    %c1_53 = arith.constant 1 : index
    %c0_54 = arith.constant 0 : index
    %c0_55 = arith.constant 0 : index
    %106 = vector.load %arg8[%c1_53, %c0_54, %c0_55] : memref<6x128x32xbf16, #tpu.memory_space<vmem>>, vector<1x128x32xbf16>
    %107 = vector.shape_cast %106 : vector<1x128x32xbf16> to vector<128x32xbf16>
    %cst_56 = arith.constant dense<0.000000e+00> : vector<8x32xf32>
    %108 = tpu.matmul %105, %107, %cst_56 {dimension_numbers = #tpu.dot_dimension_numbers<[1], [0], [0], [1], [0, 0, 1, 1], [], []>} : vector<8x128xbf16>, vector<128x32xbf16>, vector<8x32xf32> -> vector<8x32xf32>
    %109 = arith.addf %103, %108 : vector<8x32xf32>
    %110 = vector.extract_strided_slice %98 {offsets = [2, 0, 0], sizes = [1, 8, 128], strides = [1, 1, 1]} : vector<6x8x128xbf16> to vector<1x8x128xbf16>
    %111 = vector.shape_cast %110 : vector<1x8x128xbf16> to vector<8x128xbf16>
    %c2_57 = arith.constant 2 : index
    %c0_58 = arith.constant 0 : index
    %c0_59 = arith.constant 0 : index
    %112 = vector.load %arg8[%c2_57, %c0_58, %c0_59] : memref<6x128x32xbf16, #tpu.memory_space<vmem>>, vector<1x128x32xbf16>
    %113 = vector.shape_cast %112 : vector<1x128x32xbf16> to vector<128x32xbf16>
    %cst_60 = arith.constant dense<0.000000e+00> : vector<8x32xf32>
    %114 = tpu.matmul %111, %113, %cst_60 {dimension_numbers = #tpu.dot_dimension_numbers<[1], [0], [0], [1], [0, 0, 1, 1], [], []>} : vector<8x128xbf16>, vector<128x32xbf16>, vector<8x32xf32> -> vector<8x32xf32>
    %115 = arith.addf %109, %114 : vector<8x32xf32>
    %116 = vector.extract_strided_slice %98 {offsets = [3, 0, 0], sizes = [1, 8, 128], strides = [1, 1, 1]} : vector<6x8x128xbf16> to vector<1x8x128xbf16>
    %117 = vector.shape_cast %116 : vector<1x8x128xbf16> to vector<8x128xbf16>
    %c3_61 = arith.constant 3 : index
    %c0_62 = arith.constant 0 : index
    %c0_63 = arith.constant 0 : index
    %118 = vector.load %arg8[%c3_61, %c0_62, %c0_63] : memref<6x128x32xbf16, #tpu.memory_space<vmem>>, vector<1x128x32xbf16>
    %119 = vector.shape_cast %118 : vector<1x128x32xbf16> to vector<128x32xbf16>
    %cst_64 = arith.constant dense<0.000000e+00> : vector<8x32xf32>
    %120 = tpu.matmul %117, %119, %cst_64 {dimension_numbers = #tpu.dot_dimension_numbers<[1], [0], [0], [1], [0, 0, 1, 1], [], []>} : vector<8x128xbf16>, vector<128x32xbf16>, vector<8x32xf32> -> vector<8x32xf32>
    %121 = arith.addf %115, %120 : vector<8x32xf32>
    %122 = vector.extract_strided_slice %98 {offsets = [4, 0, 0], sizes = [1, 8, 128], strides = [1, 1, 1]} : vector<6x8x128xbf16> to vector<1x8x128xbf16>
    %123 = vector.shape_cast %122 : vector<1x8x128xbf16> to vector<8x128xbf16>
    %c4_65 = arith.constant 4 : index
    %c0_66 = arith.constant 0 : index
    %c0_67 = arith.constant 0 : index
    %124 = vector.load %arg8[%c4_65, %c0_66, %c0_67] : memref<6x128x32xbf16, #tpu.memory_space<vmem>>, vector<1x128x32xbf16>
    %125 = vector.shape_cast %124 : vector<1x128x32xbf16> to vector<128x32xbf16>
    %cst_68 = arith.constant dense<0.000000e+00> : vector<8x32xf32>
    %126 = tpu.matmul %123, %125, %cst_68 {dimension_numbers = #tpu.dot_dimension_numbers<[1], [0], [0], [1], [0, 0, 1, 1], [], []>} : vector<8x128xbf16>, vector<128x32xbf16>, vector<8x32xf32> -> vector<8x32xf32>
    %127 = arith.addf %121, %126 : vector<8x32xf32>
    %128 = vector.extract_strided_slice %98 {offsets = [5, 0, 0], sizes = [1, 8, 128], strides = [1, 1, 1]} : vector<6x8x128xbf16> to vector<1x8x128xbf16>
    %129 = vector.shape_cast %128 : vector<1x8x128xbf16> to vector<8x128xbf16>
    %c5 = arith.constant 5 : index
    %c0_69 = arith.constant 0 : index
    %c0_70 = arith.constant 0 : index
    %130 = vector.load %arg8[%c5, %c0_69, %c0_70] : memref<6x128x32xbf16, #tpu.memory_space<vmem>>, vector<1x128x32xbf16>
    %131 = vector.shape_cast %130 : vector<1x128x32xbf16> to vector<128x32xbf16>
    %cst_71 = arith.constant dense<0.000000e+00> : vector<8x32xf32>
    %132 = tpu.matmul %129, %131, %cst_71 {dimension_numbers = #tpu.dot_dimension_numbers<[1], [0], [0], [1], [0, 0, 1, 1], [], []>} : vector<8x128xbf16>, vector<128x32xbf16>, vector<8x32xf32> -> vector<8x32xf32>
    %133 = arith.addf %127, %132 : vector<8x32xf32>
    %c0_72 = arith.constant 0 : index
    %c0_73 = arith.constant 0 : index
    %134 = vector.load %arg9[%c0_72, %c0_73] : memref<1x32xf32, #tpu.memory_space<vmem>>, vector<1x32xf32>
    %135 = vector.broadcast %134 : vector<1x32xf32> to vector<8x32xf32>
    %136 = arith.addf %133, %135 : vector<8x32xf32>
    %cst_74 = arith.constant 0.000000e+00 : f32
    %137 = vector.broadcast %cst_74 : f32 to vector<8x32xf32>
    %138 = arith.maximumf %136, %137 : vector<8x32xf32>
    %139 = arith.truncf %138 : vector<8x32xf32> to vector<8x32xbf16>
    %c0_75 = arith.constant 0 : index
    %c0_76 = arith.constant 0 : index
    %140 = vector.load %arg10[%c0_75, %c0_76] : memref<32x16xbf16, #tpu.memory_space<vmem>>, vector<32x16xbf16>
    %cst_77 = arith.constant dense<0.000000e+00> : vector<8x16xf32>
    %141 = tpu.matmul %139, %140, %cst_77 {dimension_numbers = #tpu.dot_dimension_numbers<[1], [0], [0], [1], [0, 0, 1, 1], [], []>} : vector<8x32xbf16>, vector<32x16xbf16>, vector<8x16xf32> -> vector<8x16xf32>
    %c0_78 = arith.constant 0 : index
    %c0_79 = arith.constant 0 : index
    %142 = vector.load %arg11[%c0_78, %c0_79] : memref<1x16xf32, #tpu.memory_space<vmem>>, vector<1x16xf32>
    %143 = vector.broadcast %142 : vector<1x16xf32> to vector<8x16xf32>
    %144 = arith.addf %141, %143 : vector<8x16xf32>
    %cst_80 = arith.constant 0.000000e+00 : f32
    %145 = vector.broadcast %cst_80 : f32 to vector<8x16xf32>
    %146 = arith.maximumf %144, %145 : vector<8x16xf32>
    %147 = arith.truncf %146 : vector<8x16xf32> to vector<8x16xbf16>
    %c0_81 = arith.constant 0 : index
    %c0_82 = arith.constant 0 : index
    %148 = vector.load %arg12[%c0_81, %c0_82] : memref<16x128xbf16, #tpu.memory_space<vmem>>, vector<16x128xbf16>
    %cst_83 = arith.constant dense<0.000000e+00> : vector<8x128xf32>
    %149 = tpu.matmul %147, %148, %cst_83 {dimension_numbers = #tpu.dot_dimension_numbers<[1], [0], [0], [1], [0, 0, 1, 1], [], []>} : vector<8x16xbf16>, vector<16x128xbf16>, vector<8x128xf32> -> vector<8x128xf32>
    %c0_84 = arith.constant 0 : index
    %c0_85 = arith.constant 0 : index
    %150 = vector.load %arg13[%c0_84, %c0_85] : memref<1x128xf32, #tpu.memory_space<vmem>>, vector<1x128xf32>
    %151 = vector.broadcast %150 : vector<1x128xf32> to vector<8x128xf32>
    %152 = arith.addf %149, %151 : vector<8x128xf32>
    %c0_86 = arith.constant 0 : index
    %c0_87 = arith.constant 0 : index
    %153 = vector.load %arg14[%c0_86, %c0_87] : memref<8x128xf32, #tpu.memory_space<vmem>>, vector<8x128xf32>
    tpu.vector_store %arg14[%c0_86, %c0_87], %152 {strides = array<i32>} : memref<8x128xf32, #tpu.memory_space<vmem>>, vector<8x128xf32>,
    return
  }
  func.func @transform_0(%arg0: i32) -> (i32, i32, i32) {
    %c0_i32 = arith.constant 0 : i32
    %c0_i32_0 = arith.constant 0 : i32
    %c0_i32_1 = arith.constant 0 : i32
    return %c0_i32, %arg0, %c0_i32_0 : i32, i32, i32
  }
  func.func @transform_1(%arg0: i32) -> (i32, i32, i32) {
    %c0_i32 = arith.constant 0 : i32
    %c0_i32_0 = arith.constant 0 : i32
    %c0_i32_1 = arith.constant 0 : i32
    %c0_i32_2 = arith.constant 0 : i32
    return %c0_i32, %c0_i32_0, %c0_i32_1 : i32, i32, i32
  }
  func.func @transform_2(%arg0: i32) -> (i32, i32) {
    %c0_i32 = arith.constant 0 : i32
    %c0_i32_0 = arith.constant 0 : i32
    %c0_i32_1 = arith.constant 0 : i32
    return %c0_i32, %c0_i32_0 : i32, i32
  }
  func.func @transform_3(%arg0: i32) -> (i32, i32) {
    %c0_i32 = arith.constant 0 : i32
    %c0_i32_0 = arith.constant 0 : i32
    %c0_i32_1 = arith.constant 0 : i32
    return %c0_i32, %c0_i32_0 : i32, i32
  }
  func.func @transform_4(%arg0: i32) -> (i32, i32, i32) {
    %c0_i32 = arith.constant 0 : i32
    %c0_i32_0 = arith.constant 0 : i32
    %c0_i32_1 = arith.constant 0 : i32
    %c0_i32_2 = arith.constant 0 : i32
    return %c0_i32, %c0_i32_0, %c0_i32_1 : i32, i32, i32
  }
  func.func @transform_5(%arg0: i32) -> (i32, i32) {
    %c0_i32 = arith.constant 0 : i32
    %c0_i32_0 = arith.constant 0 : i32
    %c0_i32_1 = arith.constant 0 : i32
    return %c0_i32, %c0_i32_0 : i32, i32
  }
  func.func @transform_6(%arg0: i32) -> (i32, i32) {
    %c0_i32 = arith.constant 0 : i32
    %c0_i32_0 = arith.constant 0 : i32
    %c0_i32_1 = arith.constant 0 : i32
    return %c0_i32, %c0_i32_0 : i32, i32
  }
  func.func @transform_7(%arg0: i32) -> (i32, i32, i32) {
    %c0_i32 = arith.constant 0 : i32
    %c0_i32_0 = arith.constant 0 : i32
    %c0_i32_1 = arith.constant 0 : i32
    %c0_i32_2 = arith.constant 0 : i32
    return %c0_i32, %c0_i32_0, %c0_i32_1 : i32, i32, i32
  }
  func.func @transform_8(%arg0: i32) -> (i32, i32) {
    %c0_i32 = arith.constant 0 : i32
    %c0_i32_0 = arith.constant 0 : i32
    %c0_i32_1 = arith.constant 0 : i32
    return %c0_i32, %c0_i32_0 : i32, i32
  }
  func.func @transform_9(%arg0: i32) -> (i32, i32) {
    %c0_i32 = arith.constant 0 : i32
    %c0_i32_0 = arith.constant 0 : i32
    %c0_i32_1 = arith.constant 0 : i32
    return %c0_i32, %c0_i32_0 : i32, i32
  }
  func.func @transform_10(%arg0: i32) -> (i32, i32) {
    %c0_i32 = arith.constant 0 : i32
    %c0_i32_0 = arith.constant 0 : i32
    %c0_i32_1 = arith.constant 0 : i32
    return %c0_i32, %c0_i32_0 : i32, i32
  }
  func.func @transform_11(%arg0: i32) -> (i32, i32) {
    %c0_i32 = arith.constant 0 : i32
    %c0_i32_0 = arith.constant 0 : i32
    %c0_i32_1 = arith.constant 0 : i32
    return %c0_i32, %c0_i32_0 : i32, i32
  }
  func.func @transform_12(%arg0: i32) -> (i32, i32) {
    %c0_i32 = arith.constant 0 : i32
    %c0_i32_0 = arith.constant 0 : i32
    %c0_i32_1 = arith.constant 0 : i32
    return %c0_i32, %c0_i32_0 : i32, i32
  }
  func.func @transform_13(%arg0: i32) -> (i32, i32) {
    %c0_i32 = arith.constant 0 : i32
    %c0_i32_0 = arith.constant 0 : i32
    return %arg0, %c0_i32 : i32, i32
  }
}

</mosaic_0001>

<llo_original>
// kernel: net_forward.1
$region0: #{net_forward.1}
  #allocation0 [shape = 'u32[]', space=smem, size = 0x4, offset = 0x4, fixed_abs, tag = 'smem constant byte address 0x4 - core index']
  #allocation1 [shape = 'u32[144,128]{1,0:T(1,128)}', space=vmem, size = 0x12000, scoped, tag = 'internal scratch']
  %s0 = inlined_call_operand.vmem [shape: bf16[36,8,36], index: 0, kind: input, shape index: {}]
  %s1 = inlined_call_operand.vmem [shape: bf16[5,36,192], index: 1, kind: input, shape index: {}]
  %s2 = inlined_call_operand.vmem [shape: f32[1,192], index: 2, kind: input, shape index: {}]
  %s3 = inlined_call_operand.vmem [shape: bf16[192,256], index: 3, kind: input, shape index: {}]
  %s4 = inlined_call_operand.vmem [shape: bf16[5,128,192], index: 4, kind: input, shape index: {}]
  %s5 = inlined_call_operand.vmem [shape: f32[1,192], index: 5, kind: input, shape index: {}]
  %s6 = inlined_call_operand.vmem [shape: bf16[192,256], index: 6, kind: input, shape index: {}]
  %s7 = inlined_call_operand.vmem [shape: bf16[6,128,32], index: 7, kind: input, shape index: {}]
  %s8 = inlined_call_operand.vmem [shape: f32[1,32], index: 8, kind: input, shape index: {}]
  %s9 = inlined_call_operand.vmem [shape: bf16[32,16], index: 9, kind: input, shape index: {}]
  %s10 = inlined_call_operand.vmem [shape: f32[1,16], index: 10, kind: input, shape index: {}]
  %s11 = inlined_call_operand.vmem [shape: bf16[16,128], index: 11, kind: input, shape index: {}]
  %s12 = inlined_call_operand.vmem [shape: f32[1,128], index: 12, kind: input, shape index: {}]
  %s13 = inlined_call_operand.vmem [shape: f32[8,128], index: 13, kind: output, shape index: {}]
  %s14 = sld [smem:[#allocation0]]
  $region62: #{net_forward.1} parent=0
    _
  %s16 = ssub.s32 1, %s14
  %s17 = scalar_select 0, %s16, %s14
  // Predicated region
  $region2: #{net_forward.1} parent=0 // pred_check
    _
  $region3: #{net_forward.1} parent=0 // pred_check_branch
    %19 = sbr.rel (0) target = $region5
  $region4: #{net_forward.1} parent=0 // pred_region
    _
  $region5: #{net_forward.1} parent=0 // pred_fallthru
    _
  // Predicated region
  $region6: #{net_forward.1} parent=0 // pred_check
    _
  $region7: #{net_forward.1} parent=0 // pred_check_branch
    %21 = sbr.rel (0) target = $region9
  $region8: #{net_forward.1} parent=0 // pred_region
    _
  $region9: #{net_forward.1} parent=0 // pred_fallthru
    _
  // Predicated region
  $region10: #{net_forward.1} parent=0 // pred_check
    _
  $region11: #{net_forward.1} parent=0 // pred_check_branch
    %23 = sbr.rel (0) target = $region13
  $region12: #{net_forward.1} parent=0 // pred_region
    _
  $region13: #{net_forward.1} parent=0 // pred_fallthru
    _
  // Predicated region
  $region14: #{net_forward.1} parent=0 // pred_check
    _
  $region15: #{net_forward.1} parent=0 // pred_check_branch
    %25 = sbr.rel (0) target = $region17
  $region16: #{net_forward.1} parent=0 // pred_region
    _
  $region17: #{net_forward.1} parent=0 // pred_fallthru
    _
  // Predicated region
  $region18: #{net_forward.1} parent=0 // pred_check
    _
  $region19: #{net_forward.1} parent=0 // pred_check_branch
    %27 = sbr.rel (0) target = $region21
  $region20: #{net_forward.1} parent=0 // pred_region
    _
  $region21: #{net_forward.1} parent=0 // pred_fallthru
    _
  // Predicated region
  $region22: #{net_forward.1} parent=0 // pred_check
    _
  $region23: #{net_forward.1} parent=0 // pred_check_branch
    %29 = sbr.rel (0) target = $region25
  $region24: #{net_forward.1} parent=0 // pred_region
    _
  $region25: #{net_forward.1} parent=0 // pred_fallthru
    _
  // Predicated region
  $region26: #{net_forward.1} parent=0 // pred_check
    _
  $region27: #{net_forward.1} parent=0 // pred_check_branch
    %31 = sbr.rel (0) target = $region29
  $region28: #{net_forward.1} parent=0 // pred_region
    _
  $region29: #{net_forward.1} parent=0 // pred_fallthru
    _
  // Predicated region
  $region30: #{net_forward.1} parent=0 // pred_check
    _
  $region31: #{net_forward.1} parent=0 // pred_check_branch
    %33 = sbr.rel (0) target = $region33
  $region32: #{net_forward.1} parent=0 // pred_region
    _
  $region33: #{net_forward.1} parent=0 // pred_fallthru
    _
  // Predicated region
  $region34: #{net_forward.1} parent=0 // pred_check
    _
  $region35: #{net_forward.1} parent=0 // pred_check_branch
    %35 = sbr.rel (0) target = $region37
  $region36: #{net_forward.1} parent=0 // pred_region
    _
  $region37: #{net_forward.1} parent=0 // pred_fallthru
    _
  // Predicated region
  $region38: #{net_forward.1} parent=0 // pred_check
    _
  $region39: #{net_forward.1} parent=0 // pred_check_branch
    %37 = sbr.rel (0) target = $region41
  $region40: #{net_forward.1} parent=0 // pred_region
    _
  $region41: #{net_forward.1} parent=0 // pred_fallthru
    _
  // Predicated region
  $region42: #{net_forward.1} parent=0 // pred_check
    _
  $region43: #{net_forward.1} parent=0 // pred_check_branch
    %39 = sbr.rel (0) target = $region45
  $region44: #{net_forward.1} parent=0 // pred_region
    _
  $region45: #{net_forward.1} parent=0 // pred_fallthru
    _
  // Predicated region
  $region46: #{net_forward.1} parent=0 // pred_check
    _
  $region47: #{net_forward.1} parent=0 // pred_check_branch
    %41 = sbr.rel (0) target = $region49
  $region48: #{net_forward.1} parent=0 // pred_region
    _
  $region49: #{net_forward.1} parent=0 // pred_fallthru
    _
  // Predicated region
  $region50: #{net_forward.1} parent=0 // pred_check
    _
  $region51: #{net_forward.1} parent=0 // pred_check_branch
    %43 = sbr.rel (0) target = $region53
  $region52: #{net_forward.1} parent=0 // pred_region
    _
  $region53: #{net_forward.1} parent=0 // pred_fallthru
    _
  %v45 = vld [vmem:[%s0] sm:$0xf]
  %v46 = vld [vmem:[%s0 + $0x4] sm:$0xf]
  %v47 = vld [vmem:[%s0 + $0x8] sm:$0xf]
  %v48 = vld [vmem:[%s0 + $0xc] sm:$0xf]
  %v49 = vld [vmem:[%s0 + $0x10] sm:$0xf]
  %v50 = vld [vmem:[%s0 + $0x14] sm:$0xf]
  %v51 = vld [vmem:[%s0 + $0x18] sm:$0xf]
  %v52 = vld [vmem:[%s0 + $0x1c] sm:$0xf]
  %v53 = vld [vmem:[%s0 + $0x20] sm:$0xf]
  %v54 = vld [vmem:[%s0 + $0x24] sm:$0xf]
  %v55 = vld [vmem:[%s0 + $0x28] sm:$0xf]
  %v56 = vld [vmem:[%s0 + $0x2c] sm:$0xf]
  %v57 = vld [vmem:[%s0 + $0x30] sm:$0xf]
  %v58 = vld [vmem:[%s0 + $0x34] sm:$0xf]
  %v59 = vld [vmem:[%s0 + $0x38] sm:$0xf]
  %v60 = vld [vmem:[%s0 + $0x3c] sm:$0xf]
  %v61 = vld [vmem:[%s0 + $0x40] sm:$0xf]
  %v62 = vld [vmem:[%s0 + $0x44] sm:$0xf]
  %v63 = vld [vmem:[%s0 + $0x48] sm:$0xf]
  %v64 = vld [vmem:[%s0 + $0x4c] sm:$0xf]
  %v65 = vld [vmem:[%s0 + $0x50] sm:$0xf]
  %v66 = vld [vmem:[%s0 + $0x54] sm:$0xf]
  %v67 = vld [vmem:[%s0 + $0x58] sm:$0xf]
  %v68 = vld [vmem:[%s0 + $0x5c] sm:$0xf]
  %v69 = vld [vmem:[%s0 + $0x60] sm:$0xf]
  %v70 = vld [vmem:[%s0 + $0x64] sm:$0xf]
  %v71 = vld [vmem:[%s0 + $0x68] sm:$0xf]
  %v72 = vld [vmem:[%s0 + $0x6c] sm:$0xf]
  %v73 = vld [vmem:[%s0 + $0x70] sm:$0xf]
  %v74 = vld [vmem:[%s0 + $0x74] sm:$0xf]
  %v75 = vld [vmem:[%s0 + $0x78] sm:$0xf]
  %v76 = vld [vmem:[%s0 + $0x7c] sm:$0xf]
  %v77 = vld [vmem:[%s0 + $0x80] sm:$0xf]
  %v78 = vld [vmem:[%s0 + $0x84] sm:$0xf]
  %v79 = vld [vmem:[%s0 + $0x88] sm:$0xf]
  %v80 = vld [vmem:[%s0 + $0x8c] sm:$0xf]
  %v81 = vld [vmem:[%s1] sm:$0xff]
  %v82 = vld [vmem:[%s1 + $0x8] sm:$0xff]
  %v83 = vld [vmem:[%s1 + $0x10] sm:$0xff]
  %v84 = vld [vmem:[%s1 + $0x18] sm:$0xff]
  %v85 = vld [vmem:[%s1 + $0x20] sm:$0x33]
  %s86 = scalar_lea.vmem %s1, 40
  %v87 = vld [vmem:[%s86] sm:$0xff]
  %v88 = vld [vmem:[%s86 + $0x8] sm:$0xff]
  %v89 = vld [vmem:[%s86 + $0x10] sm:$0xff]
  %v90 = vld [vmem:[%s86 + $0x18] sm:$0xff]
  %v91 = vld [vmem:[%s86 + $0x20] sm:$0x33]
  %v124 = vunpack.c.l.b16 %v46
  %v125 = vunpack.c.l.b16 %v47
  %v126 = vunpack.c.l.b16 %v48
  %v127 = vunpack.c.l.b16 %v49
  %v128 = vunpack.c.l.b16 %v50
  %v129 = vunpack.c.l.b16 %v51
  %v130 = vunpack.c.l.b16 %v52
  %v131 = vunpack.c.l.b16 %v53
  %v132 = vunpack.c.l.b16 %v54
  %v133 = vunpack.c.l.b16 %v55
  %v134 = vunpack.c.l.b16 %v56
  %v135 = vunpack.c.l.b16 %v57
  %v136 = vunpack.c.l.b16 %v58
  %v137 = vunpack.c.l.b16 %v59
  %v138 = vunpack.c.l.b16 %v60
  %v139 = vunpack.c.l.b16 %v61
  %v140 = vunpack.c.l.b16 %v62
  %v141 = vunpack.c.l.b16 %v63
  %v142 = vunpack.c.l.b16 %v64
  %v143 = vunpack.c.l.b16 %v65
  %v144 = vunpack.c.l.b16 %v66
  %v145 = vunpack.c.l.b16 %v67
  %v146 = vunpack.c.l.b16 %v68
  %v147 = vunpack.c.l.b16 %v69
  %v148 = vunpack.c.l.b16 %v70
  %v149 = vunpack.c.l.b16 %v71
  %v150 = vunpack.c.l.b16 %v72
  %v151 = vunpack.c.l.b16 %v73
  %v152 = vunpack.c.l.b16 %v74
  %v153 = vunpack.c.l.b16 %v75
  %v154 = vunpack.c.l.b16 %v76
  %v155 = vunpack.c.l.b16 %v77
  %v156 = vpack.c.b16 %v125, %v124
  %v157 = vpack.c.b16 %v127, %v126
  %v158 = vpack.c.b16 %v129, %v128
  %v159 = vpack.c.b16 %v131, %v130
  %v160 = vpack.c.b16 %v133, %v132
  %v161 = vpack.c.b16 %v135, %v134
  %v162 = vpack.c.b16 %v137, %v136
  %v163 = vpack.c.b16 %v139, %v138
  %v164 = vpack.c.b16 %v141, %v140
  %v165 = vpack.c.b16 %v143, %v142
  %v166 = vpack.c.b16 %v145, %v144
  %v167 = vpack.c.b16 %v147, %v146
  %v168 = vpack.c.b16 %v149, %v148
  %v169 = vpack.c.b16 %v151, %v150
  %v170 = vpack.c.b16 %v153, %v152
  %v171 = vpack.c.b16 %v155, %v154
  %v177 = vunpack.c.l.b16 %v87
  %v178 = vunpack.c.h.b16 %v87
  %v179 = vunpack.c.l.b16 %v88
  %v180 = vunpack.c.h.b16 %v88
  %v181 = vunpack.c.l.b16 %v89
  %v182 = vunpack.c.h.b16 %v89
  %v183 = vunpack.c.l.b16 %v90
  %v184 = vunpack.c.h.b16 %v90
  %v185 = vunpack.c.l.b16 %v91
  %v186 = vunpack.c.h.b16 %v91
  %v187 = vpack.c.b16 %v179, %v177
  %v188 = vpack.c.b16 %v180, %v178
  %v189 = vpack.c.b16 %v183, %v181
  %v190 = vpack.c.b16 %v184, %v182
  %v191 = vpack.c.b16 %v185, %v185
  %v192 = vpack.c.b16 %v186, %v186
  %vm197 = vcmask 293888
  %v199 = vsel %vm197, %v156, 0
  %v202 = vsel %vm197, %v157, 0
  %v205 = vsel %vm197, %v158, 0
  %v208 = vsel %vm197, %v159, 0
  %v211 = vsel %vm197, %v160, 0
  %v214 = vsel %vm197, %v161, 0
  %v217 = vsel %vm197, %v162, 0
  %v220 = vsel %vm197, %v163, 0
  %v223 = vsel %vm197, %v164, 0
  %v226 = vsel %vm197, %v165, 0
  %v229 = vsel %vm197, %v166, 0
  %v232 = vsel %vm197, %v167, 0
  %v235 = vsel %vm197, %v168, 0
  %v238 = vsel %vm197, %v169, 0
  %v241 = vsel %vm197, %v170, 0
  %v244 = vsel %vm197, %v171, 0
  %vm246 = vcmask 1041408
  %v248 = vsel %vm246, %v191, 0
  %v251 = vsel %vm246, %v192, 0
  %253 = vmatprep.subr.bf16.mxu0 %v188
  %254 = vmatpush1.bf16.msra.mxu0 %v187
  %255 = vmatprep.subr.bf16.mxu0 %v190
  %256 = vmatpush1.bf16.msra.mxu0 %v189
  %257 = vmatprep.subr.bf16.mxu0 %v251
  %258 = vmatpush1.bf16.msra.mxu0 %v248
  %259 = vmatprep.subr.bf16.mxu0 0
  %260 = vmatpush1.bf16.msra.mxu0 0
  %261 = vmatprep.subr.bf16.mxu0 0
  %262 = vmatpush1.bf16.msra.mxu0 0
  %263 = vmatprep.subr.bf16.mxu0 0
  %264 = vmatpush1.bf16.msra.mxu0 0
  %265 = vmatprep.subr.bf16.mxu0 0
  %266 = vmatpush1.bf16.msra.mxu0 0
  %267 = vmatprep.subr.bf16.mxu0 0
  %268 = vmatpush1.bf16.msra.mxu0 0
  %269 = vmatprep.subr.bf16.mxu0 0
  %270 = vmatpush1.bf16.msra.mxu0 0
  %271 = vmatprep.subr.bf16.mxu0 0
  %272 = vmatpush1.bf16.msra.mxu0 0
  %273 = vmatprep.subr.bf16.mxu0 0
  %274 = vmatpush1.bf16.msra.mxu0 0
  %275 = vmatprep.subr.bf16.mxu0 0
  %276 = vmatpush1.bf16.msra.mxu0 0
  %277 = vmatprep.subr.bf16.mxu0 0
  %278 = vmatpush1.bf16.msra.mxu0 0
  %279 = vmatprep.subr.bf16.mxu0 0
  %280 = vmatpush1.bf16.msra.mxu0 0
  %281 = vmatprep.subr.bf16.mxu0 0
  %282 = vmatpush1.bf16.msra.mxu0 0
  %283 = vmatprep.subr.bf16.mxu0 0
  %284 = vmatpush1.bf16.msra.mxu0 0
  %285 = vmatprep.mubr.bf16.mxu0 0
  %286 = vmatmul.mubr.bf16.gmra.mrb[0].mxu0 %v199
  %v287 = vpop.f32.mrb[0].mxu0
  %v288 = vadd.f32 0.0, %v287
  %v289 = vpop.f32.mrb[0].mxu0
  %v290 = vadd.f32 0.0, %v289
  %v291 = vpop.f32.mrb[0].mxu0
  %v292 = vadd.f32 0.0, %v291
  %v293 = vpop.f32.mrb[0].mxu0
  %v294 = vadd.f32 0.0, %v293
  %295 = vmatprep.mubr.bf16.mxu0 0
  %296 = vmatmul.mubr.bf16.gmra.mrb[0].mxu0 %v202
  %v297 = vpop.f32.mrb[0].mxu0
  %v298 = vadd.f32 0.0, %v297
  %v299 = vpop.f32.mrb[0].mxu0
  %v300 = vadd.f32 0.0, %v299
  %v301 = vpop.f32.mrb[0].mxu0
  %v302 = vadd.f32 0.0, %v301
  %v303 = vpop.f32.mrb[0].mxu0
  %v304 = vadd.f32 0.0, %v303
  %305 = vmatprep.mubr.bf16.mxu0 0
  %306 = vmatmul.mubr.bf16.gmra.mrb[0].mxu0 %v205
  %v307 = vpop.f32.mrb[0].mxu0
  %v308 = vadd.f32 0.0, %v307
  %v309 = vpop.f32.mrb[0].mxu0
  %v310 = vadd.f32 0.0, %v309
  %v311 = vpop.f32.mrb[0].mxu0
  %v312 = vadd.f32 0.0, %v311
  %v313 = vpop.f32.mrb[0].mxu0
  %v314 = vadd.f32 0.0, %v313
  %315 = vmatprep.mubr.bf16.mxu0 0
  %316 = vmatmul.mubr.bf16.gmra.mrb[0].mxu0 %v208
  %v317 = vpop.f32.mrb[0].mxu0
  %v318 = vadd.f32 0.0, %v317
  %v319 = vpop.f32.mrb[0].mxu0
  %v320 = vadd.f32 0.0, %v319
  %v321 = vpop.f32.mrb[0].mxu0
  %v322 = vadd.f32 0.0, %v321
  %v323 = vpop.f32.mrb[0].mxu0
  %v324 = vadd.f32 0.0, %v323
  %325 = vmatprep.mubr.bf16.mxu0 0
  %326 = vmatmul.mubr.bf16.gmra.mrb[0].mxu0 %v211
  %v327 = vpop.f32.mrb[0].mxu0
  %v328 = vadd.f32 0.0, %v327
  %v329 = vpop.f32.mrb[0].mxu0
  %v330 = vadd.f32 0.0, %v329
  %v331 = vpop.f32.mrb[0].mxu0
  %v332 = vadd.f32 0.0, %v331
  %v333 = vpop.f32.mrb[0].mxu0
  %v334 = vadd.f32 0.0, %v333
  %335 = vmatprep.mubr.bf16.mxu0 0
  %336 = vmatmul.mubr.bf16.gmra.mrb[0].mxu0 %v214
  %v337 = vpop.f32.mrb[0].mxu0
  %v338 = vadd.f32 0.0, %v337
  %v339 = vpop.f32.mrb[0].mxu0
  %v340 = vadd.f32 0.0, %v339
  %v341 = vpop.f32.mrb[0].mxu0
  %v342 = vadd.f32 0.0, %v341
  %v343 = vpop.f32.mrb[0].mxu0
  %v344 = vadd.f32 0.0, %v343
  %345 = vmatprep.mubr.bf16.mxu0 0
  %346 = vmatmul.mubr.bf16.gmra.mrb[0].mxu0 %v217
  %v347 = vpop.f32.mrb[0].mxu0
  %v348 = vadd.f32 0.0, %v347
  %v349 = vpop.f32.mrb[0].mxu0
  %v350 = vadd.f32 0.0, %v349
  %v351 = vpop.f32.mrb[0].mxu0
  %v352 = vadd.f32 0.0, %v351
  %v353 = vpop.f32.mrb[0].mxu0
  %v354 = vadd.f32 0.0, %v353
  %355 = vmatprep.mubr.bf16.mxu0 0
  %356 = vmatmul.mubr.bf16.gmra.mrb[0].mxu0 %v220
  %v357 = vpop.f32.mrb[0].mxu0
  %v358 = vadd.f32 0.0, %v357
  %v359 = vpop.f32.mrb[0].mxu0
  %v360 = vadd.f32 0.0, %v359
  %v361 = vpop.f32.mrb[0].mxu0
  %v362 = vadd.f32 0.0, %v361
  %v363 = vpop.f32.mrb[0].mxu0
  %v364 = vadd.f32 0.0, %v363
  %365 = vmatprep.mubr.bf16.mxu0 0
  %366 = vmatmul.mubr.bf16.gmra.mrb[0].mxu0 %v223
  %v367 = vpop.f32.mrb[0].mxu0
  %v368 = vadd.f32 0.0, %v367
  %v369 = vpop.f32.mrb[0].mxu0
  %v370 = vadd.f32 0.0, %v369
  %v371 = vpop.f32.mrb[0].mxu0
  %v372 = vadd.f32 0.0, %v371
  %v373 = vpop.f32.mrb[0].mxu0
  %v374 = vadd.f32 0.0, %v373
  %375 = vmatprep.mubr.bf16.mxu0 0
  %376 = vmatmul.mubr.bf16.gmra.mrb[0].mxu0 %v226
  %v377 = vpop.f32.mrb[0].mxu0
  %v378 = vadd.f32 0.0, %v377
  %v379 = vpop.f32.mrb[0].mxu0
  %v380 = vadd.f32 0.0, %v379
  %v381 = vpop.f32.mrb[0].mxu0
  %v382 = vadd.f32 0.0, %v381
  %v383 = vpop.f32.mrb[0].mxu0
  %v384 = vadd.f32 0.0, %v383
  %385 = vmatprep.mubr.bf16.mxu0 0
  %386 = vmatmul.mubr.bf16.gmra.mrb[0].mxu0 %v229
  %v387 = vpop.f32.mrb[0].mxu0
  %v388 = vadd.f32 0.0, %v387
  %v389 = vpop.f32.mrb[0].mxu0
  %v390 = vadd.f32 0.0, %v389
  %v391 = vpop.f32.mrb[0].mxu0
  %v392 = vadd.f32 0.0, %v391
  %v393 = vpop.f32.mrb[0].mxu0
  %v394 = vadd.f32 0.0, %v393
  %395 = vmatprep.mubr.bf16.mxu0 0
  %396 = vmatmul.mubr.bf16.gmra.mrb[0].mxu0 %v232
  %v397 = vpop.f32.mrb[0].mxu0
  %v398 = vadd.f32 0.0, %v397
  %v399 = vpop.f32.mrb[0].mxu0
  %v400 = vadd.f32 0.0, %v399
  %v401 = vpop.f32.mrb[0].mxu0
  %v402 = vadd.f32 0.0, %v401
  %v403 = vpop.f32.mrb[0].mxu0
  %v404 = vadd.f32 0.0, %v403
  %405 = vmatprep.mubr.bf16.mxu0 0
  %406 = vmatmul.mubr.bf16.gmra.mrb[0].mxu0 %v235
  %v407 = vpop.f32.mrb[0].mxu0
  %v408 = vadd.f32 0.0, %v407
  %v409 = vpop.f32.mrb[0].mxu0
  %v410 = vadd.f32 0.0, %v409
  %v411 = vpop.f32.mrb[0].mxu0
  %v412 = vadd.f32 0.0, %v411
  %v413 = vpop.f32.mrb[0].mxu0
  %v414 = vadd.f32 0.0, %v413
  %415 = vmatprep.mubr.bf16.mxu0 0
  %416 = vmatmul.mubr.bf16.gmra.mrb[0].mxu0 %v238
  %v417 = vpop.f32.mrb[0].mxu0
  %v418 = vadd.f32 0.0, %v417
  %v419 = vpop.f32.mrb[0].mxu0
  %v420 = vadd.f32 0.0, %v419
  %v421 = vpop.f32.mrb[0].mxu0
  %v422 = vadd.f32 0.0, %v421
  %v423 = vpop.f32.mrb[0].mxu0
  %v424 = vadd.f32 0.0, %v423
  %425 = vmatprep.mubr.bf16.mxu0 0
  %426 = vmatmul.mubr.bf16.gmra.mrb[0].mxu0 %v241
  %v427 = vpop.f32.mrb[0].mxu0
  %v428 = vadd.f32 0.0, %v427
  %v429 = vpop.f32.mrb[0].mxu0
  %v430 = vadd.f32 0.0, %v429
  %v431 = vpop.f32.mrb[0].mxu0
  %v432 = vadd.f32 0.0, %v431
  %v433 = vpop.f32.mrb[0].mxu0
  %v434 = vadd.f32 0.0, %v433
  %435 = vmatprep.mubr.bf16.mxu0 0
  %436 = vmatmul.mubr.bf16.gmra.mrb[0].mxu0 %v244
  %v437 = vpop.f32.mrb[0].mxu0
  %v438 = vadd.f32 0.0, %v437
  %v439 = vpop.f32.mrb[0].mxu0
  %v440 = vadd.f32 0.0, %v439
  %v441 = vpop.f32.mrb[0].mxu0
  %v442 = vadd.f32 0.0, %v441
  %v443 = vpop.f32.mrb[0].mxu0
  %v444 = vadd.f32 0.0, %v443
  %445 = vdwg.mxu0
  %v447 = vunpack.c.l.b16 %v45
  %v448 = vpack.c.b16 %v124, %v447
  %v449 = vpack.c.b16 %v126, %v125
  %v450 = vpack.c.b16 %v128, %v127
  %v451 = vpack.c.b16 %v130, %v129
  %v452 = vpack.c.b16 %v132, %v131
  %v453 = vpack.c.b16 %v134, %v133
  %v454 = vpack.c.b16 %v136, %v135
  %v455 = vpack.c.b16 %v138, %v137
  %v456 = vpack.c.b16 %v140, %v139
  %v457 = vpack.c.b16 %v142, %v141
  %v458 = vpack.c.b16 %v144, %v143
  %v459 = vpack.c.b16 %v146, %v145
  %v460 = vpack.c.b16 %v148, %v147
  %v461 = vpack.c.b16 %v150, %v149
  %v462 = vpack.c.b16 %v152, %v151
  %v463 = vpack.c.b16 %v154, %v153
  %v469 = vunpack.c.l.b16 %v81
  %v470 = vunpack.c.h.b16 %v81
  %v471 = vunpack.c.l.b16 %v82
  %v472 = vunpack.c.h.b16 %v82
  %v473 = vunpack.c.l.b16 %v83
  %v474 = vunpack.c.h.b16 %v83
  %v475 = vunpack.c.l.b16 %v84
  %v476 = vunpack.c.h.b16 %v84
  %v477 = vunpack.c.l.b16 %v85
  %v478 = vunpack.c.h.b16 %v85
  %v479 = vpack.c.b16 %v471, %v469
  %v480 = vpack.c.b16 %v472, %v470
  %v481 = vpack.c.b16 %v475, %v473
  %v482 = vpack.c.b16 %v476, %v474
  %v483 = vpack.c.b16 %v477, %v477
  %v484 = vpack.c.b16 %v478, %v478
  %v490 = vsel %vm197, %v448, 0
  %v493 = vsel %vm197, %v449, 0
  %v496 = vsel %vm197, %v450, 0
  %v499 = vsel %vm197, %v451, 0
  %v502 = vsel %vm197, %v452, 0
  %v505 = vsel %vm197, %v453, 0
  %v508 = vsel %vm197, %v454, 0
  %v511 = vsel %vm197, %v455, 0
  %v514 = vsel %vm197, %v456, 0
  %v517 = vsel %vm197, %v457, 0
  %v520 = vsel %vm197, %v458, 0
  %v523 = vsel %vm197, %v459, 0
  %v526 = vsel %vm197, %v460, 0
  %v529 = vsel %vm197, %v461, 0
  %v532 = vsel %vm197, %v462, 0
  %v535 = vsel %vm197, %v463, 0
  %v538 = vsel %vm246, %v483, 0
  %v541 = vsel %vm246, %v484, 0
  %543 = vmatprep.subr.bf16.mxu0 %v480
  %544 = vmatpush1.bf16.msra.mxu0 %v479
  %545 = vmatprep.subr.bf16.mxu0 %v482
  %546 = vmatpush1.bf16.msra.mxu0 %v481
  %547 = vmatprep.subr.bf16.mxu0 %v541
  %548 = vmatpush1.bf16.msra.mxu0 %v538
  %549 = vmatprep.subr.bf16.mxu0 0
  %550 = vmatpush1.bf16.msra.mxu0 0
  %551 = vmatprep.subr.bf16.mxu0 0
  %552 = vmatpush1.bf16.msra.mxu0 0
  %553 = vmatprep.subr.bf16.mxu0 0
  %554 = vmatpush1.bf16.msra.mxu0 0
  %555 = vmatprep.subr.bf16.mxu0 0
  %556 = vmatpush1.bf16.msra.mxu0 0
  %557 = vmatprep.subr.bf16.mxu0 0
  %558 = vmatpush1.bf16.msra.mxu0 0
  %559 = vmatprep.subr.bf16.mxu0 0
  %560 = vmatpush1.bf16.msra.mxu0 0
  %561 = vmatprep.subr.bf16.mxu0 0
  %562 = vmatpush1.bf16.msra.mxu0 0
  %563 = vmatprep.subr.bf16.mxu0 0
  %564 = vmatpush1.bf16.msra.mxu0 0
  %565 = vmatprep.subr.bf16.mxu0 0
  %566 = vmatpush1.bf16.msra.mxu0 0
  %567 = vmatprep.subr.bf16.mxu0 0
  %568 = vmatpush1.bf16.msra.mxu0 0
  %569 = vmatprep.subr.bf16.mxu0 0
  %570 = vmatpush1.bf16.msra.mxu0 0
  %571 = vmatprep.subr.bf16.mxu0 0
  %572 = vmatpush1.bf16.msra.mxu0 0
  %573 = vmatprep.subr.bf16.mxu0 0
  %574 = vmatpush1.bf16.msra.mxu0 0
  %575 = vmatprep.mubr.bf16.mxu0 0
  %576 = vmatmul.mubr.bf16.gmra.mrb[0].mxu0 %v490
  %v577 = vpop.f32.mrb[0].mxu0
  %v578 = vadd.f32 %v288, %v577
  %v579 = vpop.f32.mrb[0].mxu0
  %v580 = vadd.f32 %v290, %v579
  %v581 = vpop.f32.mrb[0].mxu0
  %v582 = vadd.f32 %v292, %v581
  %v583 = vpop.f32.mrb[0].mxu0
  %v584 = vadd.f32 %v294, %v583
  %585 = vmatprep.mubr.bf16.mxu0 0
  %586 = vmatmul.mubr.bf16.gmra.mrb[0].mxu0 %v493
  %v587 = vpop.f32.mrb[0].mxu0
  %v588 = vadd.f32 %v298, %v587
  %v589 = vpop.f32.mrb[0].mxu0
  %v590 = vadd.f32 %v300, %v589
  %v591 = vpop.f32.mrb[0].mxu0
  %v592 = vadd.f32 %v302, %v591
  %v593 = vpop.f32.mrb[0].mxu0
  %v594 = vadd.f32 %v304, %v593
  %595 = vmatprep.mubr.bf16.mxu0 0
  %596 = vmatmul.mubr.bf16.gmra.mrb[0].mxu0 %v496
  %v597 = vpop.f32.mrb[0].mxu0
  %v598 = vadd.f32 %v308, %v597
  %v599 = vpop.f32.mrb[0].mxu0
  %v600 = vadd.f32 %v310, %v599
  %v601 = vpop.f32.mrb[0].mxu0
  %v602 = vadd.f32 %v312, %v601
  %v603 = vpop.f32.mrb[0].mxu0
  %v604 = vadd.f32 %v314, %v603
  %605 = vmatprep.mubr.bf16.mxu0 0
  %606 = vmatmul.mubr.bf16.gmra.mrb[0].mxu0 %v499
  %v607 = vpop.f32.mrb[0].mxu0
  %v608 = vadd.f32 %v318, %v607
  %v609 = vpop.f32.mrb[0].mxu0
  %v610 = vadd.f32 %v320, %v609
  %v611 = vpop.f32.mrb[0].mxu0
  %v612 = vadd.f32 %v322, %v611
  %v613 = vpop.f32.mrb[0].mxu0
  %v614 = vadd.f32 %v324, %v613
  %615 = vmatprep.mubr.bf16.mxu0 0
  %616 = vmatmul.mubr.bf16.gmra.mrb[0].mxu0 %v502
  %v617 = vpop.f32.mrb[0].mxu0
  %v618 = vadd.f32 %v328, %v617
  %v619 = vpop.f32.mrb[0].mxu0
  %v620 = vadd.f32 %v330, %v619
  %v621 = vpop.f32.mrb[0].mxu0
  %v622 = vadd.f32 %v332, %v621
  %v623 = vpop.f32.mrb[0].mxu0
  %v624 = vadd.f32 %v334, %v623
  %625 = vmatprep.mubr.bf16.mxu0 0
  %626 = vmatmul.mubr.bf16.gmra.mrb[0].mxu0 %v505
  %v627 = vpop.f32.mrb[0].mxu0
  %v628 = vadd.f32 %v338, %v627
  %v629 = vpop.f32.mrb[0].mxu0
  %v630 = vadd.f32 %v340, %v629
  %v631 = vpop.f32.mrb[0].mxu0
  %v632 = vadd.f32 %v342, %v631
  %v633 = vpop.f32.mrb[0].mxu0
  %v634 = vadd.f32 %v344, %v633
  %635 = vmatprep.mubr.bf16.mxu0 0
  %636 = vmatmul.mubr.bf16.gmra.mrb[0].mxu0 %v508
  %v637 = vpop.f32.mrb[0].mxu0
  %v638 = vadd.f32 %v348, %v637
  %v639 = vpop.f32.mrb[0].mxu0
  %v640 = vadd.f32 %v350, %v639
  %v641 = vpop.f32.mrb[0].mxu0
  %v642 = vadd.f32 %v352, %v641
  %v643 = vpop.f32.mrb[0].mxu0
  %v644 = vadd.f32 %v354, %v643
  %645 = vmatprep.mubr.bf16.mxu0 0
  %646 = vmatmul.mubr.bf16.gmra.mrb[0].mxu0 %v511
  %v647 = vpop.f32.mrb[0].mxu0
  %v648 = vadd.f32 %v358, %v647
  %v649 = vpop.f32.mrb[0].mxu0
  %v650 = vadd.f32 %v360, %v649
  %v651 = vpop.f32.mrb[0].mxu0
  %v652 = vadd.f32 %v362, %v651
  %v653 = vpop.f32.mrb[0].mxu0
  %v654 = vadd.f32 %v364, %v653
  %655 = vmatprep.mubr.bf16.mxu0 0
  %656 = vmatmul.mubr.bf16.gmra.mrb[0].mxu0 %v514
  %v657 = vpop.f32.mrb[0].mxu0
  %v658 = vadd.f32 %v368, %v657
  %v659 = vpop.f32.mrb[0].mxu0
  %v660 = vadd.f32 %v370, %v659
  %v661 = vpop.f32.mrb[0].mxu0
  %v662 = vadd.f32 %v372, %v661
  %v663 = vpop.f32.mrb[0].mxu0
  %v664 = vadd.f32 %v374, %v663
  %665 = vmatprep.mubr.bf16.mxu0 0
  %666 = vmatmul.mubr.bf16.gmra.mrb[0].mxu0 %v517
  %v667 = vpop.f32.mrb[0].mxu0
  %v668 = vadd.f32 %v378, %v667
  %v669 = vpop.f32.mrb[0].mxu0
  %v670 = vadd.f32 %v380, %v669
  %v671 = vpop.f32.mrb[0].mxu0
  %v672 = vadd.f32 %v382, %v671
  %v673 = vpop.f32.mrb[0].mxu0
  %v674 = vadd.f32 %v384, %v673
  %675 = vmatprep.mubr.bf16.mxu0 0
  %676 = vmatmul.mubr.bf16.gmra.mrb[0].mxu0 %v520
  %v677 = vpop.f32.mrb[0].mxu0
  %v678 = vadd.f32 %v388, %v677
  %v679 = vpop.f32.mrb[0].mxu0
  %v680 = vadd.f32 %v390, %v679
  %v681 = vpop.f32.mrb[0].mxu0
  %v682 = vadd.f32 %v392, %v681
  %v683 = vpop.f32.mrb[0].mxu0
  %v684 = vadd.f32 %v394, %v683
  %685 = vmatprep.mubr.bf16.mxu0 0
  %686 = vmatmul.mubr.bf16.gmra.mrb[0].mxu0 %v523
  %v687 = vpop.f32.mrb[0].mxu0
  %v688 = vadd.f32 %v398, %v687
  %v689 = vpop.f32.mrb[0].mxu0
  %v690 = vadd.f32 %v400, %v689
  %v691 = vpop.f32.mrb[0].mxu0
  %v692 = vadd.f32 %v402, %v691
  %v693 = vpop.f32.mrb[0].mxu0
  %v694 = vadd.f32 %v404, %v693
  %695 = vmatprep.mubr.bf16.mxu0 0
  %696 = vmatmul.mubr.bf16.gmra.mrb[0].mxu0 %v526
  %v697 = vpop.f32.mrb[0].mxu0
  %v698 = vadd.f32 %v408, %v697
  %v699 = vpop.f32.mrb[0].mxu0
  %v700 = vadd.f32 %v410, %v699
  %v701 = vpop.f32.mrb[0].mxu0
  %v702 = vadd.f32 %v412, %v701
  %v703 = vpop.f32.mrb[0].mxu0
  %v704 = vadd.f32 %v414, %v703
  %705 = vmatprep.mubr.bf16.mxu0 0
  %706 = vmatmul.mubr.bf16.gmra.mrb[0].mxu0 %v529
  %v707 = vpop.f32.mrb[0].mxu0
  %v708 = vadd.f32 %v418, %v707
  %v709 = vpop.f32.mrb[0].mxu0
  %v710 = vadd.f32 %v420, %v709
  %v711 = vpop.f32.mrb[0].mxu0
  %v712 = vadd.f32 %v422, %v711
  %v713 = vpop.f32.mrb[0].mxu0
  %v714 = vadd.f32 %v424, %v713
  %715 = vmatprep.mubr.bf16.mxu0 0
  %716 = vmatmul.mubr.bf16.gmra.mrb[0].mxu0 %v532
  %v717 = vpop.f32.mrb[0].mxu0
  %v718 = vadd.f32 %v428, %v717
  %v719 = vpop.f32.mrb[0].mxu0
  %v720 = vadd.f32 %v430, %v719
  %v721 = vpop.f32.mrb[0].mxu0
  %v722 = vadd.f32 %v432, %v721
  %v723 = vpop.f32.mrb[0].mxu0
  %v724 = vadd.f32 %v434, %v723
  %725 = vmatprep.mubr.bf16.mxu0 0
  %726 = vmatmul.mubr.bf16.gmra.mrb[0].mxu0 %v535
  %v727 = vpop.f32.mrb[0].mxu0
  %v728 = vadd.f32 %v438, %v727
  %v729 = vpop.f32.mrb[0].mxu0
  %v730 = vadd.f32 %v440, %v729
  %v731 = vpop.f32.mrb[0].mxu0
  %v732 = vadd.f32 %v442, %v731
  %v733 = vpop.f32.mrb[0].mxu0
  %v734 = vadd.f32 %v444, %v733
  %735 = vdwg.mxu0
  %s736 = scalar_lea.vmem %s1, 80
  %v737 = vld [vmem:[%s736] sm:$0xff]
  %v738 = vld [vmem:[%s736 + $0x8] sm:$0xff]
  %v739 = vld [vmem:[%s736 + $0x10] sm:$0xff]
  %v740 = vld [vmem:[%s736 + $0x18] sm:$0xff]
  %v741 = vld [vmem:[%s736 + $0x20] sm:$0x33]
  %v743 = vunpack.c.l.b16 %v78
  %v744 = vpack.c.b16 %v743, %v155
  %v750 = vunpack.c.l.b16 %v737
  %v751 = vunpack.c.h.b16 %v737
  %v752 = vunpack.c.l.b16 %v738
  %v753 = vunpack.c.h.b16 %v738
  %v754 = vunpack.c.l.b16 %v739
  %v755 = vunpack.c.h.b16 %v739
  %v756 = vunpack.c.l.b16 %v740
  %v757 = vunpack.c.h.b16 %v740
  %v758 = vunpack.c.l.b16 %v741
  %v759 = vunpack.c.h.b16 %v741
  %v760 = vpack.c.b16 %v752, %v750
  %v761 = vpack.c.b16 %v753, %v751
  %v762 = vpack.c.b16 %v756, %v754
  %v763 = vpack.c.b16 %v757, %v755
  %v764 = vpack.c.b16 %v758, %v758
  %v765 = vpack.c.b16 %v759, %v759
  %v771 = vsel %vm197, %v744, 0
  %v774 = vsel %vm246, %v764, 0
  %v777 = vsel %vm246, %v765, 0
  %779 = vmatprep.subr.bf16.mxu0 %v761
  %780 = vmatpush1.bf16.msra.mxu0 %v760
  %781 = vmatprep.subr.bf16.mxu0 %v763
  %782 = vmatpush1.bf16.msra.mxu0 %v762
  %783 = vmatprep.subr.bf16.mxu0 %v777
  %784 = vmatpush1.bf16.msra.mxu0 %v774
  %785 = vmatprep.subr.bf16.mxu0 0
  %786 = vmatpush1.bf16.msra.mxu0 0
  %787 = vmatprep.subr.bf16.mxu0 0
  %788 = vmatpush1.bf16.msra.mxu0 0
  %789 = vmatprep.subr.bf16.mxu0 0
  %790 = vmatpush1.bf16.msra.mxu0 0
  %791 = vmatprep.subr.bf16.mxu0 0
  %792 = vmatpush1.bf16.msra.mxu0 0
  %793 = vmatprep.subr.bf16.mxu0 0
  %794 = vmatpush1.bf16.msra.mxu0 0
  %795 = vmatprep.subr.bf16.mxu0 0
  %796 = vmatpush1.bf16.msra.mxu0 0
  %797 = vmatprep.subr.bf16.mxu0 0
  %798 = vmatpush1.bf16.msra.mxu0 0
  %799 = vmatprep.subr.bf16.mxu0 0
  %800 = vmatpush1.bf16.msra.mxu0 0
  %801 = vmatprep.subr.bf16.mxu0 0
  %802 = vmatpush1.bf16.msra.mxu0 0
  %803 = vmatprep.subr.bf16.mxu0 0
  %804 = vmatpush1.bf16.msra.mxu0 0
  %805 = vmatprep.subr.bf16.mxu0 0
  %806 = vmatpush1.bf16.msra.mxu0 0
  %807 = vmatprep.subr.bf16.mxu0 0
  %808 = vmatpush1.bf16.msra.mxu0 0
  %809 = vmatprep.subr.bf16.mxu0 0
  %810 = vmatpush1.bf16.msra.mxu0 0
  %811 = vmatprep.mubr.bf16.mxu0 0
  %812 = vmatmul.mubr.bf16.gmra.mrb[0].mxu0 %v493
  %v813 = vpop.f32.mrb[0].mxu0
  %v814 = vadd.f32 0.0, %v813
  %v815 = vpop.f32.mrb[0].mxu0
  %v816 = vadd.f32 0.0, %v815
  %v817 = vpop.f32.mrb[0].mxu0
  %v818 = vadd.f32 0.0, %v817
  %v819 = vpop.f32.mrb[0].mxu0
  %v820 = vadd.f32 0.0, %v819
  %821 = vmatprep.mubr.bf16.mxu0 0
  %822 = vmatmul.mubr.bf16.gmra.mrb[0].mxu0 %v496
  %v823 = vpop.f32.mrb[0].mxu0
  %v824 = vadd.f32 0.0, %v823
  %v825 = vpop.f32.mrb[0].mxu0
  %v826 = vadd.f32 0.0, %v825
  %v827 = vpop.f32.mrb[0].mxu0
  %v828 = vadd.f32 0.0, %v827
  %v829 = vpop.f32.mrb[0].mxu0
  %v830 = vadd.f32 0.0, %v829
  %831 = vmatprep.mubr.bf16.mxu0 0
  %832 = vmatmul.mubr.bf16.gmra.mrb[0].mxu0 %v499
  %v833 = vpop.f32.mrb[0].mxu0
  %v834 = vadd.f32 0.0, %v833
  %v835 = vpop.f32.mrb[0].mxu0
  %v836 = vadd.f32 0.0, %v835
  %v837 = vpop.f32.mrb[0].mxu0
  %v838 = vadd.f32 0.0, %v837
  %v839 = vpop.f32.mrb[0].mxu0
  %v840 = vadd.f32 0.0, %v839
  %841 = vmatprep.mubr.bf16.mxu0 0
  %842 = vmatmul.mubr.bf16.gmra.mrb[0].mxu0 %v502
  %v843 = vpop.f32.mrb[0].mxu0
  %v844 = vadd.f32 0.0, %v843
  %v845 = vpop.f32.mrb[0].mxu0
  %v846 = vadd.f32 0.0, %v845
  %v847 = vpop.f32.mrb[0].mxu0
  %v848 = vadd.f32 0.0, %v847
  %v849 = vpop.f32.mrb[0].mxu0
  %v850 = vadd.f32 0.0, %v849
  %851 = vmatprep.mubr.bf16.mxu0 0
  %852 = vmatmul.mubr.bf16.gmra.mrb[0].mxu0 %v505
  %v853 = vpop.f32.mrb[0].mxu0
  %v854 = vadd.f32 0.0, %v853
  %v855 = vpop.f32.mrb[0].mxu0
  %v856 = vadd.f32 0.0, %v855
  %v857 = vpop.f32.mrb[0].mxu0
  %v858 = vadd.f32 0.0, %v857
  %v859 = vpop.f32.mrb[0].mxu0
  %v860 = vadd.f32 0.0, %v859
  %861 = vmatprep.mubr.bf16.mxu0 0
  %862 = vmatmul.mubr.bf16.gmra.mrb[0].mxu0 %v508
  %v863 = vpop.f32.mrb[0].mxu0
  %v864 = vadd.f32 0.0, %v863
  %v865 = vpop.f32.mrb[0].mxu0
  %v866 = vadd.f32 0.0, %v865
  %v867 = vpop.f32.mrb[0].mxu0
  %v868 = vadd.f32 0.0, %v867
  %v869 = vpop.f32.mrb[0].mxu0
  %v870 = vadd.f32 0.0, %v869
  %871 = vmatprep.mubr.bf16.mxu0 0
  %872 = vmatmul.mubr.bf16.gmra.mrb[0].mxu0 %v511
  %v873 = vpop.f32.mrb[0].mxu0
  %v874 = vadd.f32 0.0, %v873
  %v875 = vpop.f32.mrb[0].mxu0
  %v876 = vadd.f32 0.0, %v875
  %v877 = vpop.f32.mrb[0].mxu0
  %v878 = vadd.f32 0.0, %v877
  %v879 = vpop.f32.mrb[0].mxu0
  %v880 = vadd.f32 0.0, %v879
  %881 = vmatprep.mubr.bf16.mxu0 0
  %882 = vmatmul.mubr.bf16.gmra.mrb[0].mxu0 %v514
  %v883 = vpop.f32.mrb[0].mxu0
  %v884 = vadd.f32 0.0, %v883
  %v885 = vpop.f32.mrb[0].mxu0
  %v886 = vadd.f32 0.0, %v885
  %v887 = vpop.f32.mrb[0].mxu0
  %v888 = vadd.f32 0.0, %v887
  %v889 = vpop.f32.mrb[0].mxu0
  %v890 = vadd.f32 0.0, %v889
  %891 = vmatprep.mubr.bf16.mxu0 0
  %892 = vmatmul.mubr.bf16.gmra.mrb[0].mxu0 %v517
  %v893 = vpop.f32.mrb[0].mxu0
  %v894 = vadd.f32 0.0, %v893
  %v895 = vpop.f32.mrb[0].mxu0
  %v896 = vadd.f32 0.0, %v895
  %v897 = vpop.f32.mrb[0].mxu0
  %v898 = vadd.f32 0.0, %v897
  %v899 = vpop.f32.mrb[0].mxu0
  %v900 = vadd.f32 0.0, %v899
  %901 = vmatprep.mubr.bf16.mxu0 0
  %902 = vmatmul.mubr.bf16.gmra.mrb[0].mxu0 %v520
  %v903 = vpop.f32.mrb[0].mxu0
  %v904 = vadd.f32 0.0, %v903
  %v905 = vpop.f32.mrb[0].mxu0
  %v906 = vadd.f32 0.0, %v905
  %v907 = vpop.f32.mrb[0].mxu0
  %v908 = vadd.f32 0.0, %v907
  %v909 = vpop.f32.mrb[0].mxu0
  %v910 = vadd.f32 0.0, %v909
  %911 = vmatprep.mubr.bf16.mxu0 0
  %912 = vmatmul.mubr.bf16.gmra.mrb[0].mxu0 %v523
  %v913 = vpop.f32.mrb[0].mxu0
  %v914 = vadd.f32 0.0, %v913
  %v915 = vpop.f32.mrb[0].mxu0
  %v916 = vadd.f32 0.0, %v915
  %v917 = vpop.f32.mrb[0].mxu0
  %v918 = vadd.f32 0.0, %v917
  %v919 = vpop.f32.mrb[0].mxu0
  %v920 = vadd.f32 0.0, %v919
  %921 = vmatprep.mubr.bf16.mxu0 0
  %922 = vmatmul.mubr.bf16.gmra.mrb[0].mxu0 %v526
  %v923 = vpop.f32.mrb[0].mxu0
  %v924 = vadd.f32 0.0, %v923
  %v925 = vpop.f32.mrb[0].mxu0
  %v926 = vadd.f32 0.0, %v925
  %v927 = vpop.f32.mrb[0].mxu0
  %v928 = vadd.f32 0.0, %v927
  %v929 = vpop.f32.mrb[0].mxu0
  %v930 = vadd.f32 0.0, %v929
  %931 = vmatprep.mubr.bf16.mxu0 0
  %932 = vmatmul.mubr.bf16.gmra.mrb[0].mxu0 %v529
  %v933 = vpop.f32.mrb[0].mxu0
  %v934 = vadd.f32 0.0, %v933
  %v935 = vpop.f32.mrb[0].mxu0
  %v936 = vadd.f32 0.0, %v935
  %v937 = vpop.f32.mrb[0].mxu0
  %v938 = vadd.f32 0.0, %v937
  %v939 = vpop.f32.mrb[0].mxu0
  %v940 = vadd.f32 0.0, %v939
  %941 = vmatprep.mubr.bf16.mxu0 0
  %942 = vmatmul.mubr.bf16.gmra.mrb[0].mxu0 %v532
  %v943 = vpop.f32.mrb[0].mxu0
  %v944 = vadd.f32 0.0, %v943
  %v945 = vpop.f32.mrb[0].mxu0
  %v946 = vadd.f32 0.0, %v945
  %v947 = vpop.f32.mrb[0].mxu0
  %v948 = vadd.f32 0.0, %v947
  %v949 = vpop.f32.mrb[0].mxu0
  %v950 = vadd.f32 0.0, %v949
  %951 = vmatprep.mubr.bf16.mxu0 0
  %952 = vmatmul.mubr.bf16.gmra.mrb[0].mxu0 %v535
  %v953 = vpop.f32.mrb[0].mxu0
  %v954 = vadd.f32 0.0, %v953
  %v955 = vpop.f32.mrb[0].mxu0
  %v956 = vadd.f32 0.0, %v955
  %v957 = vpop.f32.mrb[0].mxu0
  %v958 = vadd.f32 0.0, %v957
  %v959 = vpop.f32.mrb[0].mxu0
  %v960 = vadd.f32 0.0, %v959
  %961 = vmatprep.mubr.bf16.mxu0 0
  %962 = vmatmul.mubr.bf16.gmra.mrb[0].mxu0 %v771
  %v963 = vpop.f32.mrb[0].mxu0
  %v964 = vadd.f32 0.0, %v963
  %v965 = vpop.f32.mrb[0].mxu0
  %v966 = vadd.f32 0.0, %v965
  %v967 = vpop.f32.mrb[0].mxu0
  %v968 = vadd.f32 0.0, %v967
  %v969 = vpop.f32.mrb[0].mxu0
  %v970 = vadd.f32 0.0, %v969
  %971 = vdwg.mxu0
  %v972 = vadd.f32 %v578, %v814
  %v973 = vadd.f32 %v580, %v816
  %v974 = vadd.f32 %v582, %v818
  %v975 = vadd.f32 %v584, %v820
  %v976 = vadd.f32 %v588, %v824
  %v977 = vadd.f32 %v590, %v826
  %v978 = vadd.f32 %v592, %v828
  %v979 = vadd.f32 %v594, %v830
  %v980 = vadd.f32 %v598, %v834
  %v981 = vadd.f32 %v600, %v836
  %v982 = vadd.f32 %v602, %v838
  %v983 = vadd.f32 %v604, %v840
  %v984 = vadd.f32 %v608, %v844
  %v985 = vadd.f32 %v610, %v846
  %v986 = vadd.f32 %v612, %v848
  %v987 = vadd.f32 %v614, %v850
  %v988 = vadd.f32 %v618, %v854
  %v989 = vadd.f32 %v620, %v856
  %v990 = vadd.f32 %v622, %v858
  %v991 = vadd.f32 %v624, %v860
  %v992 = vadd.f32 %v628, %v864
  %v993 = vadd.f32 %v630, %v866
  %v994 = vadd.f32 %v632, %v868
  %v995 = vadd.f32 %v634, %v870
  %v996 = vadd.f32 %v638, %v874
  %v997 = vadd.f32 %v640, %v876
  %v998 = vadd.f32 %v642, %v878
  %v999 = vadd.f32 %v644, %v880
  %v1000 = vadd.f32 %v648, %v884
  %v1001 = vadd.f32 %v650, %v886
  %v1002 = vadd.f32 %v652, %v888
  %v1003 = vadd.f32 %v654, %v890
  %v1004 = vadd.f32 %v658, %v894
  %v1005 = vadd.f32 %v660, %v896
  %v1006 = vadd.f32 %v662, %v898
  %v1007 = vadd.f32 %v664, %v900
  %v1008 = vadd.f32 %v668, %v904
  %v1009 = vadd.f32 %v670, %v906
  %v1010 = vadd.f32 %v672, %v908
  %v1011 = vadd.f32 %v674, %v910
  %v1012 = vadd.f32 %v678, %v914
  %v1013 = vadd.f32 %v680, %v916
  %v1014 = vadd.f32 %v682, %v918
  %v1015 = vadd.f32 %v684, %v920
  %v1016 = vadd.f32 %v688, %v924
  %v1017 = vadd.f32 %v690, %v926
  %v1018 = vadd.f32 %v692, %v928
  %v1019 = vadd.f32 %v694, %v930
  %v1020 = vadd.f32 %v698, %v934
  %v1021 = vadd.f32 %v700, %v936
  %v1022 = vadd.f32 %v702, %v938
  %v1023 = vadd.f32 %v704, %v940
  %v1024 = vadd.f32 %v708, %v944
  %v1025 = vadd.f32 %v710, %v946
  %v1026 = vadd.f32 %v712, %v948
  %v1027 = vadd.f32 %v714, %v950
  %v1028 = vadd.f32 %v718, %v954
  %v1029 = vadd.f32 %v720, %v956
  %v1030 = vadd.f32 %v722, %v958
  %v1031 = vadd.f32 %v724, %v960
  %v1032 = vadd.f32 %v728, %v964
  %v1033 = vadd.f32 %v730, %v966
  %v1034 = vadd.f32 %v732, %v968
  %v1035 = vadd.f32 %v734, %v970
  %s1036 = scalar_lea.vmem %s1, 120
  %v1037 = vld [vmem:[%s1036] sm:$0xff]
  %v1038 = vld [vmem:[%s1036 + $0x8] sm:$0xff]
  %v1039 = vld [vmem:[%s1036 + $0x10] sm:$0xff]
  %v1040 = vld [vmem:[%s1036 + $0x18] sm:$0xff]
  %v1041 = vld [vmem:[%s1036 + $0x20] sm:$0x33]
  %v1043 = vunpack.c.l.b16 %v79
  %v1044 = vpack.c.b16 %v1043, %v743
  %v1050 = vunpack.c.l.b16 %v1037
  %v1051 = vunpack.c.h.b16 %v1037
  %v1052 = vunpack.c.l.b16 %v1038
  %v1053 = vunpack.c.h.b16 %v1038
  %v1054 = vunpack.c.l.b16 %v1039
  %v1055 = vunpack.c.h.b16 %v1039
  %v1056 = vunpack.c.l.b16 %v1040
  %v1057 = vunpack.c.h.b16 %v1040
  %v1058 = vunpack.c.l.b16 %v1041
  %v1059 = vunpack.c.h.b16 %v1041
  %v1060 = vpack.c.b16 %v1052, %v1050
  %v1061 = vpack.c.b16 %v1053, %v1051
  %v1062 = vpack.c.b16 %v1056, %v1054
  %v1063 = vpack.c.b16 %v1057, %v1055
  %v1064 = vpack.c.b16 %v1058, %v1058
  %v1065 = vpack.c.b16 %v1059, %v1059
  %v1071 = vsel %vm197, %v1044, 0
  %v1074 = vsel %vm246, %v1064, 0
  %v1077 = vsel %vm246, %v1065, 0
  %1079 = vmatprep.subr.bf16.mxu0 %v1061
  %1080 = vmatpush1.bf16.msra.mxu0 %v1060
  %1081 = vmatprep.subr.bf16.mxu0 %v1063
  %1082 = vmatpush1.bf16.msra.mxu0 %v1062
  %1083 = vmatprep.subr.bf16.mxu0 %v1077
  %1084 = vmatpush1.bf16.msra.mxu0 %v1074
  %1085 = vmatprep.subr.bf16.mxu0 0
  %1086 = vmatpush1.bf16.msra.mxu0 0
  %1087 = vmatprep.subr.bf16.mxu0 0
  %1088 = vmatpush1.bf16.msra.mxu0 0
  %1089 = vmatprep.subr.bf16.mxu0 0
  %1090 = vmatpush1.bf16.msra.mxu0 0
  %1091 = vmatprep.subr.bf16.mxu0 0
  %1092 = vmatpush1.bf16.msra.mxu0 0
  %1093 = vmatprep.subr.bf16.mxu0 0
  %1094 = vmatpush1.bf16.msra.mxu0 0
  %1095 = vmatprep.subr.bf16.mxu0 0
  %1096 = vmatpush1.bf16.msra.mxu0 0
  %1097 = vmatprep.subr.bf16.mxu0 0
  %1098 = vmatpush1.bf16.msra.mxu0 0
  %1099 = vmatprep.subr.bf16.mxu0 0
  %1100 = vmatpush1.bf16.msra.mxu0 0
  %1101 = vmatprep.subr.bf16.mxu0 0
  %1102 = vmatpush1.bf16.msra.mxu0 0
  %1103 = vmatprep.subr.bf16.mxu0 0
  %1104 = vmatpush1.bf16.msra.mxu0 0
  %1105 = vmatprep.subr.bf16.mxu0 0
  %1106 = vmatpush1.bf16.msra.mxu0 0
  %1107 = vmatprep.subr.bf16.mxu0 0
  %1108 = vmatpush1.bf16.msra.mxu0 0
  %1109 = vmatprep.subr.bf16.mxu0 0
  %1110 = vmatpush1.bf16.msra.mxu0 0
  %1111 = vmatprep.mubr.bf16.mxu0 0
  %1112 = vmatmul.mubr.bf16.gmra.mrb[0].mxu0 %v202
  %v1113 = vpop.f32.mrb[0].mxu0
  %v1114 = vadd.f32 0.0, %v1113
  %v1115 = vpop.f32.mrb[0].mxu0
  %v1116 = vadd.f32 0.0, %v1115
  %v1117 = vpop.f32.mrb[0].mxu0
  %v1118 = vadd.f32 0.0, %v1117
  %v1119 = vpop.f32.mrb[0].mxu0
  %v1120 = vadd.f32 0.0, %v1119
  %1121 = vmatprep.mubr.bf16.mxu0 0
  %1122 = vmatmul.mubr.bf16.gmra.mrb[0].mxu0 %v205
  %v1123 = vpop.f32.mrb[0].mxu0
  %v1124 = vadd.f32 0.0, %v1123
  %v1125 = vpop.f32.mrb[0].mxu0
  %v1126 = vadd.f32 0.0, %v1125
  %v1127 = vpop.f32.mrb[0].mxu0
  %v1128 = vadd.f32 0.0, %v1127
  %v1129 = vpop.f32.mrb[0].mxu0
  %v1130 = vadd.f32 0.0, %v1129
  %1131 = vmatprep.mubr.bf16.mxu0 0
  %1132 = vmatmul.mubr.bf16.gmra.mrb[0].mxu0 %v208
  %v1133 = vpop.f32.mrb[0].mxu0
  %v1134 = vadd.f32 0.0, %v1133
  %v1135 = vpop.f32.mrb[0].mxu0
  %v1136 = vadd.f32 0.0, %v1135
  %v1137 = vpop.f32.mrb[0].mxu0
  %v1138 = vadd.f32 0.0, %v1137
  %v1139 = vpop.f32.mrb[0].mxu0
  %v1140 = vadd.f32 0.0, %v1139
  %1141 = vmatprep.mubr.bf16.mxu0 0
  %1142 = vmatmul.mubr.bf16.gmra.mrb[0].mxu0 %v211
  %v1143 = vpop.f32.mrb[0].mxu0
  %v1144 = vadd.f32 0.0, %v1143
  %v1145 = vpop.f32.mrb[0].mxu0
  %v1146 = vadd.f32 0.0, %v1145
  %v1147 = vpop.f32.mrb[0].mxu0
  %v1148 = vadd.f32 0.0, %v1147
  %v1149 = vpop.f32.mrb[0].mxu0
  %v1150 = vadd.f32 0.0, %v1149
  %1151 = vmatprep.mubr.bf16.mxu0 0
  %1152 = vmatmul.mubr.bf16.gmra.mrb[0].mxu0 %v214
  %v1153 = vpop.f32.mrb[0].mxu0
  %v1154 = vadd.f32 0.0, %v1153
  %v1155 = vpop.f32.mrb[0].mxu0
  %v1156 = vadd.f32 0.0, %v1155
  %v1157 = vpop.f32.mrb[0].mxu0
  %v1158 = vadd.f32 0.0, %v1157
  %v1159 = vpop.f32.mrb[0].mxu0
  %v1160 = vadd.f32 0.0, %v1159
  %1161 = vmatprep.mubr.bf16.mxu0 0
  %1162 = vmatmul.mubr.bf16.gmra.mrb[0].mxu0 %v217
  %v1163 = vpop.f32.mrb[0].mxu0
  %v1164 = vadd.f32 0.0, %v1163
  %v1165 = vpop.f32.mrb[0].mxu0
  %v1166 = vadd.f32 0.0, %v1165
  %v1167 = vpop.f32.mrb[0].mxu0
  %v1168 = vadd.f32 0.0, %v1167
  %v1169 = vpop.f32.mrb[0].mxu0
  %v1170 = vadd.f32 0.0, %v1169
  %1171 = vmatprep.mubr.bf16.mxu0 0
  %1172 = vmatmul.mubr.bf16.gmra.mrb[0].mxu0 %v220
  %v1173 = vpop.f32.mrb[0].mxu0
  %v1174 = vadd.f32 0.0, %v1173
  %v1175 = vpop.f32.mrb[0].mxu0
  %v1176 = vadd.f32 0.0, %v1175
  %v1177 = vpop.f32.mrb[0].mxu0
  %v1178 = vadd.f32 0.0, %v1177
  %v1179 = vpop.f32.mrb[0].mxu0
  %v1180 = vadd.f32 0.0, %v1179
  %1181 = vmatprep.mubr.bf16.mxu0 0
  %1182 = vmatmul.mubr.bf16.gmra.mrb[0].mxu0 %v223
  %v1183 = vpop.f32.mrb[0].mxu0
  %v1184 = vadd.f32 0.0, %v1183
  %v1185 = vpop.f32.mrb[0].mxu0
  %v1186 = vadd.f32 0.0, %v1185
  %v1187 = vpop.f32.mrb[0].mxu0
  %v1188 = vadd.f32 0.0, %v1187
  %v1189 = vpop.f32.mrb[0].mxu0
  %v1190 = vadd.f32 0.0, %v1189
  %1191 = vmatprep.mubr.bf16.mxu0 0
  %1192 = vmatmul.mubr.bf16.gmra.mrb[0].mxu0 %v226
  %v1193 = vpop.f32.mrb[0].mxu0
  %v1194 = vadd.f32 0.0, %v1193
  %v1195 = vpop.f32.mrb[0].mxu0
  %v1196 = vadd.f32 0.0, %v1195
  %v1197 = vpop.f32.mrb[0].mxu0
  %v1198 = vadd.f32 0.0, %v1197
  %v1199 = vpop.f32.mrb[0].mxu0
  %v1200 = vadd.f32 0.0, %v1199
  %1201 = vmatprep.mubr.bf16.mxu0 0
  %1202 = vmatmul.mubr.bf16.gmra.mrb[0].mxu0 %v229
  %v1203 = vpop.f32.mrb[0].mxu0
  %v1204 = vadd.f32 0.0, %v1203
  %v1205 = vpop.f32.mrb[0].mxu0
  %v1206 = vadd.f32 0.0, %v1205
  %v1207 = vpop.f32.mrb[0].mxu0
  %v1208 = vadd.f32 0.0, %v1207
  %v1209 = vpop.f32.mrb[0].mxu0
  %v1210 = vadd.f32 0.0, %v1209
  %1211 = vmatprep.mubr.bf16.mxu0 0
  %1212 = vmatmul.mubr.bf16.gmra.mrb[0].mxu0 %v232
  %v1213 = vpop.f32.mrb[0].mxu0
  %v1214 = vadd.f32 0.0, %v1213
  %v1215 = vpop.f32.mrb[0].mxu0
  %v1216 = vadd.f32 0.0, %v1215
  %v1217 = vpop.f32.mrb[0].mxu0
  %v1218 = vadd.f32 0.0, %v1217
  %v1219 = vpop.f32.mrb[0].mxu0
  %v1220 = vadd.f32 0.0, %v1219
  %1221 = vmatprep.mubr.bf16.mxu0 0
  %1222 = vmatmul.mubr.bf16.gmra.mrb[0].mxu0 %v235
  %v1223 = vpop.f32.mrb[0].mxu0
  %v1224 = vadd.f32 0.0, %v1223
  %v1225 = vpop.f32.mrb[0].mxu0
  %v1226 = vadd.f32 0.0, %v1225
  %v1227 = vpop.f32.mrb[0].mxu0
  %v1228 = vadd.f32 0.0, %v1227
  %v1229 = vpop.f32.mrb[0].mxu0
  %v1230 = vadd.f32 0.0, %v1229
  %1231 = vmatprep.mubr.bf16.mxu0 0
  %1232 = vmatmul.mubr.bf16.gmra.mrb[0].mxu0 %v238
  %v1233 = vpop.f32.mrb[0].mxu0
  %v1234 = vadd.f32 0.0, %v1233
  %v1235 = vpop.f32.mrb[0].mxu0
  %v1236 = vadd.f32 0.0, %v1235
  %v1237 = vpop.f32.mrb[0].mxu0
  %v1238 = vadd.f32 0.0, %v1237
  %v1239 = vpop.f32.mrb[0].mxu0
  %v1240 = vadd.f32 0.0, %v1239
  %1241 = vmatprep.mubr.bf16.mxu0 0
  %1242 = vmatmul.mubr.bf16.gmra.mrb[0].mxu0 %v241
  %v1243 = vpop.f32.mrb[0].mxu0
  %v1244 = vadd.f32 0.0, %v1243
  %v1245 = vpop.f32.mrb[0].mxu0
  %v1246 = vadd.f32 0.0, %v1245
  %v1247 = vpop.f32.mrb[0].mxu0
  %v1248 = vadd.f32 0.0, %v1247
  %v1249 = vpop.f32.mrb[0].mxu0
  %v1250 = vadd.f32 0.0, %v1249
  %1251 = vmatprep.mubr.bf16.mxu0 0
  %1252 = vmatmul.mubr.bf16.gmra.mrb[0].mxu0 %v244
  %v1253 = vpop.f32.mrb[0].mxu0
  %v1254 = vadd.f32 0.0, %v1253
  %v1255 = vpop.f32.mrb[0].mxu0
  %v1256 = vadd.f32 0.0, %v1255
  %v1257 = vpop.f32.mrb[0].mxu0
  %v1258 = vadd.f32 0.0, %v1257
  %v1259 = vpop.f32.mrb[0].mxu0
  %v1260 = vadd.f32 0.0, %v1259
  %1261 = vmatprep.mubr.bf16.mxu0 0
  %1262 = vmatmul.mubr.bf16.gmra.mrb[0].mxu0 %v1071
  %v1263 = vpop.f32.mrb[0].mxu0
  %v1264 = vadd.f32 0.0, %v1263
  %v1265 = vpop.f32.mrb[0].mxu0
  %v1266 = vadd.f32 0.0, %v1265
  %v1267 = vpop.f32.mrb[0].mxu0
  %v1268 = vadd.f32 0.0, %v1267
  %v1269 = vpop.f32.mrb[0].mxu0
  %v1270 = vadd.f32 0.0, %v1269
  %1271 = vdwg.mxu0
  %v1272 = vadd.f32 %v972, %v1114
  %v1273 = vadd.f32 %v973, %v1116
  %v1274 = vadd.f32 %v974, %v1118
  %v1275 = vadd.f32 %v975, %v1120
  %v1276 = vadd.f32 %v976, %v1124
  %v1277 = vadd.f32 %v977, %v1126
  %v1278 = vadd.f32 %v978, %v1128
  %v1279 = vadd.f32 %v979, %v1130
  %v1280 = vadd.f32 %v980, %v1134
  %v1281 = vadd.f32 %v981, %v1136
  %v1282 = vadd.f32 %v982, %v1138
  %v1283 = vadd.f32 %v983, %v1140
  %v1284 = vadd.f32 %v984, %v1144
  %v1285 = vadd.f32 %v985, %v1146
  %v1286 = vadd.f32 %v986, %v1148
  %v1287 = vadd.f32 %v987, %v1150
  %v1288 = vadd.f32 %v988, %v1154
  %v1289 = vadd.f32 %v989, %v1156
  %v1290 = vadd.f32 %v990, %v1158
  %v1291 = vadd.f32 %v991, %v1160
  %v1292 = vadd.f32 %v992, %v1164
  %v1293 = vadd.f32 %v993, %v1166
  %v1294 = vadd.f32 %v994, %v1168
  %v1295 = vadd.f32 %v995, %v1170
  %v1296 = vadd.f32 %v996, %v1174
  %v1297 = vadd.f32 %v997, %v1176
  %v1298 = vadd.f32 %v998, %v1178
  %v1299 = vadd.f32 %v999, %v1180
  %v1300 = vadd.f32 %v1000, %v1184
  %v1301 = vadd.f32 %v1001, %v1186
  %v1302 = vadd.f32 %v1002, %v1188
  %v1303 = vadd.f32 %v1003, %v1190
  %v1304 = vadd.f32 %v1004, %v1194
  %v1305 = vadd.f32 %v1005, %v1196
  %v1306 = vadd.f32 %v1006, %v1198
  %v1307 = vadd.f32 %v1007, %v1200
  %v1308 = vadd.f32 %v1008, %v1204
  %v1309 = vadd.f32 %v1009, %v1206
  %v1310 = vadd.f32 %v1010, %v1208
  %v1311 = vadd.f32 %v1011, %v1210
  %v1312 = vadd.f32 %v1012, %v1214
  %v1313 = vadd.f32 %v1013, %v1216
  %v1314 = vadd.f32 %v1014, %v1218
  %v1315 = vadd.f32 %v1015, %v1220
  %v1316 = vadd.f32 %v1016, %v1224
  %v1317 = vadd.f32 %v1017, %v1226
  %v1318 = vadd.f32 %v1018, %v1228
  %v1319 = vadd.f32 %v1019, %v1230
  %v1320 = vadd.f32 %v1020, %v1234
  %v1321 = vadd.f32 %v1021, %v1236
  %v1322 = vadd.f32 %v1022, %v1238
  %v1323 = vadd.f32 %v1023, %v1240
  %v1324 = vadd.f32 %v1024, %v1244
  %v1325 = vadd.f32 %v1025, %v1246
  %v1326 = vadd.f32 %v1026, %v1248
  %v1327 = vadd.f32 %v1027, %v1250
  %v1328 = vadd.f32 %v1028, %v1254
  %v1329 = vadd.f32 %v1029, %v1256
  %v1330 = vadd.f32 %v1030, %v1258
  %v1331 = vadd.f32 %v1031, %v1260
  %v1332 = vadd.f32 %v1032, %v1264
  %v1333 = vadd.f32 %v1033, %v1266
  %v1334 = vadd.f32 %v1034, %v1268
  %v1335 = vadd.f32 %v1035, %v1270
  %s1336 = scalar_lea.vmem %s1, 160
  %v1337 = vld [vmem:[%s1336] sm:$0xff]
  %v1338 = vld [vmem:[%s1336 + $0x8] sm:$0xff]
  %v1339 = vld [vmem:[%s1336 + $0x10] sm:$0xff]
  %v1340 = vld [vmem:[%s1336 + $0x18] sm:$0xff]
  %v1341 = vld [vmem:[%s1336 + $0x20] sm:$0x33]
  %v1343 = vunpack.c.l.b16 %v80
  %v1344 = vpack.c.b16 %v1343, %v1043
  %v1350 = vunpack.c.l.b16 %v1337
  %v1351 = vunpack.c.h.b16 %v1337
  %v1352 = vunpack.c.l.b16 %v1338
  %v1353 = vunpack.c.h.b16 %v1338
  %v1354 = vunpack.c.l.b16 %v1339
  %v1355 = vunpack.c.h.b16 %v1339
  %v1356 = vunpack.c.l.b16 %v1340
  %v1357 = vunpack.c.h.b16 %v1340
  %v1358 = vunpack.c.l.b16 %v1341
  %v1359 = vunpack.c.h.b16 %v1341
  %v1360 = vpack.c.b16 %v1352, %v1350
  %v1361 = vpack.c.b16 %v1353, %v1351
  %v1362 = vpack.c.b16 %v1356, %v1354
  %v1363 = vpack.c.b16 %v1357, %v1355
  %v1364 = vpack.c.b16 %v1358, %v1358
  %v1365 = vpack.c.b16 %v1359, %v1359
  %v1371 = vsel %vm197, %v1344, 0
  %v1374 = vsel %vm246, %v1364, 0
  %v1377 = vsel %vm246, %v1365, 0
  %1379 = vmatprep.subr.bf16.mxu0 %v1361
  %1380 = vmatpush1.bf16.msra.mxu0 %v1360
  %1381 = vmatprep.subr.bf16.mxu0 %v1363
  %1382 = vmatpush1.bf16.msra.mxu0 %v1362
  %1383 = vmatprep.subr.bf16.mxu0 %v1377
  %1384 = vmatpush1.bf16.msra.mxu0 %v1374
  %1385 = vmatprep.subr.bf16.mxu0 0
  %1386 = vmatpush1.bf16.msra.mxu0 0
  %1387 = vmatprep.subr.bf16.mxu0 0
  %1388 = vmatpush1.bf16.msra.mxu0 0
  %1389 = vmatprep.subr.bf16.mxu0 0
  %1390 = vmatpush1.bf16.msra.mxu0 0
  %1391 = vmatprep.subr.bf16.mxu0 0
  %1392 = vmatpush1.bf16.msra.mxu0 0
  %1393 = vmatprep.subr.bf16.mxu0 0
  %1394 = vmatpush1.bf16.msra.mxu0 0
  %1395 = vmatprep.subr.bf16.mxu0 0
  %1396 = vmatpush1.bf16.msra.mxu0 0
  %1397 = vmatprep.subr.bf16.mxu0 0
  %1398 = vmatpush1.bf16.msra.mxu0 0
  %1399 = vmatprep.subr.bf16.mxu0 0
  %1400 = vmatpush1.bf16.msra.mxu0 0
  %1401 = vmatprep.subr.bf16.mxu0 0
  %1402 = vmatpush1.bf16.msra.mxu0 0
  %1403 = vmatprep.subr.bf16.mxu0 0
  %1404 = vmatpush1.bf16.msra.mxu0 0
  %1405 = vmatprep.subr.bf16.mxu0 0
  %1406 = vmatpush1.bf16.msra.mxu0 0
  %1407 = vmatprep.subr.bf16.mxu0 0
  %1408 = vmatpush1.bf16.msra.mxu0 0
  %1409 = vmatprep.subr.bf16.mxu0 0
  %1410 = vmatpush1.bf16.msra.mxu0 0
  %1411 = vmatprep.mubr.bf16.mxu0 0
  %1412 = vmatmul.mubr.bf16.gmra.mrb[0].mxu0 %v496
  %v1413 = vpop.f32.mrb[0].mxu0
  %v1414 = vadd.f32 0.0, %v1413
  %v1415 = vpop.f32.mrb[0].mxu0
  %v1416 = vadd.f32 0.0, %v1415
  %v1417 = vpop.f32.mrb[0].mxu0
  %v1418 = vadd.f32 0.0, %v1417
  %v1419 = vpop.f32.mrb[0].mxu0
  %v1420 = vadd.f32 0.0, %v1419
  %1421 = vmatprep.mubr.bf16.mxu0 0
  %1422 = vmatmul.mubr.bf16.gmra.mrb[0].mxu0 %v499
  %v1423 = vpop.f32.mrb[0].mxu0
  %v1424 = vadd.f32 0.0, %v1423
  %v1425 = vpop.f32.mrb[0].mxu0
  %v1426 = vadd.f32 0.0, %v1425
  %v1427 = vpop.f32.mrb[0].mxu0
  %v1428 = vadd.f32 0.0, %v1427
  %v1429 = vpop.f32.mrb[0].mxu0
  %v1430 = vadd.f32 0.0, %v1429
  %1431 = vmatprep.mubr.bf16.mxu0 0
  %1432 = vmatmul.mubr.bf16.gmra.mrb[0].mxu0 %v502
  %v1433 = vpop.f32.mrb[0].mxu0
  %v1434 = vadd.f32 0.0, %v1433
  %v1435 = vpop.f32.mrb[0].mxu0
  %v1436 = vadd.f32 0.0, %v1435
  %v1437 = vpop.f32.mrb[0].mxu0
  %v1438 = vadd.f32 0.0, %v1437
  %v1439 = vpop.f32.mrb[0].mxu0
  %v1440 = vadd.f32 0.0, %v1439
  %1441 = vmatprep.mubr.bf16.mxu0 0
  %1442 = vmatmul.mubr.bf16.gmra.mrb[0].mxu0 %v505
  %v1443 = vpop.f32.mrb[0].mxu0
  %v1444 = vadd.f32 0.0, %v1443
  %v1445 = vpop.f32.mrb[0].mxu0
  %v1446 = vadd.f32 0.0, %v1445
  %v1447 = vpop.f32.mrb[0].mxu0
  %v1448 = vadd.f32 0.0, %v1447
  %v1449 = vpop.f32.mrb[0].mxu0
  %v1450 = vadd.f32 0.0, %v1449
  %1451 = vmatprep.mubr.bf16.mxu0 0
  %1452 = vmatmul.mubr.bf16.gmra.mrb[0].mxu0 %v508
  %v1453 = vpop.f32.mrb[0].mxu0
  %v1454 = vadd.f32 0.0, %v1453
  %v1455 = vpop.f32.mrb[0].mxu0
  %v1456 = vadd.f32 0.0, %v1455
  %v1457 = vpop.f32.mrb[0].mxu0
  %v1458 = vadd.f32 0.0, %v1457
  %v1459 = vpop.f32.mrb[0].mxu0
  %v1460 = vadd.f32 0.0, %v1459
  %1461 = vmatprep.mubr.bf16.mxu0 0
  %1462 = vmatmul.mubr.bf16.gmra.mrb[0].mxu0 %v511
  %v1463 = vpop.f32.mrb[0].mxu0
  %v1464 = vadd.f32 0.0, %v1463
  %v1465 = vpop.f32.mrb[0].mxu0
  %v1466 = vadd.f32 0.0, %v1465
  %v1467 = vpop.f32.mrb[0].mxu0
  %v1468 = vadd.f32 0.0, %v1467
  %v1469 = vpop.f32.mrb[0].mxu0
  %v1470 = vadd.f32 0.0, %v1469
  %1471 = vmatprep.mubr.bf16.mxu0 0
  %1472 = vmatmul.mubr.bf16.gmra.mrb[0].mxu0 %v514
  %v1473 = vpop.f32.mrb[0].mxu0
  %v1474 = vadd.f32 0.0, %v1473
  %v1475 = vpop.f32.mrb[0].mxu0
  %v1476 = vadd.f32 0.0, %v1475
  %v1477 = vpop.f32.mrb[0].mxu0
  %v1478 = vadd.f32 0.0, %v1477
  %v1479 = vpop.f32.mrb[0].mxu0
  %v1480 = vadd.f32 0.0, %v1479
  %1481 = vmatprep.mubr.bf16.mxu0 0
  %1482 = vmatmul.mubr.bf16.gmra.mrb[0].mxu0 %v517
  %v1483 = vpop.f32.mrb[0].mxu0
  %v1484 = vadd.f32 0.0, %v1483
  %v1485 = vpop.f32.mrb[0].mxu0
  %v1486 = vadd.f32 0.0, %v1485
  %v1487 = vpop.f32.mrb[0].mxu0
  %v1488 = vadd.f32 0.0, %v1487
  %v1489 = vpop.f32.mrb[0].mxu0
  %v1490 = vadd.f32 0.0, %v1489
  %1491 = vmatprep.mubr.bf16.mxu0 0
  %1492 = vmatmul.mubr.bf16.gmra.mrb[0].mxu0 %v520
  %v1493 = vpop.f32.mrb[0].mxu0
  %v1494 = vadd.f32 0.0, %v1493
  %v1495 = vpop.f32.mrb[0].mxu0
  %v1496 = vadd.f32 0.0, %v1495
  %v1497 = vpop.f32.mrb[0].mxu0
  %v1498 = vadd.f32 0.0, %v1497
  %v1499 = vpop.f32.mrb[0].mxu0
  %v1500 = vadd.f32 0.0, %v1499
  %1501 = vmatprep.mubr.bf16.mxu0 0
  %1502 = vmatmul.mubr.bf16.gmra.mrb[0].mxu0 %v523
  %v1503 = vpop.f32.mrb[0].mxu0
  %v1504 = vadd.f32 0.0, %v1503
  %v1505 = vpop.f32.mrb[0].mxu0
  %v1506 = vadd.f32 0.0, %v1505
  %v1507 = vpop.f32.mrb[0].mxu0
  %v1508 = vadd.f32 0.0, %v1507
  %v1509 = vpop.f32.mrb[0].mxu0
  %v1510 = vadd.f32 0.0, %v1509
  %1511 = vmatprep.mubr.bf16.mxu0 0
  %1512 = vmatmul.mubr.bf16.gmra.mrb[0].mxu0 %v526
  %v1513 = vpop.f32.mrb[0].mxu0
  %v1514 = vadd.f32 0.0, %v1513
  %v1515 = vpop.f32.mrb[0].mxu0
  %v1516 = vadd.f32 0.0, %v1515
  %v1517 = vpop.f32.mrb[0].mxu0
  %v1518 = vadd.f32 0.0, %v1517
  %v1519 = vpop.f32.mrb[0].mxu0
  %v1520 = vadd.f32 0.0, %v1519
  %1521 = vmatprep.mubr.bf16.mxu0 0
  %1522 = vmatmul.mubr.bf16.gmra.mrb[0].mxu0 %v529
  %v1523 = vpop.f32.mrb[0].mxu0
  %v1524 = vadd.f32 0.0, %v1523
  %v1525 = vpop.f32.mrb[0].mxu0
  %v1526 = vadd.f32 0.0, %v1525
  %v1527 = vpop.f32.mrb[0].mxu0
  %v1528 = vadd.f32 0.0, %v1527
  %v1529 = vpop.f32.mrb[0].mxu0
  %v1530 = vadd.f32 0.0, %v1529
  %1531 = vmatprep.mubr.bf16.mxu0 0
  %1532 = vmatmul.mubr.bf16.gmra.mrb[0].mxu0 %v532
  %v1533 = vpop.f32.mrb[0].mxu0
  %v1534 = vadd.f32 0.0, %v1533
  %v1535 = vpop.f32.mrb[0].mxu0
  %v1536 = vadd.f32 0.0, %v1535
  %v1537 = vpop.f32.mrb[0].mxu0
  %v1538 = vadd.f32 0.0, %v1537
  %v1539 = vpop.f32.mrb[0].mxu0
  %v1540 = vadd.f32 0.0, %v1539
  %1541 = vmatprep.mubr.bf16.mxu0 0
  %1542 = vmatmul.mubr.bf16.gmra.mrb[0].mxu0 %v535
  %v1543 = vpop.f32.mrb[0].mxu0
  %v1544 = vadd.f32 0.0, %v1543
  %v1545 = vpop.f32.mrb[0].mxu0
  %v1546 = vadd.f32 0.0, %v1545
  %v1547 = vpop.f32.mrb[0].mxu0
  %v1548 = vadd.f32 0.0, %v1547
  %v1549 = vpop.f32.mrb[0].mxu0
  %v1550 = vadd.f32 0.0, %v1549
  %1551 = vmatprep.mubr.bf16.mxu0 0
  %1552 = vmatmul.mubr.bf16.gmra.mrb[0].mxu0 %v771
  %v1553 = vpop.f32.mrb[0].mxu0
  %v1554 = vadd.f32 0.0, %v1553
  %v1555 = vpop.f32.mrb[0].mxu0
  %v1556 = vadd.f32 0.0, %v1555
  %v1557 = vpop.f32.mrb[0].mxu0
  %v1558 = vadd.f32 0.0, %v1557
  %v1559 = vpop.f32.mrb[0].mxu0
  %v1560 = vadd.f32 0.0, %v1559
  %1561 = vmatprep.mubr.bf16.mxu0 0
  %1562 = vmatmul.mubr.bf16.gmra.mrb[0].mxu0 %v1371
  %v1563 = vpop.f32.mrb[0].mxu0
  %v1564 = vadd.f32 0.0, %v1563
  %v1565 = vpop.f32.mrb[0].mxu0
  %v1566 = vadd.f32 0.0, %v1565
  %v1567 = vpop.f32.mrb[0].mxu0
  %v1568 = vadd.f32 0.0, %v1567
  %v1569 = vpop.f32.mrb[0].mxu0
  %v1570 = vadd.f32 0.0, %v1569
  %1571 = vdwg.mxu0
  %v1572 = vadd.f32 %v1272, %v1414
  %v1573 = vadd.f32 %v1273, %v1416
  %v1574 = vadd.f32 %v1274, %v1418
  %v1575 = vadd.f32 %v1275, %v1420
  %v1576 = vadd.f32 %v1276, %v1424
  %v1577 = vadd.f32 %v1277, %v1426
  %v1578 = vadd.f32 %v1278, %v1428
  %v1579 = vadd.f32 %v1279, %v1430
  %v1580 = vadd.f32 %v1280, %v1434
  %v1581 = vadd.f32 %v1281, %v1436
  %v1582 = vadd.f32 %v1282, %v1438
  %v1583 = vadd.f32 %v1283, %v1440
  %v1584 = vadd.f32 %v1284, %v1444
  %v1585 = vadd.f32 %v1285, %v1446
  %v1586 = vadd.f32 %v1286, %v1448
  %v1587 = vadd.f32 %v1287, %v1450
  %v1588 = vadd.f32 %v1288, %v1454
  %v1589 = vadd.f32 %v1289, %v1456
  %v1590 = vadd.f32 %v1290, %v1458
  %v1591 = vadd.f32 %v1291, %v1460
  %v1592 = vadd.f32 %v1292, %v1464
  %v1593 = vadd.f32 %v1293, %v1466
  %v1594 = vadd.f32 %v1294, %v1468
  %v1595 = vadd.f32 %v1295, %v1470
  %v1596 = vadd.f32 %v1296, %v1474
  %v1597 = vadd.f32 %v1297, %v1476
  %v1598 = vadd.f32 %v1298, %v1478
  %v1599 = vadd.f32 %v1299, %v1480
  %v1600 = vadd.f32 %v1300, %v1484
  %v1601 = vadd.f32 %v1301, %v1486
  %v1602 = vadd.f32 %v1302, %v1488
  %v1603 = vadd.f32 %v1303, %v1490
  %v1604 = vadd.f32 %v1304, %v1494
  %v1605 = vadd.f32 %v1305, %v1496
  %v1606 = vadd.f32 %v1306, %v1498
  %v1607 = vadd.f32 %v1307, %v1500
  %v1608 = vadd.f32 %v1308, %v1504
  %v1609 = vadd.f32 %v1309, %v1506
  %v1610 = vadd.f32 %v1310, %v1508
  %v1611 = vadd.f32 %v1311, %v1510
  %v1612 = vadd.f32 %v1312, %v1514
  %v1613 = vadd.f32 %v1313, %v1516
  %v1614 = vadd.f32 %v1314, %v1518
  %v1615 = vadd.f32 %v1315, %v1520
  %v1616 = vadd.f32 %v1316, %v1524
  %v1617 = vadd.f32 %v1317, %v1526
  %v1618 = vadd.f32 %v1318, %v1528
  %v1619 = vadd.f32 %v1319, %v1530
  %v1620 = vadd.f32 %v1320, %v1534
  %v1621 = vadd.f32 %v1321, %v1536
  %v1622 = vadd.f32 %v1322, %v1538
  %v1623 = vadd.f32 %v1323, %v1540
  %v1624 = vadd.f32 %v1324, %v1544
  %v1625 = vadd.f32 %v1325, %v1546
  %v1626 = vadd.f32 %v1326, %v1548
  %v1627 = vadd.f32 %v1327, %v1550
  %v1628 = vadd.f32 %v1328, %v1554
  %v1629 = vadd.f32 %v1329, %v1556
  %v1630 = vadd.f32 %v1330, %v1558
  %v1631 = vadd.f32 %v1331, %v1560
  %v1632 = vadd.f32 %v1332, %v1564
  %v1633 = vadd.f32 %v1333, %v1566
  %v1634 = vadd.f32 %v1334, %v1568
  %v1635 = vadd.f32 %v1335, %v1570
  %v1636 = vld [vmem:[%s2] sm:$0x3]
  %v1638 = vlaneseq
  %v1639 = vshrl.u32 %v1638, 7
  %v1640 = vsub.s32 0, %v1639
  %v1641 = vrot.slane %v1636, %v1640
  %v1642 = vlaneseq
  %v1643 = vshrl.u32 %v1642, 7
  %v1644 = vsub.s32 1, %v1643
  %v1645 = vrot.slane %v1636, %v1644
  %v1648 = vadd.f32 %v1572, %v1641
  %v1649 = vadd.f32 %v1573, %v1645
  %v1650 = vadd.f32 %v1574, %v1641
  %v1651 = vadd.f32 %v1575, %v1645
  %v1652 = vadd.f32 %v1576, %v1641
  %v1653 = vadd.f32 %v1577, %v1645
  %v1654 = vadd.f32 %v1578, %v1641
  %v1655 = vadd.f32 %v1579, %v1645
  %v1656 = vadd.f32 %v1580, %v1641
  %v1657 = vadd.f32 %v1581, %v1645
  %v1658 = vadd.f32 %v1582, %v1641
  %v1659 = vadd.f32 %v1583, %v1645
  %v1660 = vadd.f32 %v1584, %v1641
  %v1661 = vadd.f32 %v1585, %v1645
  %v1662 = vadd.f32 %v1586, %v1641
  %v1663 = vadd.f32 %v1587, %v1645
  %v1664 = vadd.f32 %v1588, %v1641
  %v1665 = vadd.f32 %v1589, %v1645
  %v1666 = vadd.f32 %v1590, %v1641
  %v1667 = vadd.f32 %v1591, %v1645
  %v1668 = vadd.f32 %v1592, %v1641
  %v1669 = vadd.f32 %v1593, %v1645
  %v1670 = vadd.f32 %v1594, %v1641
  %v1671 = vadd.f32 %v1595, %v1645
  %v1672 = vadd.f32 %v1596, %v1641
  %v1673 = vadd.f32 %v1597, %v1645
  %v1674 = vadd.f32 %v1598, %v1641
  %v1675 = vadd.f32 %v1599, %v1645
  %v1676 = vadd.f32 %v1600, %v1641
  %v1677 = vadd.f32 %v1601, %v1645
  %v1678 = vadd.f32 %v1602, %v1641
  %v1679 = vadd.f32 %v1603, %v1645
  %v1680 = vadd.f32 %v1604, %v1641
  %v1681 = vadd.f32 %v1605, %v1645
  %v1682 = vadd.f32 %v1606, %v1641
  %v1683 = vadd.f32 %v1607, %v1645
  %v1684 = vadd.f32 %v1608, %v1641
  %v1685 = vadd.f32 %v1609, %v1645
  %v1686 = vadd.f32 %v1610, %v1641
  %v1687 = vadd.f32 %v1611, %v1645
  %v1688 = vadd.f32 %v1612, %v1641
  %v1689 = vadd.f32 %v1613, %v1645
  %v1690 = vadd.f32 %v1614, %v1641
  %v1691 = vadd.f32 %v1615, %v1645
  %v1692 = vadd.f32 %v1616, %v1641
  %v1693 = vadd.f32 %v1617, %v1645
  %v1694 = vadd.f32 %v1618, %v1641
  %v1695 = vadd.f32 %v1619, %v1645
  %v1696 = vadd.f32 %v1620, %v1641
  %v1697 = vadd.f32 %v1621, %v1645
  %v1698 = vadd.f32 %v1622, %v1641
  %v1699 = vadd.f32 %v1623, %v1645
  %v1700 = vadd.f32 %v1624, %v1641
  %v1701 = vadd.f32 %v1625, %v1645
  %v1702 = vadd.f32 %v1626, %v1641
  %v1703 = vadd.f32 %v1627, %v1645
  %v1704 = vadd.f32 %v1628, %v1641
  %v1705 = vadd.f32 %v1629, %v1645
  %v1706 = vadd.f32 %v1630, %v1641
  %v1707 = vadd.f32 %v1631, %v1645
  %v1708 = vadd.f32 %v1632, %v1641
  %v1709 = vadd.f32 %v1633, %v1645
  %v1710 = vadd.f32 %v1634, %v1641
  %v1711 = vadd.f32 %v1635, %v1645
  %v1712 = vmax.f32 %v1648, 0.0
  %v1713 = vmax.f32 %v1649, 0.0
  %v1714 = vmax.f32 %v1650, 0.0
  %v1715 = vmax.f32 %v1651, 0.0
  %v1716 = vmax.f32 %v1652, 0.0
  %v1717 = vmax.f32 %v1653, 0.0
  %v1718 = vmax.f32 %v1654, 0.0
  %v1719 = vmax.f32 %v1655, 0.0
  %v1720 = vmax.f32 %v1656, 0.0
  %v1721 = vmax.f32 %v1657, 0.0
  %v1722 = vmax.f32 %v1658, 0.0
  %v1723 = vmax.f32 %v1659, 0.0
  %v1724 = vmax.f32 %v1660, 0.0
  %v1725 = vmax.f32 %v1661, 0.0
  %v1726 = vmax.f32 %v1662, 0.0
  %v1727 = vmax.f32 %v1663, 0.0
  %v1728 = vmax.f32 %v1664, 0.0
  %v1729 = vmax.f32 %v1665, 0.0
  %v1730 = vmax.f32 %v1666, 0.0
  %v1731 = vmax.f32 %v1667, 0.0
  %v1732 = vmax.f32 %v1668, 0.0
  %v1733 = vmax.f32 %v1669, 0.0
  %v1734 = vmax.f32 %v1670, 0.0
  %v1735 = vmax.f32 %v1671, 0.0
  %v1736 = vmax.f32 %v1672, 0.0
  %v1737 = vmax.f32 %v1673, 0.0
  %v1738 = vmax.f32 %v1674, 0.0
  %v1739 = vmax.f32 %v1675, 0.0
  %v1740 = vmax.f32 %v1676, 0.0
  %v1741 = vmax.f32 %v1677, 0.0
  %v1742 = vmax.f32 %v1678, 0.0
  %v1743 = vmax.f32 %v1679, 0.0
  %v1744 = vmax.f32 %v1680, 0.0
  %v1745 = vmax.f32 %v1681, 0.0
  %v1746 = vmax.f32 %v1682, 0.0
  %v1747 = vmax.f32 %v1683, 0.0
  %v1748 = vmax.f32 %v1684, 0.0
  %v1749 = vmax.f32 %v1685, 0.0
  %v1750 = vmax.f32 %v1686, 0.0
  %v1751 = vmax.f32 %v1687, 0.0
  %v1752 = vmax.f32 %v1688, 0.0
  %v1753 = vmax.f32 %v1689, 0.0
  %v1754 = vmax.f32 %v1690, 0.0
  %v1755 = vmax.f32 %v1691, 0.0
  %v1756 = vmax.f32 %v1692, 0.0
  %v1757 = vmax.f32 %v1693, 0.0
  %v1758 = vmax.f32 %v1694, 0.0
  %v1759 = vmax.f32 %v1695, 0.0
  %v1760 = vmax.f32 %v1696, 0.0
  %v1761 = vmax.f32 %v1697, 0.0
  %v1762 = vmax.f32 %v1698, 0.0
  %v1763 = vmax.f32 %v1699, 0.0
  %v1764 = vmax.f32 %v1700, 0.0
  %v1765 = vmax.f32 %v1701, 0.0
  %v1766 = vmax.f32 %v1702, 0.0
  %v1767 = vmax.f32 %v1703, 0.0
  %v1768 = vmax.f32 %v1704, 0.0
  %v1769 = vmax.f32 %v1705, 0.0
  %v1770 = vmax.f32 %v1706, 0.0
  %v1771 = vmax.f32 %v1707, 0.0
  %v1772 = vmax.f32 %v1708, 0.0
  %v1773 = vmax.f32 %v1709, 0.0
  %v1774 = vmax.f32 %v1710, 0.0
  %v1775 = vmax.f32 %v1711, 0.0
  %v1776 = vmax.f32 %v1712, %v1714
  %v1777 = vmax.f32 %v1713, %v1715
  %v1778 = vmax.f32 %v1716, %v1718
  %v1779 = vmax.f32 %v1717, %v1719
  %v1780 = vmax.f32 %v1720, %v1722
  %v1781 = vmax.f32 %v1721, %v1723
  %v1782 = vmax.f32 %v1724, %v1726
  %v1783 = vmax.f32 %v1725, %v1727
  %v1784 = vmax.f32 %v1728, %v1730
  %v1785 = vmax.f32 %v1729, %v1731
  %v1786 = vmax.f32 %v1732, %v1734
  %v1787 = vmax.f32 %v1733, %v1735
  %v1788 = vmax.f32 %v1736, %v1738
  %v1789 = vmax.f32 %v1737, %v1739
  %v1790 = vmax.f32 %v1740, %v1742
  %v1791 = vmax.f32 %v1741, %v1743
  %v1792 = vmax.f32 %v1744, %v1746
  %v1793 = vmax.f32 %v1745, %v1747
  %v1794 = vmax.f32 %v1748, %v1750
  %v1795 = vmax.f32 %v1749, %v1751
  %v1796 = vmax.f32 %v1752, %v1754
  %v1797 = vmax.f32 %v1753, %v1755
  %v1798 = vmax.f32 %v1756, %v1758
  %v1799 = vmax.f32 %v1757, %v1759
  %v1800 = vmax.f32 %v1760, %v1762
  %v1801 = vmax.f32 %v1761, %v1763
  %v1802 = vmax.f32 %v1764, %v1766
  %v1803 = vmax.f32 %v1765, %v1767
  %v1804 = vmax.f32 %v1768, %v1770
  %v1805 = vmax.f32 %v1769, %v1771
  %v1806 = vmax.f32 %v1772, %v1774
  %v1807 = vmax.f32 %v1773, %v1775
  %v1808 = vpack.c.bf16 %v1778, %v1776
  %v1809 = vpack.c.bf16 %v1779, %v1777
  %v1810 = vpack.c.bf16 %v1782, %v1780
  %v1811 = vpack.c.bf16 %v1783, %v1781
  %v1812 = vpack.c.bf16 %v1786, %v1784
  %v1813 = vpack.c.bf16 %v1787, %v1785
  %v1814 = vpack.c.bf16 %v1790, %v1788
  %v1815 = vpack.c.bf16 %v1791, %v1789
  %v1816 = vpack.c.bf16 %v1794, %v1792
  %v1817 = vpack.c.bf16 %v1795, %v1793
  %v1818 = vpack.c.bf16 %v1798, %v1796
  %v1819 = vpack.c.bf16 %v1799, %v1797
  %v1820 = vpack.c.bf16 %v1802, %v1800
  %v1821 = vpack.c.bf16 %v1803, %v1801
  %v1822 = vpack.c.bf16 %v1806, %v1804
  %v1823 = vpack.c.bf16 %v1807, %v1805
  %v1824 = vld [vmem:[%s3] sm:$0xff]
  %v1825 = vld [vmem:[%s3 + $0x8] sm:$0xff]
  %v1826 = vld [vmem:[%s3 + $0x10] sm:$0xff]
  %v1827 = vld [vmem:[%s3 + $0x18] sm:$0xff]
  %v1828 = vld [vmem:[%s3 + $0x20] sm:$0xff]
  %v1829 = vld [vmem:[%s3 + $0x28] sm:$0xff]
  %v1830 = vld [vmem:[%s3 + $0x30] sm:$0xff]
  %v1831 = vld [vmem:[%s3 + $0x38] sm:$0xff]
  %v1832 = vld [vmem:[%s3 + $0x40] sm:$0xff]
  %v1833 = vld [vmem:[%s3 + $0x48] sm:$0xff]
  %v1834 = vld [vmem:[%s3 + $0x50] sm:$0xff]
  %v1835 = vld [vmem:[%s3 + $0x58] sm:$0xff]
  %v1836 = vld [vmem:[%s3 + $0x60] sm:$0xff]
  %v1837 = vld [vmem:[%s3 + $0x68] sm:$0xff]
  %v1838 = vld [vmem:[%s3 + $0x70] sm:$0xff]
  %v1839 = vld [vmem:[%s3 + $0x78] sm:$0xff]
  %v1840 = vld [vmem:[%s3 + $0x80] sm:$0xff]
  %v1841 = vld [vmem:[%s3 + $0x88] sm:$0xff]
  %v1842 = vld [vmem:[%s3 + $0x90] sm:$0xff]
  %v1843 = vld [vmem:[%s3 + $0x98] sm:$0xff]
  %v1844 = vld [vmem:[%s3 + $0xa0] sm:$0xff]
  %v1845 = vld [vmem:[%s3 + $0xa8] sm:$0xff]
  %v1846 = vld [vmem:[%s3 + $0xb0] sm:$0xff]
  %v1847 = vld [vmem:[%s3 + $0xb8] sm:$0xff]
  %v1872 = vunpack.c.l.b16 %v1824
  %v1873 = vunpack.c.h.b16 %v1824
  %v1874 = vunpack.c.l.b16 %v1825
  %v1875 = vunpack.c.h.b16 %v1825
  %v1876 = vunpack.c.l.b16 %v1826
  %v1877 = vunpack.c.h.b16 %v1826
  %v1878 = vunpack.c.l.b16 %v1827
  %v1879 = vunpack.c.h.b16 %v1827
  %v1880 = vunpack.c.l.b16 %v1828
  %v1881 = vunpack.c.h.b16 %v1828
  %v1882 = vunpack.c.l.b16 %v1829
  %v1883 = vunpack.c.h.b16 %v1829
  %v1884 = vunpack.c.l.b16 %v1830
  %v1885 = vunpack.c.h.b16 %v1830
  %v1886 = vunpack.c.l.b16 %v1831
  %v1887 = vunpack.c.h.b16 %v1831
  %v1888 = vunpack.c.l.b16 %v1832
  %v1889 = vunpack.c.h.b16 %v1832
  %v1890 = vunpack.c.l.b16 %v1833
  %v1891 = vunpack.c.h.b16 %v1833
  %v1892 = vunpack.c.l.b16 %v1834
  %v1893 = vunpack.c.h.b16 %v1834
  %v1894 = vunpack.c.l.b16 %v1835
  %v1895 = vunpack.c.h.b16 %v1835
  %v1896 = vunpack.c.l.b16 %v1836
  %v1897 = vunpack.c.h.b16 %v1836
  %v1898 = vunpack.c.l.b16 %v1837
  %v1899 = vunpack.c.h.b16 %v1837
  %v1900 = vunpack.c.l.b16 %v1838
  %v1901 = vunpack.c.h.b16 %v1838
  %v1902 = vunpack.c.l.b16 %v1839
  %v1903 = vunpack.c.h.b16 %v1839
  %v1904 = vunpack.c.l.b16 %v1840
  %v1905 = vunpack.c.h.b16 %v1840
  %v1906 = vunpack.c.l.b16 %v1841
  %v1907 = vunpack.c.h.b16 %v1841
  %v1908 = vunpack.c.l.b16 %v1842
  %v1909 = vunpack.c.h.b16 %v1842
  %v1910 = vunpack.c.l.b16 %v1843
  %v1911 = vunpack.c.h.b16 %v1843
  %v1912 = vunpack.c.l.b16 %v1844
  %v1913 = vunpack.c.h.b16 %v1844
  %v1914 = vunpack.c.l.b16 %v1845
  %v1915 = vunpack.c.h.b16 %v1845
  %v1916 = vunpack.c.l.b16 %v1846
  %v1917 = vunpack.c.h.b16 %v1846
  %v1918 = vunpack.c.l.b16 %v1847
  %v1919 = vunpack.c.h.b16 %v1847
  %v1920 = vpack.c.b16 %v1874, %v1872
  %v1921 = vpack.c.b16 %v1875, %v1873
  %v1922 = vpack.c.b16 %v1878, %v1876
  %v1923 = vpack.c.b16 %v1879, %v1877
  %v1924 = vpack.c.b16 %v1882, %v1880
  %v1925 = vpack.c.b16 %v1883, %v1881
  %v1926 = vpack.c.b16 %v1886, %v1884
  %v1927 = vpack.c.b16 %v1887, %v1885
  %v1928 = vpack.c.b16 %v1890, %v1888
  %v1929 = vpack.c.b16 %v1891, %v1889
  %v1930 = vpack.c.b16 %v1894, %v1892
  %v1931 = vpack.c.b16 %v1895, %v1893
  %v1932 = vpack.c.b16 %v1898, %v1896
  %v1933 = vpack.c.b16 %v1899, %v1897
  %v1934 = vpack.c.b16 %v1902, %v1900
  %v1935 = vpack.c.b16 %v1903, %v1901
  %v1936 = vpack.c.b16 %v1906, %v1904
  %v1937 = vpack.c.b16 %v1907, %v1905
  %v1938 = vpack.c.b16 %v1910, %v1908
  %v1939 = vpack.c.b16 %v1911, %v1909
  %v1940 = vpack.c.b16 %v1914, %v1912
  %v1941 = vpack.c.b16 %v1915, %v1913
  %v1942 = vpack.c.b16 %v1918, %v1916
  %v1943 = vpack.c.b16 %v1919, %v1917
  %vm1968 = vcmask 523264
  %v1970 = vsel %vm1968, %v1809, 0
  %v1973 = vsel %vm1968, %v1811, 0
  %v1976 = vsel %vm1968, %v1813, 0
  %v1979 = vsel %vm1968, %v1815, 0
  %v1982 = vsel %vm1968, %v1817, 0
  %v1985 = vsel %vm1968, %v1819, 0
  %v1988 = vsel %vm1968, %v1821, 0
  %v1991 = vsel %vm1968, %v1823, 0
  %1993 = vmatprep.subr.bf16.mxu0 %v1921
  %1994 = vmatpush1.bf16.msra.mxu0 %v1920
  %1995 = vmatprep.subr.bf16.mxu0 %v1923
  %1996 = vmatpush1.bf16.msra.mxu0 %v1922
  %1997 = vmatprep.subr.bf16.mxu0 %v1925
  %1998 = vmatpush1.bf16.msra.mxu0 %v1924
  %1999 = vmatprep.subr.bf16.mxu0 %v1927
  %2000 = vmatpush1.bf16.msra.mxu0 %v1926
  %2001 = vmatprep.subr.bf16.mxu0 %v1929
  %2002 = vmatpush1.bf16.msra.mxu0 %v1928
  %2003 = vmatprep.subr.bf16.mxu0 %v1931
  %2004 = vmatpush1.bf16.msra.mxu0 %v1930
  %2005 = vmatprep.subr.bf16.mxu0 %v1933
  %2006 = vmatpush1.bf16.msra.mxu0 %v1932
  %2007 = vmatprep.subr.bf16.mxu0 %v1935
  %2008 = vmatpush1.bf16.msra.mxu0 %v1934
  %2009 = vmatprep.subr.bf16.mxu0 %v1937
  %2010 = vmatpush1.bf16.msra.mxu0 %v1936
  %2011 = vmatprep.subr.bf16.mxu0 %v1939
  %2012 = vmatpush1.bf16.msra.mxu0 %v1938
  %2013 = vmatprep.subr.bf16.mxu0 %v1941
  %2014 = vmatpush1.bf16.msra.mxu0 %v1940
  %2015 = vmatprep.subr.bf16.mxu0 %v1943
  %2016 = vmatpush1.bf16.msra.mxu0 %v1942
  %2017 = vmatprep.subr.bf16.mxu0 0
  %2018 = vmatpush1.bf16.msra.mxu0 0
  %2019 = vmatprep.subr.bf16.mxu0 0
  %2020 = vmatpush1.bf16.msra.mxu0 0
  %2021 = vmatprep.subr.bf16.mxu0 0
  %2022 = vmatpush1.bf16.msra.mxu0 0
  %2023 = vmatprep.subr.bf16.mxu0 0
  %2024 = vmatpush1.bf16.msra.mxu0 0
  %2025 = vmatprep.mubr.bf16.mxu0 %v1970
  %2026 = vmatmul.mubr.bf16.gmra.mrb[0].mxu0 %v1808
  %v2027 = vpop.f32.mrb[0].mxu0
  %v2028 = vadd.f32 0.0, %v2027
  %v2029 = vpop.f32.mrb[0].mxu0
  %v2030 = vadd.f32 0.0, %v2029
  %v2031 = vpop.f32.mrb[0].mxu0
  %v2032 = vadd.f32 0.0, %v2031
  %v2033 = vpop.f32.mrb[0].mxu0
  %v2034 = vadd.f32 0.0, %v2033
  %2035 = vmatprep.mubr.bf16.mxu0 %v1973
  %2036 = vmatmul.mubr.bf16.gmra.mrb[0].mxu0 %v1810
  %v2037 = vpop.f32.mrb[0].mxu0
  %v2038 = vadd.f32 0.0, %v2037
  %v2039 = vpop.f32.mrb[0].mxu0
  %v2040 = vadd.f32 0.0, %v2039
  %v2041 = vpop.f32.mrb[0].mxu0
  %v2042 = vadd.f32 0.0, %v2041
  %v2043 = vpop.f32.mrb[0].mxu0
  %v2044 = vadd.f32 0.0, %v2043
  %2045 = vmatprep.mubr.bf16.mxu0 %v1976
  %2046 = vmatmul.mubr.bf16.gmra.mrb[0].mxu0 %v1812
  %v2047 = vpop.f32.mrb[0].mxu0
  %v2048 = vadd.f32 0.0, %v2047
  %v2049 = vpop.f32.mrb[0].mxu0
  %v2050 = vadd.f32 0.0, %v2049
  %v2051 = vpop.f32.mrb[0].mxu0
  %v2052 = vadd.f32 0.0, %v2051
  %v2053 = vpop.f32.mrb[0].mxu0
  %v2054 = vadd.f32 0.0, %v2053
  %2055 = vmatprep.mubr.bf16.mxu0 %v1979
  %2056 = vmatmul.mubr.bf16.gmra.mrb[0].mxu0 %v1814
  %v2057 = vpop.f32.mrb[0].mxu0
  %v2058 = vadd.f32 0.0, %v2057
  %v2059 = vpop.f32.mrb[0].mxu0
  %v2060 = vadd.f32 0.0, %v2059
  %v2061 = vpop.f32.mrb[0].mxu0
  %v2062 = vadd.f32 0.0, %v2061
  %v2063 = vpop.f32.mrb[0].mxu0
  %v2064 = vadd.f32 0.0, %v2063
  %2065 = vmatprep.mubr.bf16.mxu0 %v1982
  %2066 = vmatmul.mubr.bf16.gmra.mrb[0].mxu0 %v1816
  %v2067 = vpop.f32.mrb[0].mxu0
  %v2068 = vadd.f32 0.0, %v2067
  %v2069 = vpop.f32.mrb[0].mxu0
  %v2070 = vadd.f32 0.0, %v2069
  %v2071 = vpop.f32.mrb[0].mxu0
  %v2072 = vadd.f32 0.0, %v2071
  %v2073 = vpop.f32.mrb[0].mxu0
  %v2074 = vadd.f32 0.0, %v2073
  %2075 = vmatprep.mubr.bf16.mxu0 %v1985
  %2076 = vmatmul.mubr.bf16.gmra.mrb[0].mxu0 %v1818
  %v2077 = vpop.f32.mrb[0].mxu0
  %v2078 = vadd.f32 0.0, %v2077
  %v2079 = vpop.f32.mrb[0].mxu0
  %v2080 = vadd.f32 0.0, %v2079
  %v2081 = vpop.f32.mrb[0].mxu0
  %v2082 = vadd.f32 0.0, %v2081
  %v2083 = vpop.f32.mrb[0].mxu0
  %v2084 = vadd.f32 0.0, %v2083
  %2085 = vmatprep.mubr.bf16.mxu0 %v1988
  %2086 = vmatmul.mubr.bf16.gmra.mrb[0].mxu0 %v1820
  %v2087 = vpop.f32.mrb[0].mxu0
  %v2088 = vadd.f32 0.0, %v2087
  %v2089 = vpop.f32.mrb[0].mxu0
  %v2090 = vadd.f32 0.0, %v2089
  %v2091 = vpop.f32.mrb[0].mxu0
  %v2092 = vadd.f32 0.0, %v2091
  %v2093 = vpop.f32.mrb[0].mxu0
  %v2094 = vadd.f32 0.0, %v2093
  %2095 = vmatprep.mubr.bf16.mxu0 %v1991
  %2096 = vmatmul.mubr.bf16.gmra.mrb[0].mxu0 %v1822
  %v2097 = vpop.f32.mrb[0].mxu0
  %v2098 = vadd.f32 0.0, %v2097
  %v2099 = vpop.f32.mrb[0].mxu0
  %v2100 = vadd.f32 0.0, %v2099
  %v2101 = vpop.f32.mrb[0].mxu0
  %v2102 = vadd.f32 0.0, %v2101
  %v2103 = vpop.f32.mrb[0].mxu0
  %v2104 = vadd.f32 0.0, %v2103
  %2105 = vdwg.mxu0
  %v2106 = vmax.f32 %v2028, %v2030
  %v2107 = vmax.f32 %v2032, %v2034
  %v2108 = vmax.f32 %v2038, %v2040
  %v2109 = vmax.f32 %v2042, %v2044
  %v2110 = vmax.f32 %v2048, %v2050
  %v2111 = vmax.f32 %v2052, %v2054
  %v2112 = vmax.f32 %v2058, %v2060
  %v2113 = vmax.f32 %v2062, %v2064
  %v2114 = vmax.f32 %v2068, %v2070
  %v2115 = vmax.f32 %v2072, %v2074
  %v2116 = vmax.f32 %v2078, %v2080
  %v2117 = vmax.f32 %v2082, %v2084
  %v2118 = vmax.f32 %v2088, %v2090
  %v2119 = vmax.f32 %v2092, %v2094
  %v2120 = vmax.f32 %v2098, %v2100
  %v2121 = vmax.f32 %v2102, %v2104
  %v2122 = vpack.c.bf16 %v2107, %v2106
  %v2123 = vpack.c.bf16 %v2109, %v2108
  %v2124 = vpack.c.bf16 %v2111, %v2110
  %v2125 = vpack.c.bf16 %v2113, %v2112
  %v2126 = vpack.c.bf16 %v2115, %v2114
  %v2127 = vpack.c.bf16 %v2117, %v2116
  %v2128 = vpack.c.bf16 %v2119, %v2118
  %v2129 = vpack.c.bf16 %v2121, %v2120
  %v2138 = vunpack.c.l.b16 %v2122
  %v2139 = vunpack.c.h.b16 %v2122
  %v2140 = vunpack.c.l.b16 %v2123
  %v2141 = vunpack.c.h.b16 %v2123
  %v2142 = vunpack.c.l.b16 %v2124
  %v2143 = vunpack.c.h.b16 %v2124
  %v2144 = vunpack.c.l.b16 %v2125
  %v2145 = vunpack.c.h.b16 %v2125
  %v2146 = vunpack.c.l.b16 %v2126
  %v2147 = vunpack.c.h.b16 %v2126
  %v2148 = vunpack.c.l.b16 %v2127
  %v2149 = vunpack.c.h.b16 %v2127
  %v2150 = vunpack.c.l.b16 %v2128
  %v2151 = vunpack.c.h.b16 %v2128
  %v2152 = vunpack.c.l.b16 %v2129
  %v2153 = vunpack.c.h.b16 %v2129
  %v2154 = vld [vmem:[%s4] sm:$0xff]
  %v2155 = vld [vmem:[%s4 + $0x8] sm:$0xff]
  %v2156 = vld [vmem:[%s4 + $0x10] sm:$0xff]
  %v2157 = vld [vmem:[%s4 + $0x18] sm:$0xff]
  %v2158 = vld [vmem:[%s4 + $0x20] sm:$0xff]
  %v2159 = vld [vmem:[%s4 + $0x28] sm:$0xff]
  %v2160 = vld [vmem:[%s4 + $0x30] sm:$0xff]
  %v2161 = vld [vmem:[%s4 + $0x38] sm:$0xff]
  %v2162 = vld [vmem:[%s4 + $0x40] sm:$0xff]
  %v2163 = vld [vmem:[%s4 + $0x48] sm:$0xff]
  %v2164 = vld [vmem:[%s4 + $0x50] sm:$0xff]
  %v2165 = vld [vmem:[%s4 + $0x58] sm:$0xff]
  %v2166 = vld [vmem:[%s4 + $0x60] sm:$0xff]
  %v2167 = vld [vmem:[%s4 + $0x68] sm:$0xff]
  %v2168 = vld [vmem:[%s4 + $0x70] sm:$0xff]
  %v2169 = vld [vmem:[%s4 + $0x78] sm:$0xff]
  %s2170 = scalar_lea.vmem %s4, 128
  %v2171 = vld [vmem:[%s2170] sm:$0xff]
  %v2172 = vld [vmem:[%s2170 + $0x8] sm:$0xff]
  %v2173 = vld [vmem:[%s2170 + $0x10] sm:$0xff]
  %v2174 = vld [vmem:[%s2170 + $0x18] sm:$0xff]
  %v2175 = vld [vmem:[%s2170 + $0x20] sm:$0xff]
  %v2176 = vld [vmem:[%s2170 + $0x28] sm:$0xff]
  %v2177 = vld [vmem:[%s2170 + $0x30] sm:$0xff]
  %v2178 = vld [vmem:[%s2170 + $0x38] sm:$0xff]
  %v2179 = vld [vmem:[%s2170 + $0x40] sm:$0xff]
  %v2180 = vld [vmem:[%s2170 + $0x48] sm:$0xff]
  %v2181 = vld [vmem:[%s2170 + $0x50] sm:$0xff]
  %v2182 = vld [vmem:[%s2170 + $0x58] sm:$0xff]
  %v2183 = vld [vmem:[%s2170 + $0x60] sm:$0xff]
  %v2184 = vld [vmem:[%s2170 + $0x68] sm:$0xff]
  %v2185 = vld [vmem:[%s2170 + $0x70] sm:$0xff]
  %v2186 = vld [vmem:[%s2170 + $0x78] sm:$0xff]
  %v2187 = vpack.c.b16 %v2140, %v2139
  %v2188 = vpack.c.b16 %v2142, %v2141
  %v2189 = vpack.c.b16 %v2144, %v2143
  %v2190 = vpack.c.b16 %v2146, %v2145
  %v2191 = vpack.c.b16 %v2148, %v2147
  %v2192 = vpack.c.b16 %v2150, %v2149
  %v2215 = vunpack.c.l.b16 %v2171
  %v2216 = vunpack.c.h.b16 %v2171
  %v2217 = vunpack.c.l.b16 %v2172
  %v2218 = vunpack.c.h.b16 %v2172
  %v2219 = vunpack.c.l.b16 %v2173
  %v2220 = vunpack.c.h.b16 %v2173
  %v2221 = vunpack.c.l.b16 %v2174
  %v2222 = vunpack.c.h.b16 %v2174
  %v2223 = vunpack.c.l.b16 %v2175
  %v2224 = vunpack.c.h.b16 %v2175
  %v2225 = vunpack.c.l.b16 %v2176
  %v2226 = vunpack.c.h.b16 %v2176
  %v2227 = vunpack.c.l.b16 %v2177
  %v2228 = vunpack.c.h.b16 %v2177
  %v2229 = vunpack.c.l.b16 %v2178
  %v2230 = vunpack.c.h.b16 %v2178
  %v2231 = vunpack.c.l.b16 %v2179
  %v2232 = vunpack.c.h.b16 %v2179
  %v2233 = vunpack.c.l.b16 %v2180
  %v2234 = vunpack.c.h.b16 %v2180
  %v2235 = vunpack.c.l.b16 %v2181
  %v2236 = vunpack.c.h.b16 %v2181
  %v2237 = vunpack.c.l.b16 %v2182
  %v2238 = vunpack.c.h.b16 %v2182
  %v2239 = vunpack.c.l.b16 %v2183
  %v2240 = vunpack.c.h.b16 %v2183
  %v2241 = vunpack.c.l.b16 %v2184
  %v2242 = vunpack.c.h.b16 %v2184
  %v2243 = vunpack.c.l.b16 %v2185
  %v2244 = vunpack.c.h.b16 %v2185
  %v2245 = vunpack.c.l.b16 %v2186
  %v2246 = vunpack.c.h.b16 %v2186
  %v2247 = vpack.c.b16 %v2217, %v2215
  %v2248 = vpack.c.b16 %v2218, %v2216
  %v2249 = vpack.c.b16 %v2221, %v2219
  %v2250 = vpack.c.b16 %v2222, %v2220
  %v2251 = vpack.c.b16 %v2225, %v2223
  %v2252 = vpack.c.b16 %v2226, %v2224
  %v2253 = vpack.c.b16 %v2229, %v2227
  %v2254 = vpack.c.b16 %v2230, %v2228
  %v2255 = vpack.c.b16 %v2233, %v2231
  %v2256 = vpack.c.b16 %v2234, %v2232
  %v2257 = vpack.c.b16 %v2237, %v2235
  %v2258 = vpack.c.b16 %v2238, %v2236
  %v2259 = vpack.c.b16 %v2241, %v2239
  %v2260 = vpack.c.b16 %v2242, %v2240
  %v2261 = vpack.c.b16 %v2245, %v2243
  %v2262 = vpack.c.b16 %v2246, %v2244
  %2279 = vmatprep.subr.bf16.mxu0 %v2248
  %2280 = vmatpush1.bf16.msra.mxu0 %v2247
  %2281 = vmatprep.subr.bf16.mxu0 %v2250
  %2282 = vmatpush1.bf16.msra.mxu0 %v2249
  %2283 = vmatprep.subr.bf16.mxu0 %v2252
  %2284 = vmatpush1.bf16.msra.mxu0 %v2251
  %2285 = vmatprep.subr.bf16.mxu0 %v2254
  %2286 = vmatpush1.bf16.msra.mxu0 %v2253
  %2287 = vmatprep.subr.bf16.mxu0 %v2256
  %2288 = vmatpush1.bf16.msra.mxu0 %v2255
  %2289 = vmatprep.subr.bf16.mxu0 %v2258
  %2290 = vmatpush1.bf16.msra.mxu0 %v2257
  %2291 = vmatprep.subr.bf16.mxu0 %v2260
  %2292 = vmatpush1.bf16.msra.mxu0 %v2259
  %2293 = vmatprep.subr.bf16.mxu0 %v2262
  %2294 = vmatpush1.bf16.msra.mxu0 %v2261
  %2295 = vmatprep.subr.bf16.mxu0 0
  %2296 = vmatpush1.bf16.msra.mxu0 0
  %2297 = vmatprep.subr.bf16.mxu0 0
  %2298 = vmatpush1.bf16.msra.mxu0 0
  %2299 = vmatprep.subr.bf16.mxu0 0
  %2300 = vmatpush1.bf16.msra.mxu0 0
  %2301 = vmatprep.subr.bf16.mxu0 0
  %2302 = vmatpush1.bf16.msra.mxu0 0
  %2303 = vmatprep.subr.bf16.mxu0 0
  %2304 = vmatpush1.bf16.msra.mxu0 0
  %2305 = vmatprep.subr.bf16.mxu0 0
  %2306 = vmatpush1.bf16.msra.mxu0 0
  %2307 = vmatprep.subr.bf16.mxu0 0
  %2308 = vmatpush1.bf16.msra.mxu0 0
  %2309 = vmatprep.subr.bf16.mxu0 0
  %2310 = vmatpush1.bf16.msra.mxu0 0
  %2311 = vmatprep.mubr.bf16.mxu0 0
  %2312 = vmatmul.mubr.bf16.gmra.mrb[0].mxu0 %v2187
  %v2313 = vpop.f32.mrb[0].mxu0
  %v2314 = vadd.f32 0.0, %v2313
  %v2315 = vpop.f32.mrb[0].mxu0
  %v2316 = vadd.f32 0.0, %v2315
  %v2317 = vpop.f32.mrb[0].mxu0
  %v2318 = vadd.f32 0.0, %v2317
  %v2319 = vpop.f32.mrb[0].mxu0
  %v2320 = vadd.f32 0.0, %v2319
  %2321 = vmatprep.mubr.bf16.mxu0 0
  %2322 = vmatmul.mubr.bf16.gmra.mrb[0].mxu0 %v2188
  %v2323 = vpop.f32.mrb[0].mxu0
  %v2324 = vadd.f32 0.0, %v2323
  %v2325 = vpop.f32.mrb[0].mxu0
  %v2326 = vadd.f32 0.0, %v2325
  %v2327 = vpop.f32.mrb[0].mxu0
  %v2328 = vadd.f32 0.0, %v2327
  %v2329 = vpop.f32.mrb[0].mxu0
  %v2330 = vadd.f32 0.0, %v2329
  %2331 = vmatprep.mubr.bf16.mxu0 0
  %2332 = vmatmul.mubr.bf16.gmra.mrb[0].mxu0 %v2189
  %v2333 = vpop.f32.mrb[0].mxu0
  %v2334 = vadd.f32 0.0, %v2333
  %v2335 = vpop.f32.mrb[0].mxu0
  %v2336 = vadd.f32 0.0, %v2335
  %v2337 = vpop.f32.mrb[0].mxu0
  %v2338 = vadd.f32 0.0, %v2337
  %v2339 = vpop.f32.mrb[0].mxu0
  %v2340 = vadd.f32 0.0, %v2339
  %2341 = vmatprep.mubr.bf16.mxu0 0
  %2342 = vmatmul.mubr.bf16.gmra.mrb[0].mxu0 %v2190
  %v2343 = vpop.f32.mrb[0].mxu0
  %v2344 = vadd.f32 0.0, %v2343
  %v2345 = vpop.f32.mrb[0].mxu0
  %v2346 = vadd.f32 0.0, %v2345
  %v2347 = vpop.f32.mrb[0].mxu0
  %v2348 = vadd.f32 0.0, %v2347
  %v2349 = vpop.f32.mrb[0].mxu0
  %v2350 = vadd.f32 0.0, %v2349
  %2351 = vmatprep.mubr.bf16.mxu0 0
  %2352 = vmatmul.mubr.bf16.gmra.mrb[0].mxu0 %v2191
  %v2353 = vpop.f32.mrb[0].mxu0
  %v2354 = vadd.f32 0.0, %v2353
  %v2355 = vpop.f32.mrb[0].mxu0
  %v2356 = vadd.f32 0.0, %v2355
  %v2357 = vpop.f32.mrb[0].mxu0
  %v2358 = vadd.f32 0.0, %v2357
  %v2359 = vpop.f32.mrb[0].mxu0
  %v2360 = vadd.f32 0.0, %v2359
  %2361 = vmatprep.mubr.bf16.mxu0 0
  %2362 = vmatmul.mubr.bf16.gmra.mrb[0].mxu0 %v2192
  %v2363 = vpop.f32.mrb[0].mxu0
  %v2364 = vadd.f32 0.0, %v2363
  %v2365 = vpop.f32.mrb[0].mxu0
  %v2366 = vadd.f32 0.0, %v2365
  %v2367 = vpop.f32.mrb[0].mxu0
  %v2368 = vadd.f32 0.0, %v2367
  %v2369 = vpop.f32.mrb[0].mxu0
  %v2370 = vadd.f32 0.0, %v2369
  %2371 = vdwg.mxu0
  %v2372 = vpack.c.b16 %v2139, %v2138
  %v2373 = vpack.c.b16 %v2141, %v2140
  %v2374 = vpack.c.b16 %v2143, %v2142
  %v2375 = vpack.c.b16 %v2145, %v2144
  %v2376 = vpack.c.b16 %v2147, %v2146
  %v2377 = vpack.c.b16 %v2149, %v2148
  %v2400 = vunpack.c.l.b16 %v2154
  %v2401 = vunpack.c.h.b16 %v2154
  %v2402 = vunpack.c.l.b16 %v2155
  %v2403 = vunpack.c.h.b16 %v2155
  %v2404 = vunpack.c.l.b16 %v2156
  %v2405 = vunpack.c.h.b16 %v2156
  %v2406 = vunpack.c.l.b16 %v2157
  %v2407 = vunpack.c.h.b16 %v2157
  %v2408 = vunpack.c.l.b16 %v2158
  %v2409 = vunpack.c.h.b16 %v2158
  %v2410 = vunpack.c.l.b16 %v2159
  %v2411 = vunpack.c.h.b16 %v2159
  %v2412 = vunpack.c.l.b16 %v2160
  %v2413 = vunpack.c.h.b16 %v2160
  %v2414 = vunpack.c.l.b16 %v2161
  %v2415 = vunpack.c.h.b16 %v2161
  %v2416 = vunpack.c.l.b16 %v2162
  %v2417 = vunpack.c.h.b16 %v2162
  %v2418 = vunpack.c.l.b16 %v2163
  %v2419 = vunpack.c.h.b16 %v2163
  %v2420 = vunpack.c.l.b16 %v2164
  %v2421 = vunpack.c.h.b16 %v2164
  %v2422 = vunpack.c.l.b16 %v2165
  %v2423 = vunpack.c.h.b16 %v2165
  %v2424 = vunpack.c.l.b16 %v2166
  %v2425 = vunpack.c.h.b16 %v2166
  %v2426 = vunpack.c.l.b16 %v2167
  %v2427 = vunpack.c.h.b16 %v2167
  %v2428 = vunpack.c.l.b16 %v2168
  %v2429 = vunpack.c.h.b16 %v2168
  %v2430 = vunpack.c.l.b16 %v2169
  %v2431 = vunpack.c.h.b16 %v2169
  %v2432 = vpack.c.b16 %v2402, %v2400
  %v2433 = vpack.c.b16 %v2403, %v2401
  %v2434 = vpack.c.b16 %v2406, %v2404
  %v2435 = vpack.c.b16 %v2407, %v2405
  %v2436 = vpack.c.b16 %v2410, %v2408
  %v2437 = vpack.c.b16 %v2411, %v2409
  %v2438 = vpack.c.b16 %v2414, %v2412
  %v2439 = vpack.c.b16 %v2415, %v2413
  %v2440 = vpack.c.b16 %v2418, %v2416
  %v2441 = vpack.c.b16 %v2419, %v2417
  %v2442 = vpack.c.b16 %v2422, %v2420
  %v2443 = vpack.c.b16 %v2423, %v2421
  %v2444 = vpack.c.b16 %v2426, %v2424
  %v2445 = vpack.c.b16 %v2427, %v2425
  %v2446 = vpack.c.b16 %v2430, %v2428
  %v2447 = vpack.c.b16 %v2431, %v2429
  %2464 = vmatprep.subr.bf16.mxu0 %v2433
  %2465 = vmatpush1.bf16.msra.mxu0 %v2432
  %2466 = vmatprep.subr.bf16.mxu0 %v2435
  %2467 = vmatpush1.bf16.msra.mxu0 %v2434
  %2468 = vmatprep.subr.bf16.mxu0 %v2437
  %2469 = vmatpush1.bf16.msra.mxu0 %v2436
  %2470 = vmatprep.subr.bf16.mxu0 %v2439
  %2471 = vmatpush1.bf16.msra.mxu0 %v2438
  %2472 = vmatprep.subr.bf16.mxu0 %v2441
  %2473 = vmatpush1.bf16.msra.mxu0 %v2440
  %2474 = vmatprep.subr.bf16.mxu0 %v2443
  %2475 = vmatpush1.bf16.msra.mxu0 %v2442
  %2476 = vmatprep.subr.bf16.mxu0 %v2445
  %2477 = vmatpush1.bf16.msra.mxu0 %v2444
  %2478 = vmatprep.subr.bf16.mxu0 %v2447
  %2479 = vmatpush1.bf16.msra.mxu0 %v2446
  %2480 = vmatprep.subr.bf16.mxu0 0
  %2481 = vmatpush1.bf16.msra.mxu0 0
  %2482 = vmatprep.subr.bf16.mxu0 0
  %2483 = vmatpush1.bf16.msra.mxu0 0
  %2484 = vmatprep.subr.bf16.mxu0 0
  %2485 = vmatpush1.bf16.msra.mxu0 0
  %2486 = vmatprep.subr.bf16.mxu0 0
  %2487 = vmatpush1.bf16.msra.mxu0 0
  %2488 = vmatprep.subr.bf16.mxu0 0
  %2489 = vmatpush1.bf16.msra.mxu0 0
  %2490 = vmatprep.subr.bf16.mxu0 0
  %2491 = vmatpush1.bf16.msra.mxu0 0
  %2492 = vmatprep.subr.bf16.mxu0 0
  %2493 = vmatpush1.bf16.msra.mxu0 0
  %2494 = vmatprep.subr.bf16.mxu0 0
  %2495 = vmatpush1.bf16.msra.mxu0 0
  %2496 = vmatprep.mubr.bf16.mxu0 0
  %2497 = vmatmul.mubr.bf16.gmra.mrb[0].mxu0 %v2372
  %v2498 = vpop.f32.mrb[0].mxu0
  %v2499 = vadd.f32 %v2314, %v2498
  %v2500 = vpop.f32.mrb[0].mxu0
  %v2501 = vadd.f32 %v2316, %v2500
  %v2502 = vpop.f32.mrb[0].mxu0
  %v2503 = vadd.f32 %v2318, %v2502
  %v2504 = vpop.f32.mrb[0].mxu0
  %v2505 = vadd.f32 %v2320, %v2504
  %2506 = vmatprep.mubr.bf16.mxu0 0
  %2507 = vmatmul.mubr.bf16.gmra.mrb[0].mxu0 %v2373
  %v2508 = vpop.f32.mrb[0].mxu0
  %v2509 = vadd.f32 %v2324, %v2508
  %v2510 = vpop.f32.mrb[0].mxu0
  %v2511 = vadd.f32 %v2326, %v2510
  %v2512 = vpop.f32.mrb[0].mxu0
  %v2513 = vadd.f32 %v2328, %v2512
  %v2514 = vpop.f32.mrb[0].mxu0
  %v2515 = vadd.f32 %v2330, %v2514
  %2516 = vmatprep.mubr.bf16.mxu0 0
  %2517 = vmatmul.mubr.bf16.gmra.mrb[0].mxu0 %v2374
  %v2518 = vpop.f32.mrb[0].mxu0
  %v2519 = vadd.f32 %v2334, %v2518
  %v2520 = vpop.f32.mrb[0].mxu0
  %v2521 = vadd.f32 %v2336, %v2520
  %v2522 = vpop.f32.mrb[0].mxu0
  %v2523 = vadd.f32 %v2338, %v2522
  %v2524 = vpop.f32.mrb[0].mxu0
  %v2525 = vadd.f32 %v2340, %v2524
  %2526 = vmatprep.mubr.bf16.mxu0 0
  %2527 = vmatmul.mubr.bf16.gmra.mrb[0].mxu0 %v2375
  %v2528 = vpop.f32.mrb[0].mxu0
  %v2529 = vadd.f32 %v2344, %v2528
  %v2530 = vpop.f32.mrb[0].mxu0
  %v2531 = vadd.f32 %v2346, %v2530
  %v2532 = vpop.f32.mrb[0].mxu0
  %v2533 = vadd.f32 %v2348, %v2532
  %v2534 = vpop.f32.mrb[0].mxu0
  %v2535 = vadd.f32 %v2350, %v2534
  %2536 = vmatprep.mubr.bf16.mxu0 0
  %2537 = vmatmul.mubr.bf16.gmra.mrb[0].mxu0 %v2376
  %v2538 = vpop.f32.mrb[0].mxu0
  %v2539 = vadd.f32 %v2354, %v2538
  %v2540 = vpop.f32.mrb[0].mxu0
  %v2541 = vadd.f32 %v2356, %v2540
  %v2542 = vpop.f32.mrb[0].mxu0
  %v2543 = vadd.f32 %v2358, %v2542
  %v2544 = vpop.f32.mrb[0].mxu0
  %v2545 = vadd.f32 %v2360, %v2544
  %2546 = vmatprep.mubr.bf16.mxu0 0
  %2547 = vmatmul.mubr.bf16.gmra.mrb[0].mxu0 %v2377
  %v2548 = vpop.f32.mrb[0].mxu0
  %v2549 = vadd.f32 %v2364, %v2548
  %v2550 = vpop.f32.mrb[0].mxu0
  %v2551 = vadd.f32 %v2366, %v2550
  %v2552 = vpop.f32.mrb[0].mxu0
  %v2553 = vadd.f32 %v2368, %v2552
  %v2554 = vpop.f32.mrb[0].mxu0
  %v2555 = vadd.f32 %v2370, %v2554
  %2556 = vdwg.mxu0
  %s2557 = scalar_lea.vmem %s4, 256
  %v2558 = vld [vmem:[%s2557] sm:$0xff]
  %v2559 = vld [vmem:[%s2557 + $0x8] sm:$0xff]
  %v2560 = vld [vmem:[%s2557 + $0x10] sm:$0xff]
  %v2561 = vld [vmem:[%s2557 + $0x18] sm:$0xff]
  %v2562 = vld [vmem:[%s2557 + $0x20] sm:$0xff]
  %v2563 = vld [vmem:[%s2557 + $0x28] sm:$0xff]
  %v2564 = vld [vmem:[%s2557 + $0x30] sm:$0xff]
  %v2565 = vld [vmem:[%s2557 + $0x38] sm:$0xff]
  %v2566 = vld [vmem:[%s2557 + $0x40] sm:$0xff]
  %v2567 = vld [vmem:[%s2557 + $0x48] sm:$0xff]
  %v2568 = vld [vmem:[%s2557 + $0x50] sm:$0xff]
  %v2569 = vld [vmem:[%s2557 + $0x58] sm:$0xff]
  %v2570 = vld [vmem:[%s2557 + $0x60] sm:$0xff]
  %v2571 = vld [vmem:[%s2557 + $0x68] sm:$0xff]
  %v2572 = vld [vmem:[%s2557 + $0x70] sm:$0xff]
  %v2573 = vld [vmem:[%s2557 + $0x78] sm:$0xff]
  %v2574 = vpack.c.b16 %v2151, %v2150
  %v2592 = vunpack.c.l.b16 %v2558
  %v2593 = vunpack.c.h.b16 %v2558
  %v2594 = vunpack.c.l.b16 %v2559
  %v2595 = vunpack.c.h.b16 %v2559
  %v2596 = vunpack.c.l.b16 %v2560
  %v2597 = vunpack.c.h.b16 %v2560
  %v2598 = vunpack.c.l.b16 %v2561
  %v2599 = vunpack.c.h.b16 %v2561
  %v2600 = vunpack.c.l.b16 %v2562
  %v2601 = vunpack.c.h.b16 %v2562
  %v2602 = vunpack.c.l.b16 %v2563
  %v2603 = vunpack.c.h.b16 %v2563
  %v2604 = vunpack.c.l.b16 %v2564
  %v2605 = vunpack.c.h.b16 %v2564
  %v2606 = vunpack.c.l.b16 %v2565
  %v2607 = vunpack.c.h.b16 %v2565
  %v2608 = vunpack.c.l.b16 %v2566
  %v2609 = vunpack.c.h.b16 %v2566
  %v2610 = vunpack.c.l.b16 %v2567
  %v2611 = vunpack.c.h.b16 %v2567
  %v2612 = vunpack.c.l.b16 %v2568
  %v2613 = vunpack.c.h.b16 %v2568
  %v2614 = vunpack.c.l.b16 %v2569
  %v2615 = vunpack.c.h.b16 %v2569
  %v2616 = vunpack.c.l.b16 %v2570
  %v2617 = vunpack.c.h.b16 %v2570
  %v2618 = vunpack.c.l.b16 %v2571
  %v2619 = vunpack.c.h.b16 %v2571
  %v2620 = vunpack.c.l.b16 %v2572
  %v2621 = vunpack.c.h.b16 %v2572
  %v2622 = vunpack.c.l.b16 %v2573
  %v2623 = vunpack.c.h.b16 %v2573
  %v2624 = vpack.c.b16 %v2594, %v2592
  %v2625 = vpack.c.b16 %v2595, %v2593
  %v2626 = vpack.c.b16 %v2598, %v2596
  %v2627 = vpack.c.b16 %v2599, %v2597
  %v2628 = vpack.c.b16 %v2602, %v2600
  %v2629 = vpack.c.b16 %v2603, %v2601
  %v2630 = vpack.c.b16 %v2606, %v2604
  %v2631 = vpack.c.b16 %v2607, %v2605
  %v2632 = vpack.c.b16 %v2610, %v2608
  %v2633 = vpack.c.b16 %v2611, %v2609
  %v2634 = vpack.c.b16 %v2614, %v2612
  %v2635 = vpack.c.b16 %v2615, %v2613
  %v2636 = vpack.c.b16 %v2618, %v2616
  %v2637 = vpack.c.b16 %v2619, %v2617
  %v2638 = vpack.c.b16 %v2622, %v2620
  %v2639 = vpack.c.b16 %v2623, %v2621
  %2656 = vmatprep.subr.bf16.mxu0 %v2625
  %2657 = vmatpush1.bf16.msra.mxu0 %v2624
  %2658 = vmatprep.subr.bf16.mxu0 %v2627
  %2659 = vmatpush1.bf16.msra.mxu0 %v2626
  %2660 = vmatprep.subr.bf16.mxu0 %v2629
  %2661 = vmatpush1.bf16.msra.mxu0 %v2628
  %2662 = vmatprep.subr.bf16.mxu0 %v2631
  %2663 = vmatpush1.bf16.msra.mxu0 %v2630
  %2664 = vmatprep.subr.bf16.mxu0 %v2633
  %2665 = vmatpush1.bf16.msra.mxu0 %v2632
  %2666 = vmatprep.subr.bf16.mxu0 %v2635
  %2667 = vmatpush1.bf16.msra.mxu0 %v2634
  %2668 = vmatprep.subr.bf16.mxu0 %v2637
  %2669 = vmatpush1.bf16.msra.mxu0 %v2636
  %2670 = vmatprep.subr.bf16.mxu0 %v2639
  %2671 = vmatpush1.bf16.msra.mxu0 %v2638
  %2672 = vmatprep.subr.bf16.mxu0 0
  %2673 = vmatpush1.bf16.msra.mxu0 0
  %2674 = vmatprep.subr.bf16.mxu0 0
  %2675 = vmatpush1.bf16.msra.mxu0 0
  %2676 = vmatprep.subr.bf16.mxu0 0
  %2677 = vmatpush1.bf16.msra.mxu0 0
  %2678 = vmatprep.subr.bf16.mxu0 0
  %2679 = vmatpush1.bf16.msra.mxu0 0
  %2680 = vmatprep.subr.bf16.mxu0 0
  %2681 = vmatpush1.bf16.msra.mxu0 0
  %2682 = vmatprep.subr.bf16.mxu0 0
  %2683 = vmatpush1.bf16.msra.mxu0 0
  %2684 = vmatprep.subr.bf16.mxu0 0
  %2685 = vmatpush1.bf16.msra.mxu0 0
  %2686 = vmatprep.subr.bf16.mxu0 0
  %2687 = vmatpush1.bf16.msra.mxu0 0
  %2688 = vmatprep.mubr.bf16.mxu0 0
  %2689 = vmatmul.mubr.bf16.gmra.mrb[0].mxu0 %v2373
  %v2690 = vpop.f32.mrb[0].mxu0
  %v2691 = vadd.f32 0.0, %v2690
  %v2692 = vpop.f32.mrb[0].mxu0
  %v2693 = vadd.f32 0.0, %v2692
  %v2694 = vpop.f32.mrb[0].mxu0
  %v2695 = vadd.f32 0.0, %v2694
  %v2696 = vpop.f32.mrb[0].mxu0
  %v2697 = vadd.f32 0.0, %v2696
  %2698 = vmatprep.mubr.bf16.mxu0 0
  %2699 = vmatmul.mubr.bf16.gmra.mrb[0].mxu0 %v2374
  %v2700 = vpop.f32.mrb[0].mxu0
  %v2701 = vadd.f32 0.0, %v2700
  %v2702 = vpop.f32.mrb[0].mxu0
  %v2703 = vadd.f32 0.0, %v2702
  %v2704 = vpop.f32.mrb[0].mxu0
  %v2705 = vadd.f32 0.0, %v2704
  %v2706 = vpop.f32.mrb[0].mxu0
  %v2707 = vadd.f32 0.0, %v2706
  %2708 = vmatprep.mubr.bf16.mxu0 0
  %2709 = vmatmul.mubr.bf16.gmra.mrb[0].mxu0 %v2375
  %v2710 = vpop.f32.mrb[0].mxu0
  %v2711 = vadd.f32 0.0, %v2710
  %v2712 = vpop.f32.mrb[0].mxu0
  %v2713 = vadd.f32 0.0, %v2712
  %v2714 = vpop.f32.mrb[0].mxu0
  %v2715 = vadd.f32 0.0, %v2714
  %v2716 = vpop.f32.mrb[0].mxu0
  %v2717 = vadd.f32 0.0, %v2716
  %2718 = vmatprep.mubr.bf16.mxu0 0
  %2719 = vmatmul.mubr.bf16.gmra.mrb[0].mxu0 %v2376
  %v2720 = vpop.f32.mrb[0].mxu0
  %v2721 = vadd.f32 0.0, %v2720
  %v2722 = vpop.f32.mrb[0].mxu0
  %v2723 = vadd.f32 0.0, %v2722
  %v2724 = vpop.f32.mrb[0].mxu0
  %v2725 = vadd.f32 0.0, %v2724
  %v2726 = vpop.f32.mrb[0].mxu0
  %v2727 = vadd.f32 0.0, %v2726
  %2728 = vmatprep.mubr.bf16.mxu0 0
  %2729 = vmatmul.mubr.bf16.gmra.mrb[0].mxu0 %v2377
  %v2730 = vpop.f32.mrb[0].mxu0
  %v2731 = vadd.f32 0.0, %v2730
  %v2732 = vpop.f32.mrb[0].mxu0
  %v2733 = vadd.f32 0.0, %v2732
  %v2734 = vpop.f32.mrb[0].mxu0
  %v2735 = vadd.f32 0.0, %v2734
  %v2736 = vpop.f32.mrb[0].mxu0
  %v2737 = vadd.f32 0.0, %v2736
  %2738 = vmatprep.mubr.bf16.mxu0 0
  %2739 = vmatmul.mubr.bf16.gmra.mrb[0].mxu0 %v2574
  %v2740 = vpop.f32.mrb[0].mxu0
  %v2741 = vadd.f32 0.0, %v2740
  %v2742 = vpop.f32.mrb[0].mxu0
  %v2743 = vadd.f32 0.0, %v2742
  %v2744 = vpop.f32.mrb[0].mxu0
  %v2745 = vadd.f32 0.0, %v2744
  %v2746 = vpop.f32.mrb[0].mxu0
  %v2747 = vadd.f32 0.0, %v2746
  %2748 = vdwg.mxu0
  %v2749 = vadd.f32 %v2499, %v2691
  %v2750 = vadd.f32 %v2501, %v2693
  %v2751 = vadd.f32 %v2503, %v2695
  %v2752 = vadd.f32 %v2505, %v2697
  %v2753 = vadd.f32 %v2509, %v2701
  %v2754 = vadd.f32 %v2511, %v2703
  %v2755 = vadd.f32 %v2513, %v2705
  %v2756 = vadd.f32 %v2515, %v2707
  %v2757 = vadd.f32 %v2519, %v2711
  %v2758 = vadd.f32 %v2521, %v2713
  %v2759 = vadd.f32 %v2523, %v2715
  %v2760 = vadd.f32 %v2525, %v2717
  %v2761 = vadd.f32 %v2529, %v2721
  %v2762 = vadd.f32 %v2531, %v2723
  %v2763 = vadd.f32 %v2533, %v2725
  %v2764 = vadd.f32 %v2535, %v2727
  %v2765 = vadd.f32 %v2539, %v2731
  %v2766 = vadd.f32 %v2541, %v2733
  %v2767 = vadd.f32 %v2543, %v2735
  %v2768 = vadd.f32 %v2545, %v2737
  %v2769 = vadd.f32 %v2549, %v2741
  %v2770 = vadd.f32 %v2551, %v2743
  %v2771 = vadd.f32 %v2553, %v2745
  %v2772 = vadd.f32 %v2555, %v2747
  %s2773 = scalar_lea.vmem %s4, 384
  %v2774 = vld [vmem:[%s2773] sm:$0xff]
  %v2775 = vld [vmem:[%s2773 + $0x8] sm:$0xff]
  %v2776 = vld [vmem:[%s2773 + $0x10] sm:$0xff]
  %v2777 = vld [vmem:[%s2773 + $0x18] sm:$0xff]
  %v2778 = vld [vmem:[%s2773 + $0x20] sm:$0xff]
  %v2779 = vld [vmem:[%s2773 + $0x28] sm:$0xff]
  %v2780 = vld [vmem:[%s2773 + $0x30] sm:$0xff]
  %v2781 = vld [vmem:[%s2773 + $0x38] sm:$0xff]
  %v2782 = vld [vmem:[%s2773 + $0x40] sm:$0xff]
  %v2783 = vld [vmem:[%s2773 + $0x48] sm:$0xff]
  %v2784 = vld [vmem:[%s2773 + $0x50] sm:$0xff]
  %v2785 = vld [vmem:[%s2773 + $0x58] sm:$0xff]
  %v2786 = vld [vmem:[%s2773 + $0x60] sm:$0xff]
  %v2787 = vld [vmem:[%s2773 + $0x68] sm:$0xff]
  %v2788 = vld [vmem:[%s2773 + $0x70] sm:$0xff]
  %v2789 = vld [vmem:[%s2773 + $0x78] sm:$0xff]
  %v2790 = vpack.c.b16 %v2152, %v2151
  %v2808 = vunpack.c.l.b16 %v2774
  %v2809 = vunpack.c.h.b16 %v2774
  %v2810 = vunpack.c.l.b16 %v2775
  %v2811 = vunpack.c.h.b16 %v2775
  %v2812 = vunpack.c.l.b16 %v2776
  %v2813 = vunpack.c.h.b16 %v2776
  %v2814 = vunpack.c.l.b16 %v2777
  %v2815 = vunpack.c.h.b16 %v2777
  %v2816 = vunpack.c.l.b16 %v2778
  %v2817 = vunpack.c.h.b16 %v2778
  %v2818 = vunpack.c.l.b16 %v2779
  %v2819 = vunpack.c.h.b16 %v2779
  %v2820 = vunpack.c.l.b16 %v2780
  %v2821 = vunpack.c.h.b16 %v2780
  %v2822 = vunpack.c.l.b16 %v2781
  %v2823 = vunpack.c.h.b16 %v2781
  %v2824 = vunpack.c.l.b16 %v2782
  %v2825 = vunpack.c.h.b16 %v2782
  %v2826 = vunpack.c.l.b16 %v2783
  %v2827 = vunpack.c.h.b16 %v2783
  %v2828 = vunpack.c.l.b16 %v2784
  %v2829 = vunpack.c.h.b16 %v2784
  %v2830 = vunpack.c.l.b16 %v2785
  %v2831 = vunpack.c.h.b16 %v2785
  %v2832 = vunpack.c.l.b16 %v2786
  %v2833 = vunpack.c.h.b16 %v2786
  %v2834 = vunpack.c.l.b16 %v2787
  %v2835 = vunpack.c.h.b16 %v2787
  %v2836 = vunpack.c.l.b16 %v2788
  %v2837 = vunpack.c.h.b16 %v2788
  %v2838 = vunpack.c.l.b16 %v2789
  %v2839 = vunpack.c.h.b16 %v2789
  %v2840 = vpack.c.b16 %v2810, %v2808
  %v2841 = vpack.c.b16 %v2811, %v2809
  %v2842 = vpack.c.b16 %v2814, %v2812
  %v2843 = vpack.c.b16 %v2815, %v2813
  %v2844 = vpack.c.b16 %v2818, %v2816
  %v2845 = vpack.c.b16 %v2819, %v2817
  %v2846 = vpack.c.b16 %v2822, %v2820
  %v2847 = vpack.c.b16 %v2823, %v2821
  %v2848 = vpack.c.b16 %v2826, %v2824
  %v2849 = vpack.c.b16 %v2827, %v2825
  %v2850 = vpack.c.b16 %v2830, %v2828
  %v2851 = vpack.c.b16 %v2831, %v2829
  %v2852 = vpack.c.b16 %v2834, %v2832
  %v2853 = vpack.c.b16 %v2835, %v2833
  %v2854 = vpack.c.b16 %v2838, %v2836
  %v2855 = vpack.c.b16 %v2839, %v2837
  %2872 = vmatprep.subr.bf16.mxu0 %v2841
  %2873 = vmatpush1.bf16.msra.mxu0 %v2840
  %2874 = vmatprep.subr.bf16.mxu0 %v2843
  %2875 = vmatpush1.bf16.msra.mxu0 %v2842
  %2876 = vmatprep.subr.bf16.mxu0 %v2845
  %2877 = vmatpush1.bf16.msra.mxu0 %v2844
  %2878 = vmatprep.subr.bf16.mxu0 %v2847
  %2879 = vmatpush1.bf16.msra.mxu0 %v2846
  %2880 = vmatprep.subr.bf16.mxu0 %v2849
  %2881 = vmatpush1.bf16.msra.mxu0 %v2848
  %2882 = vmatprep.subr.bf16.mxu0 %v2851
  %2883 = vmatpush1.bf16.msra.mxu0 %v2850
  %2884 = vmatprep.subr.bf16.mxu0 %v2853
  %2885 = vmatpush1.bf16.msra.mxu0 %v2852
  %2886 = vmatprep.subr.bf16.mxu0 %v2855
  %2887 = vmatpush1.bf16.msra.mxu0 %v2854
  %2888 = vmatprep.subr.bf16.mxu0 0
  %2889 = vmatpush1.bf16.msra.mxu0 0
  %2890 = vmatprep.subr.bf16.mxu0 0
  %2891 = vmatpush1.bf16.msra.mxu0 0
  %2892 = vmatprep.subr.bf16.mxu0 0
  %2893 = vmatpush1.bf16.msra.mxu0 0
  %2894 = vmatprep.subr.bf16.mxu0 0
  %2895 = vmatpush1.bf16.msra.mxu0 0
  %2896 = vmatprep.subr.bf16.mxu0 0
  %2897 = vmatpush1.bf16.msra.mxu0 0
  %2898 = vmatprep.subr.bf16.mxu0 0
  %2899 = vmatpush1.bf16.msra.mxu0 0
  %2900 = vmatprep.subr.bf16.mxu0 0
  %2901 = vmatpush1.bf16.msra.mxu0 0
  %2902 = vmatprep.subr.bf16.mxu0 0
  %2903 = vmatpush1.bf16.msra.mxu0 0
  %2904 = vmatprep.mubr.bf16.mxu0 0
  %2905 = vmatmul.mubr.bf16.gmra.mrb[0].mxu0 %v2188
  %v2906 = vpop.f32.mrb[0].mxu0
  %v2907 = vadd.f32 0.0, %v2906
  %v2908 = vpop.f32.mrb[0].mxu0
  %v2909 = vadd.f32 0.0, %v2908
  %v2910 = vpop.f32.mrb[0].mxu0
  %v2911 = vadd.f32 0.0, %v2910
  %v2912 = vpop.f32.mrb[0].mxu0
  %v2913 = vadd.f32 0.0, %v2912
  %2914 = vmatprep.mubr.bf16.mxu0 0
  %2915 = vmatmul.mubr.bf16.gmra.mrb[0].mxu0 %v2189
  %v2916 = vpop.f32.mrb[0].mxu0
  %v2917 = vadd.f32 0.0, %v2916
  %v2918 = vpop.f32.mrb[0].mxu0
  %v2919 = vadd.f32 0.0, %v2918
  %v2920 = vpop.f32.mrb[0].mxu0
  %v2921 = vadd.f32 0.0, %v2920
  %v2922 = vpop.f32.mrb[0].mxu0
  %v2923 = vadd.f32 0.0, %v2922
  %2924 = vmatprep.mubr.bf16.mxu0 0
  %2925 = vmatmul.mubr.bf16.gmra.mrb[0].mxu0 %v2190
  %v2926 = vpop.f32.mrb[0].mxu0
  %v2927 = vadd.f32 0.0, %v2926
  %v2928 = vpop.f32.mrb[0].mxu0
  %v2929 = vadd.f32 0.0, %v2928
  %v2930 = vpop.f32.mrb[0].mxu0
  %v2931 = vadd.f32 0.0, %v2930
  %v2932 = vpop.f32.mrb[0].mxu0
  %v2933 = vadd.f32 0.0, %v2932
  %2934 = vmatprep.mubr.bf16.mxu0 0
  %2935 = vmatmul.mubr.bf16.gmra.mrb[0].mxu0 %v2191
  %v2936 = vpop.f32.mrb[0].mxu0
  %v2937 = vadd.f32 0.0, %v2936
  %v2938 = vpop.f32.mrb[0].mxu0
  %v2939 = vadd.f32 0.0, %v2938
  %v2940 = vpop.f32.mrb[0].mxu0
  %v2941 = vadd.f32 0.0, %v2940
  %v2942 = vpop.f32.mrb[0].mxu0
  %v2943 = vadd.f32 0.0, %v2942
  %2944 = vmatprep.mubr.bf16.mxu0 0
  %2945 = vmatmul.mubr.bf16.gmra.mrb[0].mxu0 %v2192
  %v2946 = vpop.f32.mrb[0].mxu0
  %v2947 = vadd.f32 0.0, %v2946
  %v2948 = vpop.f32.mrb[0].mxu0
  %v2949 = vadd.f32 0.0, %v2948
  %v2950 = vpop.f32.mrb[0].mxu0
  %v2951 = vadd.f32 0.0, %v2950
  %v2952 = vpop.f32.mrb[0].mxu0
  %v2953 = vadd.f32 0.0, %v2952
  %2954 = vmatprep.mubr.bf16.mxu0 0
  %2955 = vmatmul.mubr.bf16.gmra.mrb[0].mxu0 %v2790
  %v2956 = vpop.f32.mrb[0].mxu0
  %v2957 = vadd.f32 0.0, %v2956
  %v2958 = vpop.f32.mrb[0].mxu0
  %v2959 = vadd.f32 0.0, %v2958
  %v2960 = vpop.f32.mrb[0].mxu0
  %v2961 = vadd.f32 0.0, %v2960
  %v2962 = vpop.f32.mrb[0].mxu0
  %v2963 = vadd.f32 0.0, %v2962
  %2964 = vdwg.mxu0
  %v2965 = vadd.f32 %v2749, %v2907
  %v2966 = vadd.f32 %v2750, %v2909
  %v2967 = vadd.f32 %v2751, %v2911
  %v2968 = vadd.f32 %v2752, %v2913
  %v2969 = vadd.f32 %v2753, %v2917
  %v2970 = vadd.f32 %v2754, %v2919
  %v2971 = vadd.f32 %v2755, %v2921
  %v2972 = vadd.f32 %v2756, %v2923
  %v2973 = vadd.f32 %v2757, %v2927
  %v2974 = vadd.f32 %v2758, %v2929
  %v2975 = vadd.f32 %v2759, %v2931
  %v2976 = vadd.f32 %v2760, %v2933
  %v2977 = vadd.f32 %v2761, %v2937
  %v2978 = vadd.f32 %v2762, %v2939
  %v2979 = vadd.f32 %v2763, %v2941
  %v2980 = vadd.f32 %v2764, %v2943
  %v2981 = vadd.f32 %v2765, %v2947
  %v2982 = vadd.f32 %v2766, %v2949
  %v2983 = vadd.f32 %v2767, %v2951
  %v2984 = vadd.f32 %v2768, %v2953
  %v2985 = vadd.f32 %v2769, %v2957
  %v2986 = vadd.f32 %v2770, %v2959
  %v2987 = vadd.f32 %v2771, %v2961
  %v2988 = vadd.f32 %v2772, %v2963
  %s2989 = scalar_lea.vmem %s4, 512
  %v2990 = vld [vmem:[%s2989] sm:$0xff]
  %v2991 = vld [vmem:[%s2989 + $0x8] sm:$0xff]
  %v2992 = vld [vmem:[%s2989 + $0x10] sm:$0xff]
  %v2993 = vld [vmem:[%s2989 + $0x18] sm:$0xff]
  %v2994 = vld [vmem:[%s2989 + $0x20] sm:$0xff]
  %v2995 = vld [vmem:[%s2989 + $0x28] sm:$0xff]
  %v2996 = vld [vmem:[%s2989 + $0x30] sm:$0xff]
  %v2997 = vld [vmem:[%s2989 + $0x38] sm:$0xff]
  %v2998 = vld [vmem:[%s2989 + $0x40] sm:$0xff]
  %v2999 = vld [vmem:[%s2989 + $0x48] sm:$0xff]
  %v3000 = vld [vmem:[%s2989 + $0x50] sm:$0xff]
  %v3001 = vld [vmem:[%s2989 + $0x58] sm:$0xff]
  %v3002 = vld [vmem:[%s2989 + $0x60] sm:$0xff]
  %v3003 = vld [vmem:[%s2989 + $0x68] sm:$0xff]
  %v3004 = vld [vmem:[%s2989 + $0x70] sm:$0xff]
  %v3005 = vld [vmem:[%s2989 + $0x78] sm:$0xff]
  %v3006 = vpack.c.b16 %v2153, %v2152
  %v3024 = vunpack.c.l.b16 %v2990
  %v3025 = vunpack.c.h.b16 %v2990
  %v3026 = vunpack.c.l.b16 %v2991
  %v3027 = vunpack.c.h.b16 %v2991
  %v3028 = vunpack.c.l.b16 %v2992
  %v3029 = vunpack.c.h.b16 %v2992
  %v3030 = vunpack.c.l.b16 %v2993
  %v3031 = vunpack.c.h.b16 %v2993
  %v3032 = vunpack.c.l.b16 %v2994
  %v3033 = vunpack.c.h.b16 %v2994
  %v3034 = vunpack.c.l.b16 %v2995
  %v3035 = vunpack.c.h.b16 %v2995
  %v3036 = vunpack.c.l.b16 %v2996
  %v3037 = vunpack.c.h.b16 %v2996
  %v3038 = vunpack.c.l.b16 %v2997
  %v3039 = vunpack.c.h.b16 %v2997
  %v3040 = vunpack.c.l.b16 %v2998
  %v3041 = vunpack.c.h.b16 %v2998
  %v3042 = vunpack.c.l.b16 %v2999
  %v3043 = vunpack.c.h.b16 %v2999
  %v3044 = vunpack.c.l.b16 %v3000
  %v3045 = vunpack.c.h.b16 %v3000
  %v3046 = vunpack.c.l.b16 %v3001
  %v3047 = vunpack.c.h.b16 %v3001
  %v3048 = vunpack.c.l.b16 %v3002
  %v3049 = vunpack.c.h.b16 %v3002
  %v3050 = vunpack.c.l.b16 %v3003
  %v3051 = vunpack.c.h.b16 %v3003
  %v3052 = vunpack.c.l.b16 %v3004
  %v3053 = vunpack.c.h.b16 %v3004
  %v3054 = vunpack.c.l.b16 %v3005
  %v3055 = vunpack.c.h.b16 %v3005
  %v3056 = vpack.c.b16 %v3026, %v3024
  %v3057 = vpack.c.b16 %v3027, %v3025
  %v3058 = vpack.c.b16 %v3030, %v3028
  %v3059 = vpack.c.b16 %v3031, %v3029
  %v3060 = vpack.c.b16 %v3034, %v3032
  %v3061 = vpack.c.b16 %v3035, %v3033
  %v3062 = vpack.c.b16 %v3038, %v3036
  %v3063 = vpack.c.b16 %v3039, %v3037
  %v3064 = vpack.c.b16 %v3042, %v3040
  %v3065 = vpack.c.b16 %v3043, %v3041
  %v3066 = vpack.c.b16 %v3046, %v3044
  %v3067 = vpack.c.b16 %v3047, %v3045
  %v3068 = vpack.c.b16 %v3050, %v3048
  %v3069 = vpack.c.b16 %v3051, %v3049
  %v3070 = vpack.c.b16 %v3054, %v3052
  %v3071 = vpack.c.b16 %v3055, %v3053
  %3088 = vmatprep.subr.bf16.mxu0 %v3057
  %3089 = vmatpush1.bf16.msra.mxu0 %v3056
  %3090 = vmatprep.subr.bf16.mxu0 %v3059
  %3091 = vmatpush1.bf16.msra.mxu0 %v3058
  %3092 = vmatprep.subr.bf16.mxu0 %v3061
  %3093 = vmatpush1.bf16.msra.mxu0 %v3060
  %3094 = vmatprep.subr.bf16.mxu0 %v3063
  %3095 = vmatpush1.bf16.msra.mxu0 %v3062
  %3096 = vmatprep.subr.bf16.mxu0 %v3065
  %3097 = vmatpush1.bf16.msra.mxu0 %v3064
  %3098 = vmatprep.subr.bf16.mxu0 %v3067
  %3099 = vmatpush1.bf16.msra.mxu0 %v3066
  %3100 = vmatprep.subr.bf16.mxu0 %v3069
  %3101 = vmatpush1.bf16.msra.mxu0 %v3068
  %3102 = vmatprep.subr.bf16.mxu0 %v3071
  %3103 = vmatpush1.bf16.msra.mxu0 %v3070
  %3104 = vmatprep.subr.bf16.mxu0 0
  %3105 = vmatpush1.bf16.msra.mxu0 0
  %3106 = vmatprep.subr.bf16.mxu0 0
  %3107 = vmatpush1.bf16.msra.mxu0 0
  %3108 = vmatprep.subr.bf16.mxu0 0
  %3109 = vmatpush1.bf16.msra.mxu0 0
  %3110 = vmatprep.subr.bf16.mxu0 0
  %3111 = vmatpush1.bf16.msra.mxu0 0
  %3112 = vmatprep.subr.bf16.mxu0 0
  %3113 = vmatpush1.bf16.msra.mxu0 0
  %3114 = vmatprep.subr.bf16.mxu0 0
  %3115 = vmatpush1.bf16.msra.mxu0 0
  %3116 = vmatprep.subr.bf16.mxu0 0
  %3117 = vmatpush1.bf16.msra.mxu0 0
  %3118 = vmatprep.subr.bf16.mxu0 0
  %3119 = vmatpush1.bf16.msra.mxu0 0
  %3120 = vmatprep.mubr.bf16.mxu0 0
  %3121 = vmatmul.mubr.bf16.gmra.mrb[0].mxu0 %v2374
  %v3122 = vpop.f32.mrb[0].mxu0
  %v3123 = vadd.f32 0.0, %v3122
  %v3124 = vpop.f32.mrb[0].mxu0
  %v3125 = vadd.f32 0.0, %v3124
  %v3126 = vpop.f32.mrb[0].mxu0
  %v3127 = vadd.f32 0.0, %v3126
  %v3128 = vpop.f32.mrb[0].mxu0
  %v3129 = vadd.f32 0.0, %v3128
  %3130 = vmatprep.mubr.bf16.mxu0 0
  %3131 = vmatmul.mubr.bf16.gmra.mrb[0].mxu0 %v2375
  %v3132 = vpop.f32.mrb[0].mxu0
  %v3133 = vadd.f32 0.0, %v3132
  %v3134 = vpop.f32.mrb[0].mxu0
  %v3135 = vadd.f32 0.0, %v3134
  %v3136 = vpop.f32.mrb[0].mxu0
  %v3137 = vadd.f32 0.0, %v3136
  %v3138 = vpop.f32.mrb[0].mxu0
  %v3139 = vadd.f32 0.0, %v3138
  %3140 = vmatprep.mubr.bf16.mxu0 0
  %3141 = vmatmul.mubr.bf16.gmra.mrb[0].mxu0 %v2376
  %v3142 = vpop.f32.mrb[0].mxu0
  %v3143 = vadd.f32 0.0, %v3142
  %v3144 = vpop.f32.mrb[0].mxu0
  %v3145 = vadd.f32 0.0, %v3144
  %v3146 = vpop.f32.mrb[0].mxu0
  %v3147 = vadd.f32 0.0, %v3146
  %v3148 = vpop.f32.mrb[0].mxu0
  %v3149 = vadd.f32 0.0, %v3148
  %3150 = vmatprep.mubr.bf16.mxu0 0
  %3151 = vmatmul.mubr.bf16.gmra.mrb[0].mxu0 %v2377
  %v3152 = vpop.f32.mrb[0].mxu0
  %v3153 = vadd.f32 0.0, %v3152
  %v3154 = vpop.f32.mrb[0].mxu0
  %v3155 = vadd.f32 0.0, %v3154
  %v3156 = vpop.f32.mrb[0].mxu0
  %v3157 = vadd.f32 0.0, %v3156
  %v3158 = vpop.f32.mrb[0].mxu0
  %v3159 = vadd.f32 0.0, %v3158
  %3160 = vmatprep.mubr.bf16.mxu0 0
  %3161 = vmatmul.mubr.bf16.gmra.mrb[0].mxu0 %v2574
  %v3162 = vpop.f32.mrb[0].mxu0
  %v3163 = vadd.f32 0.0, %v3162
  %v3164 = vpop.f32.mrb[0].mxu0
  %v3165 = vadd.f32 0.0, %v3164
  %v3166 = vpop.f32.mrb[0].mxu0
  %v3167 = vadd.f32 0.0, %v3166
  %v3168 = vpop.f32.mrb[0].mxu0
  %v3169 = vadd.f32 0.0, %v3168
  %3170 = vmatprep.mubr.bf16.mxu0 0
  %3171 = vmatmul.mubr.bf16.gmra.mrb[0].mxu0 %v3006
  %v3172 = vpop.f32.mrb[0].mxu0
  %v3173 = vadd.f32 0.0, %v3172
  %v3174 = vpop.f32.mrb[0].mxu0
  %v3175 = vadd.f32 0.0, %v3174
  %v3176 = vpop.f32.mrb[0].mxu0
  %v3177 = vadd.f32 0.0, %v3176
  %v3178 = vpop.f32.mrb[0].mxu0
  %v3179 = vadd.f32 0.0, %v3178
  %3180 = vdwg.mxu0
  %v3181 = vadd.f32 %v2965, %v3123
  %v3182 = vadd.f32 %v2966, %v3125
  %v3183 = vadd.f32 %v2967, %v3127
  %v3184 = vadd.f32 %v2968, %v3129
  %v3185 = vadd.f32 %v2969, %v3133
  %v3186 = vadd.f32 %v2970, %v3135
  %v3187 = vadd.f32 %v2971, %v3137
  %v3188 = vadd.f32 %v2972, %v3139
  %v3189 = vadd.f32 %v2973, %v3143
  %v3190 = vadd.f32 %v2974, %v3145
  %v3191 = vadd.f32 %v2975, %v3147
  %v3192 = vadd.f32 %v2976, %v3149
  %v3193 = vadd.f32 %v2977, %v3153
  %v3194 = vadd.f32 %v2978, %v3155
  %v3195 = vadd.f32 %v2979, %v3157
  %v3196 = vadd.f32 %v2980, %v3159
  %v3197 = vadd.f32 %v2981, %v3163
  %v3198 = vadd.f32 %v2982, %v3165
  %v3199 = vadd.f32 %v2983, %v3167
  %v3200 = vadd.f32 %v2984, %v3169
  %v3201 = vadd.f32 %v2985, %v3173
  %v3202 = vadd.f32 %v2986, %v3175
  %v3203 = vadd.f32 %v2987, %v3177
  %v3204 = vadd.f32 %v2988, %v3179
  %v3205 = vld [vmem:[%s5] sm:$0x3]
  %v3207 = vlaneseq
  %v3208 = vshrl.u32 %v3207, 7
  %v3209 = vsub.s32 0, %v3208
  %v3210 = vrot.slane %v3205, %v3209
  %v3211 = vlaneseq
  %v3212 = vshrl.u32 %v3211, 7
  %v3213 = vsub.s32 1, %v3212
  %v3214 = vrot.slane %v3205, %v3213
  %v3217 = vadd.f32 %v3181, %v3210
  %v3218 = vadd.f32 %v3182, %v3214
  %v3219 = vadd.f32 %v3183, %v3210
  %v3220 = vadd.f32 %v3184, %v3214
  %v3221 = vadd.f32 %v3185, %v3210
  %v3222 = vadd.f32 %v3186, %v3214
  %v3223 = vadd.f32 %v3187, %v3210
  %v3224 = vadd.f32 %v3188, %v3214
  %v3225 = vadd.f32 %v3189, %v3210
  %v3226 = vadd.f32 %v3190, %v3214
  %v3227 = vadd.f32 %v3191, %v3210
  %v3228 = vadd.f32 %v3192, %v3214
  %v3229 = vadd.f32 %v3193, %v3210
  %v3230 = vadd.f32 %v3194, %v3214
  %v3231 = vadd.f32 %v3195, %v3210
  %v3232 = vadd.f32 %v3196, %v3214
  %v3233 = vadd.f32 %v3197, %v3210
  %v3234 = vadd.f32 %v3198, %v3214
  %v3235 = vadd.f32 %v3199, %v3210
  %v3236 = vadd.f32 %v3200, %v3214
  %v3237 = vadd.f32 %v3201, %v3210
  %v3238 = vadd.f32 %v3202, %v3214
  %v3239 = vadd.f32 %v3203, %v3210
  %v3240 = vadd.f32 %v3204, %v3214
  %v3241 = vmax.f32 %v3217, 0.0
  %v3242 = vmax.f32 %v3218, 0.0
  %v3243 = vmax.f32 %v3219, 0.0
  %v3244 = vmax.f32 %v3220, 0.0
  %v3245 = vmax.f32 %v3221, 0.0
  %v3246 = vmax.f32 %v3222, 0.0
  %v3247 = vmax.f32 %v3223, 0.0
  %v3248 = vmax.f32 %v3224, 0.0
  %v3249 = vmax.f32 %v3225, 0.0
  %v3250 = vmax.f32 %v3226, 0.0
  %v3251 = vmax.f32 %v3227, 0.0
  %v3252 = vmax.f32 %v3228, 0.0
  %v3253 = vmax.f32 %v3229, 0.0
  %v3254 = vmax.f32 %v3230, 0.0
  %v3255 = vmax.f32 %v3231, 0.0
  %v3256 = vmax.f32 %v3232, 0.0
  %v3257 = vmax.f32 %v3233, 0.0
  %v3258 = vmax.f32 %v3234, 0.0
  %v3259 = vmax.f32 %v3235, 0.0
  %v3260 = vmax.f32 %v3236, 0.0
  %v3261 = vmax.f32 %v3237, 0.0
  %v3262 = vmax.f32 %v3238, 0.0
  %v3263 = vmax.f32 %v3239, 0.0
  %v3264 = vmax.f32 %v3240, 0.0
  %v3265 = vmax.f32 %v3241, %v3243
  %v3266 = vmax.f32 %v3242, %v3244
  %v3267 = vmax.f32 %v3245, %v3247
  %v3268 = vmax.f32 %v3246, %v3248
  %v3269 = vmax.f32 %v3249, %v3251
  %v3270 = vmax.f32 %v3250, %v3252
  %v3271 = vmax.f32 %v3253, %v3255
  %v3272 = vmax.f32 %v3254, %v3256
  %v3273 = vmax.f32 %v3257, %v3259
  %v3274 = vmax.f32 %v3258, %v3260
  %v3275 = vmax.f32 %v3261, %v3263
  %v3276 = vmax.f32 %v3262, %v3264
  %v3277 = vpack.c.bf16 %v3267, %v3265
  %v3278 = vpack.c.bf16 %v3268, %v3266
  %v3279 = vpack.c.bf16 %v3271, %v3269
  %v3280 = vpack.c.bf16 %v3272, %v3270
  %v3281 = vpack.c.bf16 %v3275, %v3273
  %v3282 = vpack.c.bf16 %v3276, %v3274
  %v3283 = vld [vmem:[%s6] sm:$0xff]
  %v3284 = vld [vmem:[%s6 + $0x8] sm:$0xff]
  %v3285 = vld [vmem:[%s6 + $0x10] sm:$0xff]
  %v3286 = vld [vmem:[%s6 + $0x18] sm:$0xff]
  %v3287 = vld [vmem:[%s6 + $0x20] sm:$0xff]
  %v3288 = vld [vmem:[%s6 + $0x28] sm:$0xff]
  %v3289 = vld [vmem:[%s6 + $0x30] sm:$0xff]
  %v3290 = vld [vmem:[%s6 + $0x38] sm:$0xff]
  %v3291 = vld [vmem:[%s6 + $0x40] sm:$0xff]
  %v3292 = vld [vmem:[%s6 + $0x48] sm:$0xff]
  %v3293 = vld [vmem:[%s6 + $0x50] sm:$0xff]
  %v3294 = vld [vmem:[%s6 + $0x58] sm:$0xff]
  %v3295 = vld [vmem:[%s6 + $0x60] sm:$0xff]
  %v3296 = vld [vmem:[%s6 + $0x68] sm:$0xff]
  %v3297 = vld [vmem:[%s6 + $0x70] sm:$0xff]
  %v3298 = vld [vmem:[%s6 + $0x78] sm:$0xff]
  %v3299 = vld [vmem:[%s6 + $0x80] sm:$0xff]
  %v3300 = vld [vmem:[%s6 + $0x88] sm:$0xff]
  %v3301 = vld [vmem:[%s6 + $0x90] sm:$0xff]
  %v3302 = vld [vmem:[%s6 + $0x98] sm:$0xff]
  %v3303 = vld [vmem:[%s6 + $0xa0] sm:$0xff]
  %v3304 = vld [vmem:[%s6 + $0xa8] sm:$0xff]
  %v3305 = vld [vmem:[%s6 + $0xb0] sm:$0xff]
  %v3306 = vld [vmem:[%s6 + $0xb8] sm:$0xff]
  %v3331 = vunpack.c.l.b16 %v3283
  %v3332 = vunpack.c.h.b16 %v3283
  %v3333 = vunpack.c.l.b16 %v3284
  %v3334 = vunpack.c.h.b16 %v3284
  %v3335 = vunpack.c.l.b16 %v3285
  %v3336 = vunpack.c.h.b16 %v3285
  %v3337 = vunpack.c.l.b16 %v3286
  %v3338 = vunpack.c.h.b16 %v3286
  %v3339 = vunpack.c.l.b16 %v3287
  %v3340 = vunpack.c.h.b16 %v3287
  %v3341 = vunpack.c.l.b16 %v3288
  %v3342 = vunpack.c.h.b16 %v3288
  %v3343 = vunpack.c.l.b16 %v3289
  %v3344 = vunpack.c.h.b16 %v3289
  %v3345 = vunpack.c.l.b16 %v3290
  %v3346 = vunpack.c.h.b16 %v3290
  %v3347 = vunpack.c.l.b16 %v3291
  %v3348 = vunpack.c.h.b16 %v3291
  %v3349 = vunpack.c.l.b16 %v3292
  %v3350 = vunpack.c.h.b16 %v3292
  %v3351 = vunpack.c.l.b16 %v3293
  %v3352 = vunpack.c.h.b16 %v3293
  %v3353 = vunpack.c.l.b16 %v3294
  %v3354 = vunpack.c.h.b16 %v3294
  %v3355 = vunpack.c.l.b16 %v3295
  %v3356 = vunpack.c.h.b16 %v3295
  %v3357 = vunpack.c.l.b16 %v3296
  %v3358 = vunpack.c.h.b16 %v3296
  %v3359 = vunpack.c.l.b16 %v3297
  %v3360 = vunpack.c.h.b16 %v3297
  %v3361 = vunpack.c.l.b16 %v3298
  %v3362 = vunpack.c.h.b16 %v3298
  %v3363 = vunpack.c.l.b16 %v3299
  %v3364 = vunpack.c.h.b16 %v3299
  %v3365 = vunpack.c.l.b16 %v3300
  %v3366 = vunpack.c.h.b16 %v3300
  %v3367 = vunpack.c.l.b16 %v3301
  %v3368 = vunpack.c.h.b16 %v3301
  %v3369 = vunpack.c.l.b16 %v3302
  %v3370 = vunpack.c.h.b16 %v3302
  %v3371 = vunpack.c.l.b16 %v3303
  %v3372 = vunpack.c.h.b16 %v3303
  %v3373 = vunpack.c.l.b16 %v3304
  %v3374 = vunpack.c.h.b16 %v3304
  %v3375 = vunpack.c.l.b16 %v3305
  %v3376 = vunpack.c.h.b16 %v3305
  %v3377 = vunpack.c.l.b16 %v3306
  %v3378 = vunpack.c.h.b16 %v3306
  %v3379 = vpack.c.b16 %v3333, %v3331
  %v3380 = vpack.c.b16 %v3334, %v3332
  %v3381 = vpack.c.b16 %v3337, %v3335
  %v3382 = vpack.c.b16 %v3338, %v3336
  %v3383 = vpack.c.b16 %v3341, %v3339
  %v3384 = vpack.c.b16 %v3342, %v3340
  %v3385 = vpack.c.b16 %v3345, %v3343
  %v3386 = vpack.c.b16 %v3346, %v3344
  %v3387 = vpack.c.b16 %v3349, %v3347
  %v3388 = vpack.c.b16 %v3350, %v3348
  %v3389 = vpack.c.b16 %v3353, %v3351
  %v3390 = vpack.c.b16 %v3354, %v3352
  %v3391 = vpack.c.b16 %v3357, %v3355
  %v3392 = vpack.c.b16 %v3358, %v3356
  %v3393 = vpack.c.b16 %v3361, %v3359
  %v3394 = vpack.c.b16 %v3362, %v3360
  %v3395 = vpack.c.b16 %v3365, %v3363
  %v3396 = vpack.c.b16 %v3366, %v3364
  %v3397 = vpack.c.b16 %v3369, %v3367
  %v3398 = vpack.c.b16 %v3370, %v3368
  %v3399 = vpack.c.b16 %v3373, %v3371
  %v3400 = vpack.c.b16 %v3374, %v3372
  %v3401 = vpack.c.b16 %v3377, %v3375
  %v3402 = vpack.c.b16 %v3378, %v3376
  %v3428 = vsel %vm1968, %v3278, 0
  %v3431 = vsel %vm1968, %v3280, 0
  %v3434 = vsel %vm1968, %v3282, 0
  %3436 = vmatprep.subr.bf16.mxu0 %v3380
  %3437 = vmatpush1.bf16.msra.mxu0 %v3379
  %3438 = vmatprep.subr.bf16.mxu0 %v3382
  %3439 = vmatpush1.bf16.msra.mxu0 %v3381
  %3440 = vmatprep.subr.bf16.mxu0 %v3384
  %3441 = vmatpush1.bf16.msra.mxu0 %v3383
  %3442 = vmatprep.subr.bf16.mxu0 %v3386
  %3443 = vmatpush1.bf16.msra.mxu0 %v3385
  %3444 = vmatprep.subr.bf16.mxu0 %v3388
  %3445 = vmatpush1.bf16.msra.mxu0 %v3387
  %3446 = vmatprep.subr.bf16.mxu0 %v3390
  %3447 = vmatpush1.bf16.msra.mxu0 %v3389
  %3448 = vmatprep.subr.bf16.mxu0 %v3392
  %3449 = vmatpush1.bf16.msra.mxu0 %v3391
  %3450 = vmatprep.subr.bf16.mxu0 %v3394
  %3451 = vmatpush1.bf16.msra.mxu0 %v3393
  %3452 = vmatprep.subr.bf16.mxu0 %v3396
  %3453 = vmatpush1.bf16.msra.mxu0 %v3395
  %3454 = vmatprep.subr.bf16.mxu0 %v3398
  %3455 = vmatpush1.bf16.msra.mxu0 %v3397
  %3456 = vmatprep.subr.bf16.mxu0 %v3400
  %3457 = vmatpush1.bf16.msra.mxu0 %v3399
  %3458 = vmatprep.subr.bf16.mxu0 %v3402
  %3459 = vmatpush1.bf16.msra.mxu0 %v3401
  %3460 = vmatprep.subr.bf16.mxu0 0
  %3461 = vmatpush1.bf16.msra.mxu0 0
  %3462 = vmatprep.subr.bf16.mxu0 0
  %3463 = vmatpush1.bf16.msra.mxu0 0
  %3464 = vmatprep.subr.bf16.mxu0 0
  %3465 = vmatpush1.bf16.msra.mxu0 0
  %3466 = vmatprep.subr.bf16.mxu0 0
  %3467 = vmatpush1.bf16.msra.mxu0 0
  %3468 = vmatprep.mubr.bf16.mxu0 %v3428
  %3469 = vmatmul.mubr.bf16.gmra.mrb[0].mxu0 %v3277
  %v3470 = vpop.f32.mrb[0].mxu0
  %v3471 = vadd.f32 0.0, %v3470
  %v3472 = vpop.f32.mrb[0].mxu0
  %v3473 = vadd.f32 0.0, %v3472
  %v3474 = vpop.f32.mrb[0].mxu0
  %v3475 = vadd.f32 0.0, %v3474
  %v3476 = vpop.f32.mrb[0].mxu0
  %v3477 = vadd.f32 0.0, %v3476
  %3478 = vmatprep.mubr.bf16.mxu0 %v3431
  %3479 = vmatmul.mubr.bf16.gmra.mrb[0].mxu0 %v3279
  %v3480 = vpop.f32.mrb[0].mxu0
  %v3481 = vadd.f32 0.0, %v3480
  %v3482 = vpop.f32.mrb[0].mxu0
  %v3483 = vadd.f32 0.0, %v3482
  %v3484 = vpop.f32.mrb[0].mxu0
  %v3485 = vadd.f32 0.0, %v3484
  %v3486 = vpop.f32.mrb[0].mxu0
  %v3487 = vadd.f32 0.0, %v3486
  %3488 = vmatprep.mubr.bf16.mxu0 %v3434
  %3489 = vmatmul.mubr.bf16.gmra.mrb[0].mxu0 %v3281
  %v3490 = vpop.f32.mrb[0].mxu0
  %v3491 = vadd.f32 0.0, %v3490
  %v3492 = vpop.f32.mrb[0].mxu0
  %v3493 = vadd.f32 0.0, %v3492
  %v3494 = vpop.f32.mrb[0].mxu0
  %v3495 = vadd.f32 0.0, %v3494
  %v3496 = vpop.f32.mrb[0].mxu0
  %v3497 = vadd.f32 0.0, %v3496
  %3498 = vdwg.mxu0
  %v3499 = vmax.f32 %v3471, %v3473
  %v3500 = vmax.f32 %v3475, %v3477
  %v3501 = vmax.f32 %v3481, %v3483
  %v3502 = vmax.f32 %v3485, %v3487
  %v3503 = vmax.f32 %v3491, %v3493
  %v3504 = vmax.f32 %v3495, %v3497
  %v3505 = vpack.c.bf16 %v3500, %v3499
  %v3506 = vpack.c.bf16 %v3502, %v3501
  %v3507 = vpack.c.bf16 %v3504, %v3503
  %v3511 = vunpack.c.l.b16 %v3505
  %v3512 = vunpack.c.h.b16 %v3505
  %v3513 = vunpack.c.l.b16 %v3506
  %v3514 = vunpack.c.h.b16 %v3506
  %v3515 = vunpack.c.l.b16 %v3507
  %v3516 = vunpack.c.h.b16 %v3507
  %v3517 = vpack.c.b16 %v3511, %v3511
  %v3518 = vpack.c.b16 %v3512, %v3512
  %v3519 = vpack.c.b16 %v3513, %v3513
  %v3520 = vpack.c.b16 %v3514, %v3514
  %v3521 = vpack.c.b16 %v3515, %v3515
  %v3522 = vpack.c.b16 %v3516, %v3516
  %v3529 = vld [vmem:[%s7] sm:$0xf]
  %v3530 = vld [vmem:[%s7 + $0x4] sm:$0xf]
  %v3531 = vld [vmem:[%s7 + $0x8] sm:$0xf]
  %v3532 = vld [vmem:[%s7 + $0xc] sm:$0xf]
  %v3533 = vld [vmem:[%s7 + $0x10] sm:$0xf]
  %v3534 = vld [vmem:[%s7 + $0x14] sm:$0xf]
  %v3535 = vld [vmem:[%s7 + $0x18] sm:$0xf]
  %v3536 = vld [vmem:[%s7 + $0x1c] sm:$0xf]
  %v3537 = vld [vmem:[%s7 + $0x20] sm:$0xf]
  %v3538 = vld [vmem:[%s7 + $0x24] sm:$0xf]
  %v3539 = vld [vmem:[%s7 + $0x28] sm:$0xf]
  %v3540 = vld [vmem:[%s7 + $0x2c] sm:$0xf]
  %v3541 = vld [vmem:[%s7 + $0x30] sm:$0xf]
  %v3542 = vld [vmem:[%s7 + $0x34] sm:$0xf]
  %v3543 = vld [vmem:[%s7 + $0x38] sm:$0xf]
  %v3544 = vld [vmem:[%s7 + $0x3c] sm:$0xf]
  %s3545 = scalar_lea.vmem %s7, 64
  %v3546 = vld [vmem:[%s3545] sm:$0xf]
  %v3547 = vld [vmem:[%s3545 + $0x4] sm:$0xf]
  %v3548 = vld [vmem:[%s3545 + $0x8] sm:$0xf]
  %v3549 = vld [vmem:[%s3545 + $0xc] sm:$0xf]
  %v3550 = vld [vmem:[%s3545 + $0x10] sm:$0xf]
  %v3551 = vld [vmem:[%s3545 + $0x14] sm:$0xf]
  %v3552 = vld [vmem:[%s3545 + $0x18] sm:$0xf]
  %v3553 = vld [vmem:[%s3545 + $0x1c] sm:$0xf]
  %v3554 = vld [vmem:[%s3545 + $0x20] sm:$0xf]
  %v3555 = vld [vmem:[%s3545 + $0x24] sm:$0xf]
  %v3556 = vld [vmem:[%s3545 + $0x28] sm:$0xf]
  %v3557 = vld [vmem:[%s3545 + $0x2c] sm:$0xf]
  %v3558 = vld [vmem:[%s3545 + $0x30] sm:$0xf]
  %v3559 = vld [vmem:[%s3545 + $0x34] sm:$0xf]
  %v3560 = vld [vmem:[%s3545 + $0x38] sm:$0xf]
  %v3561 = vld [vmem:[%s3545 + $0x3c] sm:$0xf]
  %v3578 = vunpack.c.l.b16 %v3546
  %v3579 = vunpack.c.l.b16 %v3547
  %v3580 = vunpack.c.l.b16 %v3548
  %v3581 = vunpack.c.l.b16 %v3549
  %v3582 = vunpack.c.l.b16 %v3550
  %v3583 = vunpack.c.l.b16 %v3551
  %v3584 = vunpack.c.l.b16 %v3552
  %v3585 = vunpack.c.l.b16 %v3553
  %v3586 = vunpack.c.l.b16 %v3554
  %v3587 = vunpack.c.l.b16 %v3555
  %v3588 = vunpack.c.l.b16 %v3556
  %v3589 = vunpack.c.l.b16 %v3557
  %v3590 = vunpack.c.l.b16 %v3558
  %v3591 = vunpack.c.l.b16 %v3559
  %v3592 = vunpack.c.l.b16 %v3560
  %v3593 = vunpack.c.l.b16 %v3561
  %v3594 = vpack.c.b16 %v3579, %v3578
  %v3595 = vpack.c.b16 %v3581, %v3580
  %v3596 = vpack.c.b16 %v3583, %v3582
  %v3597 = vpack.c.b16 %v3585, %v3584
  %v3598 = vpack.c.b16 %v3587, %v3586
  %v3599 = vpack.c.b16 %v3589, %v3588
  %v3600 = vpack.c.b16 %v3591, %v3590
  %v3601 = vpack.c.b16 %v3593, %v3592
  %3610 = vmatprep.subr.bf16.mxu0 0
  %3611 = vmatpush1.bf16.msra.mxu0 %v3594
  %3612 = vmatprep.subr.bf16.mxu0 0
  %3613 = vmatpush1.bf16.msra.mxu0 %v3595
  %3614 = vmatprep.subr.bf16.mxu0 0
  %3615 = vmatpush1.bf16.msra.mxu0 %v3596
  %3616 = vmatprep.subr.bf16.mxu0 0
  %3617 = vmatpush1.bf16.msra.mxu0 %v3597
  %3618 = vmatprep.subr.bf16.mxu0 0
  %3619 = vmatpush1.bf16.msra.mxu0 %v3598
  %3620 = vmatprep.subr.bf16.mxu0 0
  %3621 = vmatpush1.bf16.msra.mxu0 %v3599
  %3622 = vmatprep.subr.bf16.mxu0 0
  %3623 = vmatpush1.bf16.msra.mxu0 %v3600
  %3624 = vmatprep.subr.bf16.mxu0 0
  %3625 = vmatpush1.bf16.msra.mxu0 %v3601
  %3626 = vmatprep.subr.bf16.mxu0 0
  %3627 = vmatpush1.bf16.msra.mxu0 0
  %3628 = vmatprep.subr.bf16.mxu0 0
  %3629 = vmatpush1.bf16.msra.mxu0 0
  %3630 = vmatprep.subr.bf16.mxu0 0
  %3631 = vmatpush1.bf16.msra.mxu0 0
  %3632 = vmatprep.subr.bf16.mxu0 0
  %3633 = vmatpush1.bf16.msra.mxu0 0
  %3634 = vmatprep.subr.bf16.mxu0 0
  %3635 = vmatpush1.bf16.msra.mxu0 0
  %3636 = vmatprep.subr.bf16.mxu0 0
  %3637 = vmatpush1.bf16.msra.mxu0 0
  %3638 = vmatprep.subr.bf16.mxu0 0
  %3639 = vmatpush1.bf16.msra.mxu0 0
  %3640 = vmatprep.subr.bf16.mxu0 0
  %3641 = vmatpush1.bf16.msra.mxu0 0
  %3642 = vmatprep.mubr.bf16.mxu0 0
  %3643 = vmatmul.mubr.bf16.gmra.mrb[0].mxu0 %v3518
  %v3644 = vpop.f32.mrb[0].mxu0
  %v3645 = vadd.f32 0.0, %v3644
  %v3646 = vpop.f32.mrb[0].mxu0
  %v3647 = vpop.f32.mrb[0].mxu0
  %v3648 = vpop.f32.mrb[0].mxu0
  %3649 = vdwg.mxu0
  %v3666 = vunpack.c.l.b16 %v3529
  %v3667 = vunpack.c.l.b16 %v3530
  %v3668 = vunpack.c.l.b16 %v3531
  %v3669 = vunpack.c.l.b16 %v3532
  %v3670 = vunpack.c.l.b16 %v3533
  %v3671 = vunpack.c.l.b16 %v3534
  %v3672 = vunpack.c.l.b16 %v3535
  %v3673 = vunpack.c.l.b16 %v3536
  %v3674 = vunpack.c.l.b16 %v3537
  %v3675 = vunpack.c.l.b16 %v3538
  %v3676 = vunpack.c.l.b16 %v3539
  %v3677 = vunpack.c.l.b16 %v3540
  %v3678 = vunpack.c.l.b16 %v3541
  %v3679 = vunpack.c.l.b16 %v3542
  %v3680 = vunpack.c.l.b16 %v3543
  %v3681 = vunpack.c.l.b16 %v3544
  %v3682 = vpack.c.b16 %v3667, %v3666
  %v3683 = vpack.c.b16 %v3669, %v3668
  %v3684 = vpack.c.b16 %v3671, %v3670
  %v3685 = vpack.c.b16 %v3673, %v3672
  %v3686 = vpack.c.b16 %v3675, %v3674
  %v3687 = vpack.c.b16 %v3677, %v3676
  %v3688 = vpack.c.b16 %v3679, %v3678
  %v3689 = vpack.c.b16 %v3681, %v3680
  %3698 = vmatprep.subr.bf16.mxu0 0
  %3699 = vmatpush1.bf16.msra.mxu0 %v3682
  %3700 = vmatprep.subr.bf16.mxu0 0
  %3701 = vmatpush1.bf16.msra.mxu0 %v3683
  %3702 = vmatprep.subr.bf16.mxu0 0
  %3703 = vmatpush1.bf16.msra.mxu0 %v3684
  %3704 = vmatprep.subr.bf16.mxu0 0
  %3705 = vmatpush1.bf16.msra.mxu0 %v3685
  %3706 = vmatprep.subr.bf16.mxu0 0
  %3707 = vmatpush1.bf16.msra.mxu0 %v3686
  %3708 = vmatprep.subr.bf16.mxu0 0
  %3709 = vmatpush1.bf16.msra.mxu0 %v3687
  %3710 = vmatprep.subr.bf16.mxu0 0
  %3711 = vmatpush1.bf16.msra.mxu0 %v3688
  %3712 = vmatprep.subr.bf16.mxu0 0
  %3713 = vmatpush1.bf16.msra.mxu0 %v3689
  %3714 = vmatprep.subr.bf16.mxu0 0
  %3715 = vmatpush1.bf16.msra.mxu0 0
  %3716 = vmatprep.subr.bf16.mxu0 0
  %3717 = vmatpush1.bf16.msra.mxu0 0
  %3718 = vmatprep.subr.bf16.mxu0 0
  %3719 = vmatpush1.bf16.msra.mxu0 0
  %3720 = vmatprep.subr.bf16.mxu0 0
  %3721 = vmatpush1.bf16.msra.mxu0 0
  %3722 = vmatprep.subr.bf16.mxu0 0
  %3723 = vmatpush1.bf16.msra.mxu0 0
  %3724 = vmatprep.subr.bf16.mxu0 0
  %3725 = vmatpush1.bf16.msra.mxu0 0
  %3726 = vmatprep.subr.bf16.mxu0 0
  %3727 = vmatpush1.bf16.msra.mxu0 0
  %3728 = vmatprep.subr.bf16.mxu0 0
  %3729 = vmatpush1.bf16.msra.mxu0 0
  %3730 = vmatprep.mubr.bf16.mxu0 0
  %3731 = vmatmul.mubr.bf16.gmra.mrb[0].mxu0 %v3517
  %v3732 = vpop.f32.mrb[0].mxu0
  %v3733 = vadd.f32 %v3645, %v3732
  %v3734 = vpop.f32.mrb[0].mxu0
  %v3735 = vpop.f32.mrb[0].mxu0
  %v3736 = vpop.f32.mrb[0].mxu0
  %3737 = vdwg.mxu0
  %s3738 = scalar_lea.vmem %s7, 128
  %v3739 = vld [vmem:[%s3738] sm:$0xf]
  %v3740 = vld [vmem:[%s3738 + $0x4] sm:$0xf]
  %v3741 = vld [vmem:[%s3738 + $0x8] sm:$0xf]
  %v3742 = vld [vmem:[%s3738 + $0xc] sm:$0xf]
  %v3743 = vld [vmem:[%s3738 + $0x10] sm:$0xf]
  %v3744 = vld [vmem:[%s3738 + $0x14] sm:$0xf]
  %v3745 = vld [vmem:[%s3738 + $0x18] sm:$0xf]
  %v3746 = vld [vmem:[%s3738 + $0x1c] sm:$0xf]
  %v3747 = vld [vmem:[%s3738 + $0x20] sm:$0xf]
  %v3748 = vld [vmem:[%s3738 + $0x24] sm:$0xf]
  %v3749 = vld [vmem:[%s3738 + $0x28] sm:$0xf]
  %v3750 = vld [vmem:[%s3738 + $0x2c] sm:$0xf]
  %v3751 = vld [vmem:[%s3738 + $0x30] sm:$0xf]
  %v3752 = vld [vmem:[%s3738 + $0x34] sm:$0xf]
  %v3753 = vld [vmem:[%s3738 + $0x38] sm:$0xf]
  %v3754 = vld [vmem:[%s3738 + $0x3c] sm:$0xf]
  %v3771 = vunpack.c.l.b16 %v3739
  %v3772 = vunpack.c.l.b16 %v3740
  %v3773 = vunpack.c.l.b16 %v3741
  %v3774 = vunpack.c.l.b16 %v3742
  %v3775 = vunpack.c.l.b16 %v3743
  %v3776 = vunpack.c.l.b16 %v3744
  %v3777 = vunpack.c.l.b16 %v3745
  %v3778 = vunpack.c.l.b16 %v3746
  %v3779 = vunpack.c.l.b16 %v3747
  %v3780 = vunpack.c.l.b16 %v3748
  %v3781 = vunpack.c.l.b16 %v3749
  %v3782 = vunpack.c.l.b16 %v3750
  %v3783 = vunpack.c.l.b16 %v3751
  %v3784 = vunpack.c.l.b16 %v3752
  %v3785 = vunpack.c.l.b16 %v3753
  %v3786 = vunpack.c.l.b16 %v3754
  %v3787 = vpack.c.b16 %v3772, %v3771
  %v3788 = vpack.c.b16 %v3774, %v3773
  %v3789 = vpack.c.b16 %v3776, %v3775
  %v3790 = vpack.c.b16 %v3778, %v3777
  %v3791 = vpack.c.b16 %v3780, %v3779
  %v3792 = vpack.c.b16 %v3782, %v3781
  %v3793 = vpack.c.b16 %v3784, %v3783
  %v3794 = vpack.c.b16 %v3786, %v3785
  %3803 = vmatprep.subr.bf16.mxu0 0
  %3804 = vmatpush1.bf16.msra.mxu0 %v3787
  %3805 = vmatprep.subr.bf16.mxu0 0
  %3806 = vmatpush1.bf16.msra.mxu0 %v3788
  %3807 = vmatprep.subr.bf16.mxu0 0
  %3808 = vmatpush1.bf16.msra.mxu0 %v3789
  %3809 = vmatprep.subr.bf16.mxu0 0
  %3810 = vmatpush1.bf16.msra.mxu0 %v3790
  %3811 = vmatprep.subr.bf16.mxu0 0
  %3812 = vmatpush1.bf16.msra.mxu0 %v3791
  %3813 = vmatprep.subr.bf16.mxu0 0
  %3814 = vmatpush1.bf16.msra.mxu0 %v3792
  %3815 = vmatprep.subr.bf16.mxu0 0
  %3816 = vmatpush1.bf16.msra.mxu0 %v3793
  %3817 = vmatprep.subr.bf16.mxu0 0
  %3818 = vmatpush1.bf16.msra.mxu0 %v3794
  %3819 = vmatprep.subr.bf16.mxu0 0
  %3820 = vmatpush1.bf16.msra.mxu0 0
  %3821 = vmatprep.subr.bf16.mxu0 0
  %3822 = vmatpush1.bf16.msra.mxu0 0
  %3823 = vmatprep.subr.bf16.mxu0 0
  %3824 = vmatpush1.bf16.msra.mxu0 0
  %3825 = vmatprep.subr.bf16.mxu0 0
  %3826 = vmatpush1.bf16.msra.mxu0 0
  %3827 = vmatprep.subr.bf16.mxu0 0
  %3828 = vmatpush1.bf16.msra.mxu0 0
  %3829 = vmatprep.subr.bf16.mxu0 0
  %3830 = vmatpush1.bf16.msra.mxu0 0
  %3831 = vmatprep.subr.bf16.mxu0 0
  %3832 = vmatpush1.bf16.msra.mxu0 0
  %3833 = vmatprep.subr.bf16.mxu0 0
  %3834 = vmatpush1.bf16.msra.mxu0 0
  %3835 = vmatprep.mubr.bf16.mxu0 0
  %3836 = vmatmul.mubr.bf16.gmra.mrb[0].mxu0 %v3519
  %v3837 = vpop.f32.mrb[0].mxu0
  %v3838 = vadd.f32 0.0, %v3837
  %v3839 = vpop.f32.mrb[0].mxu0
  %v3840 = vpop.f32.mrb[0].mxu0
  %v3841 = vpop.f32.mrb[0].mxu0
  %3842 = vdwg.mxu0
  %v3843 = vadd.f32 %v3733, %v3838
  %s3844 = scalar_lea.vmem %s7, 192
  %v3845 = vld [vmem:[%s3844] sm:$0xf]
  %v3846 = vld [vmem:[%s3844 + $0x4] sm:$0xf]
  %v3847 = vld [vmem:[%s3844 + $0x8] sm:$0xf]
  %v3848 = vld [vmem:[%s3844 + $0xc] sm:$0xf]
  %v3849 = vld [vmem:[%s3844 + $0x10] sm:$0xf]
  %v3850 = vld [vmem:[%s3844 + $0x14] sm:$0xf]
  %v3851 = vld [vmem:[%s3844 + $0x18] sm:$0xf]
  %v3852 = vld [vmem:[%s3844 + $0x1c] sm:$0xf]
  %v3853 = vld [vmem:[%s3844 + $0x20] sm:$0xf]
  %v3854 = vld [vmem:[%s3844 + $0x24] sm:$0xf]
  %v3855 = vld [vmem:[%s3844 + $0x28] sm:$0xf]
  %v3856 = vld [vmem:[%s3844 + $0x2c] sm:$0xf]
  %v3857 = vld [vmem:[%s3844 + $0x30] sm:$0xf]
  %v3858 = vld [vmem:[%s3844 + $0x34] sm:$0xf]
  %v3859 = vld [vmem:[%s3844 + $0x38] sm:$0xf]
  %v3860 = vld [vmem:[%s3844 + $0x3c] sm:$0xf]
  %v3877 = vunpack.c.l.b16 %v3845
  %v3878 = vunpack.c.l.b16 %v3846
  %v3879 = vunpack.c.l.b16 %v3847
  %v3880 = vunpack.c.l.b16 %v3848
  %v3881 = vunpack.c.l.b16 %v3849
  %v3882 = vunpack.c.l.b16 %v3850
  %v3883 = vunpack.c.l.b16 %v3851
  %v3884 = vunpack.c.l.b16 %v3852
  %v3885 = vunpack.c.l.b16 %v3853
  %v3886 = vunpack.c.l.b16 %v3854
  %v3887 = vunpack.c.l.b16 %v3855
  %v3888 = vunpack.c.l.b16 %v3856
  %v3889 = vunpack.c.l.b16 %v3857
  %v3890 = vunpack.c.l.b16 %v3858
  %v3891 = vunpack.c.l.b16 %v3859
  %v3892 = vunpack.c.l.b16 %v3860
  %v3893 = vpack.c.b16 %v3878, %v3877
  %v3894 = vpack.c.b16 %v3880, %v3879
  %v3895 = vpack.c.b16 %v3882, %v3881
  %v3896 = vpack.c.b16 %v3884, %v3883
  %v3897 = vpack.c.b16 %v3886, %v3885
  %v3898 = vpack.c.b16 %v3888, %v3887
  %v3899 = vpack.c.b16 %v3890, %v3889
  %v3900 = vpack.c.b16 %v3892, %v3891
  %3909 = vmatprep.subr.bf16.mxu0 0
  %3910 = vmatpush1.bf16.msra.mxu0 %v3893
  %3911 = vmatprep.subr.bf16.mxu0 0
  %3912 = vmatpush1.bf16.msra.mxu0 %v3894
  %3913 = vmatprep.subr.bf16.mxu0 0
  %3914 = vmatpush1.bf16.msra.mxu0 %v3895
  %3915 = vmatprep.subr.bf16.mxu0 0
  %3916 = vmatpush1.bf16.msra.mxu0 %v3896
  %3917 = vmatprep.subr.bf16.mxu0 0
  %3918 = vmatpush1.bf16.msra.mxu0 %v3897
  %3919 = vmatprep.subr.bf16.mxu0 0
  %3920 = vmatpush1.bf16.msra.mxu0 %v3898
  %3921 = vmatprep.subr.bf16.mxu0 0
  %3922 = vmatpush1.bf16.msra.mxu0 %v3899
  %3923 = vmatprep.subr.bf16.mxu0 0
  %3924 = vmatpush1.bf16.msra.mxu0 %v3900
  %3925 = vmatprep.subr.bf16.mxu0 0
  %3926 = vmatpush1.bf16.msra.mxu0 0
  %3927 = vmatprep.subr.bf16.mxu0 0
  %3928 = vmatpush1.bf16.msra.mxu0 0
  %3929 = vmatprep.subr.bf16.mxu0 0
  %3930 = vmatpush1.bf16.msra.mxu0 0
  %3931 = vmatprep.subr.bf16.mxu0 0
  %3932 = vmatpush1.bf16.msra.mxu0 0
  %3933 = vmatprep.subr.bf16.mxu0 0
  %3934 = vmatpush1.bf16.msra.mxu0 0
  %3935 = vmatprep.subr.bf16.mxu0 0
  %3936 = vmatpush1.bf16.msra.mxu0 0
  %3937 = vmatprep.subr.bf16.mxu0 0
  %3938 = vmatpush1.bf16.msra.mxu0 0
  %3939 = vmatprep.subr.bf16.mxu0 0
  %3940 = vmatpush1.bf16.msra.mxu0 0
  %3941 = vmatprep.mubr.bf16.mxu0 0
  %3942 = vmatmul.mubr.bf16.gmra.mrb[0].mxu0 %v3520
  %v3943 = vpop.f32.mrb[0].mxu0
  %v3944 = vadd.f32 0.0, %v3943
  %v3945 = vpop.f32.mrb[0].mxu0
  %v3946 = vpop.f32.mrb[0].mxu0
  %v3947 = vpop.f32.mrb[0].mxu0
  %3948 = vdwg.mxu0
  %v3949 = vadd.f32 %v3843, %v3944
  %s3950 = scalar_lea.vmem %s7, 256
  %v3951 = vld [vmem:[%s3950] sm:$0xf]
  %v3952 = vld [vmem:[%s3950 + $0x4] sm:$0xf]
  %v3953 = vld [vmem:[%s3950 + $0x8] sm:$0xf]
  %v3954 = vld [vmem:[%s3950 + $0xc] sm:$0xf]
  %v3955 = vld [vmem:[%s3950 + $0x10] sm:$0xf]
  %v3956 = vld [vmem:[%s3950 + $0x14] sm:$0xf]
  %v3957 = vld [vmem:[%s3950 + $0x18] sm:$0xf]
  %v3958 = vld [vmem:[%s3950 + $0x1c] sm:$0xf]
  %v3959 = vld [vmem:[%s3950 + $0x20] sm:$0xf]
  %v3960 = vld [vmem:[%s3950 + $0x24] sm:$0xf]
  %v3961 = vld [vmem:[%s3950 + $0x28] sm:$0xf]
  %v3962 = vld [vmem:[%s3950 + $0x2c] sm:$0xf]
  %v3963 = vld [vmem:[%s3950 + $0x30] sm:$0xf]
  %v3964 = vld [vmem:[%s3950 + $0x34] sm:$0xf]
  %v3965 = vld [vmem:[%s3950 + $0x38] sm:$0xf]
  %v3966 = vld [vmem:[%s3950 + $0x3c] sm:$0xf]
  %v3983 = vunpack.c.l.b16 %v3951
  %v3984 = vunpack.c.l.b16 %v3952
  %v3985 = vunpack.c.l.b16 %v3953
  %v3986 = vunpack.c.l.b16 %v3954
  %v3987 = vunpack.c.l.b16 %v3955
  %v3988 = vunpack.c.l.b16 %v3956
  %v3989 = vunpack.c.l.b16 %v3957
  %v3990 = vunpack.c.l.b16 %v3958
  %v3991 = vunpack.c.l.b16 %v3959
  %v3992 = vunpack.c.l.b16 %v3960
  %v3993 = vunpack.c.l.b16 %v3961
  %v3994 = vunpack.c.l.b16 %v3962
  %v3995 = vunpack.c.l.b16 %v3963
  %v3996 = vunpack.c.l.b16 %v3964
  %v3997 = vunpack.c.l.b16 %v3965
  %v3998 = vunpack.c.l.b16 %v3966
  %v3999 = vpack.c.b16 %v3984, %v3983
  %v4000 = vpack.c.b16 %v3986, %v3985
  %v4001 = vpack.c.b16 %v3988, %v3987
  %v4002 = vpack.c.b16 %v3990, %v3989
  %v4003 = vpack.c.b16 %v3992, %v3991
  %v4004 = vpack.c.b16 %v3994, %v3993
  %v4005 = vpack.c.b16 %v3996, %v3995
  %v4006 = vpack.c.b16 %v3998, %v3997
  %4015 = vmatprep.subr.bf16.mxu0 0
  %4016 = vmatpush1.bf16.msra.mxu0 %v3999
  %4017 = vmatprep.subr.bf16.mxu0 0
  %4018 = vmatpush1.bf16.msra.mxu0 %v4000
  %4019 = vmatprep.subr.bf16.mxu0 0
  %4020 = vmatpush1.bf16.msra.mxu0 %v4001
  %4021 = vmatprep.subr.bf16.mxu0 0
  %4022 = vmatpush1.bf16.msra.mxu0 %v4002
  %4023 = vmatprep.subr.bf16.mxu0 0
  %4024 = vmatpush1.bf16.msra.mxu0 %v4003
  %4025 = vmatprep.subr.bf16.mxu0 0
  %4026 = vmatpush1.bf16.msra.mxu0 %v4004
  %4027 = vmatprep.subr.bf16.mxu0 0
  %4028 = vmatpush1.bf16.msra.mxu0 %v4005
  %4029 = vmatprep.subr.bf16.mxu0 0
  %4030 = vmatpush1.bf16.msra.mxu0 %v4006
  %4031 = vmatprep.subr.bf16.mxu0 0
  %4032 = vmatpush1.bf16.msra.mxu0 0
  %4033 = vmatprep.subr.bf16.mxu0 0
  %4034 = vmatpush1.bf16.msra.mxu0 0
  %4035 = vmatprep.subr.bf16.mxu0 0
  %4036 = vmatpush1.bf16.msra.mxu0 0
  %4037 = vmatprep.subr.bf16.mxu0 0
  %4038 = vmatpush1.bf16.msra.mxu0 0
  %4039 = vmatprep.subr.bf16.mxu0 0
  %4040 = vmatpush1.bf16.msra.mxu0 0
  %4041 = vmatprep.subr.bf16.mxu0 0
  %4042 = vmatpush1.bf16.msra.mxu0 0
  %4043 = vmatprep.subr.bf16.mxu0 0
  %4044 = vmatpush1.bf16.msra.mxu0 0
  %4045 = vmatprep.subr.bf16.mxu0 0
  %4046 = vmatpush1.bf16.msra.mxu0 0
  %4047 = vmatprep.mubr.bf16.mxu0 0
  %4048 = vmatmul.mubr.bf16.gmra.mrb[0].mxu0 %v3521
  %v4049 = vpop.f32.mrb[0].mxu0
  %v4050 = vadd.f32 0.0, %v4049
  %v4051 = vpop.f32.mrb[0].mxu0
  %v4052 = vpop.f32.mrb[0].mxu0
  %v4053 = vpop.f32.mrb[0].mxu0
  %4054 = vdwg.mxu0
  %v4055 = vadd.f32 %v3949, %v4050
  %s4056 = scalar_lea.vmem %s7, 320
  %v4057 = vld [vmem:[%s4056] sm:$0xf]
  %v4058 = vld [vmem:[%s4056 + $0x4] sm:$0xf]
  %v4059 = vld [vmem:[%s4056 + $0x8] sm:$0xf]
  %v4060 = vld [vmem:[%s4056 + $0xc] sm:$0xf]
  %v4061 = vld [vmem:[%s4056 + $0x10] sm:$0xf]
  %v4062 = vld [vmem:[%s4056 + $0x14] sm:$0xf]
  %v4063 = vld [vmem:[%s4056 + $0x18] sm:$0xf]
  %v4064 = vld [vmem:[%s4056 + $0x1c] sm:$0xf]
  %v4065 = vld [vmem:[%s4056 + $0x20] sm:$0xf]
  %v4066 = vld [vmem:[%s4056 + $0x24] sm:$0xf]
  %v4067 = vld [vmem:[%s4056 + $0x28] sm:$0xf]
  %v4068 = vld [vmem:[%s4056 + $0x2c] sm:$0xf]
  %v4069 = vld [vmem:[%s4056 + $0x30] sm:$0xf]
  %v4070 = vld [vmem:[%s4056 + $0x34] sm:$0xf]
  %v4071 = vld [vmem:[%s4056 + $0x38] sm:$0xf]
  %v4072 = vld [vmem:[%s4056 + $0x3c] sm:$0xf]
  %v4089 = vunpack.c.l.b16 %v4057
  %v4090 = vunpack.c.l.b16 %v4058
  %v4091 = vunpack.c.l.b16 %v4059
  %v4092 = vunpack.c.l.b16 %v4060
  %v4093 = vunpack.c.l.b16 %v4061
  %v4094 = vunpack.c.l.b16 %v4062
  %v4095 = vunpack.c.l.b16 %v4063
  %v4096 = vunpack.c.l.b16 %v4064
  %v4097 = vunpack.c.l.b16 %v4065
  %v4098 = vunpack.c.l.b16 %v4066
  %v4099 = vunpack.c.l.b16 %v4067
  %v4100 = vunpack.c.l.b16 %v4068
  %v4101 = vunpack.c.l.b16 %v4069
  %v4102 = vunpack.c.l.b16 %v4070
  %v4103 = vunpack.c.l.b16 %v4071
  %v4104 = vunpack.c.l.b16 %v4072
  %v4105 = vpack.c.b16 %v4090, %v4089
  %v4106 = vpack.c.b16 %v4092, %v4091
  %v4107 = vpack.c.b16 %v4094, %v4093
  %v4108 = vpack.c.b16 %v4096, %v4095
  %v4109 = vpack.c.b16 %v4098, %v4097
  %v4110 = vpack.c.b16 %v4100, %v4099
  %v4111 = vpack.c.b16 %v4102, %v4101
  %v4112 = vpack.c.b16 %v4104, %v4103
  %4121 = vmatprep.subr.bf16.mxu0 0
  %4122 = vmatpush1.bf16.msra.mxu0 %v4105
  %4123 = vmatprep.subr.bf16.mxu0 0
  %4124 = vmatpush1.bf16.msra.mxu0 %v4106
  %4125 = vmatprep.subr.bf16.mxu0 0
  %4126 = vmatpush1.bf16.msra.mxu0 %v4107
  %4127 = vmatprep.subr.bf16.mxu0 0
  %4128 = vmatpush1.bf16.msra.mxu0 %v4108
  %4129 = vmatprep.subr.bf16.mxu0 0
  %4130 = vmatpush1.bf16.msra.mxu0 %v4109
  %4131 = vmatprep.subr.bf16.mxu0 0
  %4132 = vmatpush1.bf16.msra.mxu0 %v4110
  %4133 = vmatprep.subr.bf16.mxu0 0
  %4134 = vmatpush1.bf16.msra.mxu0 %v4111
  %4135 = vmatprep.subr.bf16.mxu0 0
  %4136 = vmatpush1.bf16.msra.mxu0 %v4112
  %4137 = vmatprep.subr.bf16.mxu0 0
  %4138 = vmatpush1.bf16.msra.mxu0 0
  %4139 = vmatprep.subr.bf16.mxu0 0
  %4140 = vmatpush1.bf16.msra.mxu0 0
  %4141 = vmatprep.subr.bf16.mxu0 0
  %4142 = vmatpush1.bf16.msra.mxu0 0
  %4143 = vmatprep.subr.bf16.mxu0 0
  %4144 = vmatpush1.bf16.msra.mxu0 0
  %4145 = vmatprep.subr.bf16.mxu0 0
  %4146 = vmatpush1.bf16.msra.mxu0 0
  %4147 = vmatprep.subr.bf16.mxu0 0
  %4148 = vmatpush1.bf16.msra.mxu0 0
  %4149 = vmatprep.subr.bf16.mxu0 0
  %4150 = vmatpush1.bf16.msra.mxu0 0
  %4151 = vmatprep.subr.bf16.mxu0 0
  %4152 = vmatpush1.bf16.msra.mxu0 0
  %4153 = vmatprep.mubr.bf16.mxu0 0
  %4154 = vmatmul.mubr.bf16.gmra.mrb[0].mxu0 %v3522
  %v4155 = vpop.f32.mrb[0].mxu0
  %v4156 = vadd.f32 0.0, %v4155
  %v4157 = vpop.f32.mrb[0].mxu0
  %v4158 = vpop.f32.mrb[0].mxu0
  %v4159 = vpop.f32.mrb[0].mxu0
  %4160 = vdwg.mxu0
  %v4161 = vadd.f32 %v4055, %v4156
  %v4162 = vld [vmem:[%s8] sm:$0x1]
  %v4164 = vlaneseq
  %v4165 = vshrl.u32 %v4164, 7
  %v4166 = vsub.s32 0, %v4165
  %v4167 = vrot.slane %v4162, %v4166
  %v4169 = vadd.f32 %v4161, %v4167
  %v4170 = vmax.f32 %v4169, 0.0
  %v4171 = vpack.c.bf16 %v4170, %v4170
  %v4172 = vld [vmem:[%s9] sm:$0xf]
  %v4173 = vld [vmem:[%s9 + $0x4] sm:$0xf]
  %v4174 = vld [vmem:[%s9 + $0x8] sm:$0xf]
  %v4175 = vld [vmem:[%s9 + $0xc] sm:$0xf]
  %v4176 = vld [vmem:[%s10] sm:$0x1]
  %v4178 = vlaneseq
  %v4179 = vshrl.u32 %v4178, 7
  %v4180 = vsub.s32 0, %v4179
  %v4181 = vrot.slane %v4176, %v4180
  %v4187 = vunpack.c.l.b16 %v4172
  %v4188 = vunpack.c.l.b16 %v4173
  %v4189 = vunpack.c.l.b16 %v4174
  %v4190 = vunpack.c.l.b16 %v4175
  %v4191 = vpack.c.b16 %v4188, %v4187
  %v4192 = vpack.c.b16 %v4190, %v4189
  %vm4195 = vcmask 261120
  %v4197 = vsel %vm4195, %v4171, 0
  %4199 = vmatprep.subr.bf16.mxu0 0
  %4200 = vmatpush1.bf16.msra.mxu0 %v4191
  %4201 = vmatprep.subr.bf16.mxu0 0
  %4202 = vmatpush1.bf16.msra.mxu0 %v4192
  %4203 = vmatprep.subr.bf16.mxu0 0
  %4204 = vmatpush1.bf16.msra.mxu0 0
  %4205 = vmatprep.subr.bf16.mxu0 0
  %4206 = vmatpush1.bf16.msra.mxu0 0
  %4207 = vmatprep.subr.bf16.mxu0 0
  %4208 = vmatpush1.bf16.msra.mxu0 0
  %4209 = vmatprep.subr.bf16.mxu0 0
  %4210 = vmatpush1.bf16.msra.mxu0 0
  %4211 = vmatprep.subr.bf16.mxu0 0
  %4212 = vmatpush1.bf16.msra.mxu0 0
  %4213 = vmatprep.subr.bf16.mxu0 0
  %4214 = vmatpush1.bf16.msra.mxu0 0
  %4215 = vmatprep.subr.bf16.mxu0 0
  %4216 = vmatpush1.bf16.msra.mxu0 0
  %4217 = vmatprep.subr.bf16.mxu0 0
  %4218 = vmatpush1.bf16.msra.mxu0 0
  %4219 = vmatprep.subr.bf16.mxu0 0
  %4220 = vmatpush1.bf16.msra.mxu0 0
  %4221 = vmatprep.subr.bf16.mxu0 0
  %4222 = vmatpush1.bf16.msra.mxu0 0
  %4223 = vmatprep.subr.bf16.mxu0 0
  %4224 = vmatpush1.bf16.msra.mxu0 0
  %4225 = vmatprep.subr.bf16.mxu0 0
  %4226 = vmatpush1.bf16.msra.mxu0 0
  %4227 = vmatprep.subr.bf16.mxu0 0
  %4228 = vmatpush1.bf16.msra.mxu0 0
  %4229 = vmatprep.subr.bf16.mxu0 0
  %4230 = vmatpush1.bf16.msra.mxu0 0
  %4231 = vmatprep.mubr.bf16.mxu0 0
  %4232 = vmatmul.mubr.bf16.gmra.mrb[0].mxu0 %v4197
  %v4233 = vpop.f32.mrb[0].mxu0
  %v4234 = vadd.f32 %v4181, %v4233
  %v4235 = vpop.f32.mrb[0].mxu0
  %v4236 = vpop.f32.mrb[0].mxu0
  %v4237 = vpop.f32.mrb[0].mxu0
  %4238 = vdwg.mxu0
  %v4239 = vmax.f32 %v4234, 0.0
  %v4240 = vpack.c.bf16 %v4239, %v4239
  %v4241 = vld [vmem:[%s11] sm:$0xf]
  %v4242 = vld [vmem:[%s11 + $0x4] sm:$0xf]
  %v4243 = vld [vmem:[%s12] sm:$0x1]
  %v4245 = vlaneseq
  %v4246 = vshrl.u32 %v4245, 7
  %v4247 = vsub.s32 0, %v4246
  %v4248 = vrot.slane %v4243, %v4247
  %v4252 = vunpack.c.l.b16 %v4241
  %v4253 = vunpack.c.l.b16 %v4242
  %v4254 = vpack.c.b16 %v4253, %v4252
  %vm4256 = vcmask 130048
  %v4258 = vsel %vm4256, %v4240, 0
  %4260 = vmatprep.subr.bf16.mxu0 0
  %4261 = vmatpush1.bf16.msra.mxu0 %v4254
  %4262 = vmatprep.subr.bf16.mxu0 0
  %4263 = vmatpush1.bf16.msra.mxu0 0
  %4264 = vmatprep.subr.bf16.mxu0 0
  %4265 = vmatpush1.bf16.msra.mxu0 0
  %4266 = vmatprep.subr.bf16.mxu0 0
  %4267 = vmatpush1.bf16.msra.mxu0 0
  %4268 = vmatprep.subr.bf16.mxu0 0
  %4269 = vmatpush1.bf16.msra.mxu0 0
  %4270 = vmatprep.subr.bf16.mxu0 0
  %4271 = vmatpush1.bf16.msra.mxu0 0
  %4272 = vmatprep.subr.bf16.mxu0 0
  %4273 = vmatpush1.bf16.msra.mxu0 0
  %4274 = vmatprep.subr.bf16.mxu0 0
  %4275 = vmatpush1.bf16.msra.mxu0 0
  %4276 = vmatprep.subr.bf16.mxu0 0
  %4277 = vmatpush1.bf16.msra.mxu0 0
  %4278 = vmatprep.subr.bf16.mxu0 0
  %4279 = vmatpush1.bf16.msra.mxu0 0
  %4280 = vmatprep.subr.bf16.mxu0 0
  %4281 = vmatpush1.bf16.msra.mxu0 0
  %4282 = vmatprep.subr.bf16.mxu0 0
  %4283 = vmatpush1.bf16.msra.mxu0 0
  %4284 = vmatprep.subr.bf16.mxu0 0
  %4285 = vmatpush1.bf16.msra.mxu0 0
  %4286 = vmatprep.subr.bf16.mxu0 0
  %4287 = vmatpush1.bf16.msra.mxu0 0
  %4288 = vmatprep.subr.bf16.mxu0 0
  %4289 = vmatpush1.bf16.msra.mxu0 0
  %4290 = vmatprep.subr.bf16.mxu0 0
  %4291 = vmatpush1.bf16.msra.mxu0 0
  %4292 = vmatprep.mubr.bf16.mxu0 0
  %4293 = vmatmul.mubr.bf16.gmra.mrb[0].mxu0 %v4258
  %v4294 = vpop.f32.mrb[0].mxu0
  %v4295 = vadd.f32 %v4248, %v4294
  %v4296 = vpop.f32.mrb[0].mxu0
  %v4297 = vpop.f32.mrb[0].mxu0
  %v4298 = vpop.f32.mrb[0].mxu0
  %4299 = vdwg.mxu0
  %4300 = vst [vmem:[%s13] sm:$0xff] %v4295
  // Predicated region
  $region54: #{net_forward.1} parent=0 // pred_check
    _
  $region55: #{net_forward.1} parent=0 // pred_check_branch
    %4302 = sbr.rel (0) target = $region57
  $region56: #{net_forward.1} parent=0 // pred_region
    _
  $region57: #{net_forward.1} parent=0 // pred_fallthru
    _
  // Predicated region
  $region58: #{net_forward.1} parent=0 // pred_check
    _
  $region59: #{net_forward.1} parent=0 // pred_check_branch
    %4304 = sbr.rel (0) target = $region61
  $region60: #{net_forward.1} parent=0 // pred_region
    _
  $region61: #{net_forward.1} parent=0 // pred_fallthru
    _

</llo_original>
